<compile_context>
chip_gen: v6e
topology: v6e:2x2x1
jax: 0.10.0
libtpu: 0.0.40
codegen_flags: <defaults>
</compile_context>

<pallas_src>
import math
import jax
import jax.numpy as jnp
from jax.experimental import pallas as pl
from jax.experimental.pallas import tpu as pltpu

# ---- synthetic "small BERT" config (bert-base scaled down) ------------------
B, S, H = 2, 8, 32          # batch, seq, hidden
NUM_HEADS = 4
DH = H // NUM_HEADS
INTER = 64                  # intermediate (FFN) size
NUM_LAYERS = 2
VOCAB = 100
MAX_POS = 16
NUM_LABELS = 10
LPAD = 128                  # lane-padded classifier width
LN_EPS = 1e-12              # BERT LayerNorm eps


# ------------------------- in-kernel math helpers ----------------------------
def _ln(x, g, b):
    mu = jnp.mean(x, axis=-1, keepdims=True)
    var = jnp.mean((x - mu) ** 2, axis=-1, keepdims=True)
    return (x - mu) * jax.lax.rsqrt(var + LN_EPS) * g + b


def _gelu(x):
    # TODO(synk): HF BERT uses exact erf-based GELU; tanh approximation used here.
    c = math.sqrt(2.0 / math.pi)
    return 0.5 * x * (1.0 + jnp.tanh(c * (x + 0.044715 * x * x * x)))


# ------------------------------- fused kernel --------------------------------
def bert_batch_kernel(emb_ref, mbias_ref, onehot_ref,
                      wqkv_ref, wo_ref, w1_ref, w2_ref,
                      lsmall_ref, csmall_ref, poolw_ref, clsw_ref,
                      out_ref,
                      qkv3_ref, ctx_ref):
    """Full BERT forward for ONE batch element (grid axis = batch, 'parallel')."""
    csm = csmall_ref[...]                         # [8, 128] packed constants
    emb_g, emb_b = csm[0:1, 0:H], csm[1:2, 0:H]
    pool_b = csm[2:3, 0:H]
    cls_b = csm[3:4, 0:LPAD]                      # padded label columns carry -1e9

    mb3 = mbias_ref[...].reshape(1, 1, S)         # HF -10000 key-pad bias, [1,1,S]

    # -- embedding LayerNorm ---------------------------------------------------
    h = _ln(emb_ref[...], emb_g, emb_b)           # [S, H] f32

    # -- encoder layers, fully unrolled (no layer grid) ------------------------
    for l in range(NUM_LAYERS):
        sp = lsmall_ref[l]                        # [8, 128] packed per-layer vecs
        b_qkv = sp[0:1, 0:3 * H]
        b_ff1 = sp[1:2, 0:INTER]
        b_o = sp[2:3, 0:H]
        ln1_g, ln1_b = sp[3:4, 0:H], sp[4:5, 0:H]
        b_ff2 = sp[5:6, 0:H]
        ln2_g, ln2_b = sp[6:7, 0:H], sp[7:8, 0:H]

        # fused QKV projection (1/sqrt(DH) already folded into q columns)
        qkv = jnp.dot(h.astype(jnp.bfloat16), wqkv_ref[l],
                      preferred_element_type=jnp.float32) + b_qkv   # [S, 3H]

        # head-major relayout via VMEM scratch -> batched attention, one softmax
        for hd in range(NUM_HEADS):
            qkv3_ref[0, hd, :, :] = qkv[:, hd * DH:(hd + 1) * DH]
            qkv3_ref[1, hd, :, :] = qkv[:, H + hd * DH:H + (hd + 1) * DH]
            qkv3_ref[2, hd, :, :] = qkv[:, 2 * H + hd * DH:2 * H + (hd + 1) * DH]
        q3 = qkv3_ref[0].astype(jnp.bfloat16)     # [NH, S, DH]
        k3 = qkv3_ref[1].astype(jnp.bfloat16)
        v3 = qkv3_ref[2].astype(jnp.bfloat16)

        s = jnp.einsum('hqd,hkd->hqk', q3, k3,
                       preferred_element_type=jnp.float32)           # [NH, S, S]
        s = s + mb3
        s = s - jnp.max(s, axis=-1, keepdims=True)
        p = jnp.exp(s)
        p = p * pl.reciprocal(jnp.sum(p, axis=-1, keepdims=True), approx=True)
        c3 = jnp.einsum('hqk,hkd->hqd', p.astype(jnp.bfloat16), v3,
                        preferred_element_type=jnp.float32)           # [NH, S, DH]
        for hd in range(NUM_HEADS):               # column-slice writes, no lane concat
            ctx_ref[:, hd * DH:(hd + 1) * DH] = c3[hd]

        attn = jnp.dot(ctx_ref[...].astype(jnp.bfloat16), wo_ref[l],
                       preferred_element_type=jnp.float32) + b_o
        x = _ln(h + attn, ln1_g, ln1_b)

        ff = _gelu(jnp.dot(x.astype(jnp.bfloat16), w1_ref[l],
                           preferred_element_type=jnp.float32) + b_ff1)
        ff = jnp.dot(ff.astype(jnp.bfloat16), w2_ref[l],
                     preferred_element_type=jnp.float32) + b_ff2
        h = _ln(x + ff, ln2_g, ln2_b)

    # -- pooler (CLS = row 0 of this batch) + classifier, kept in f32 ----------
    pooled = jnp.tanh(jnp.dot(h[0:1, :], poolw_ref[...],
                              preferred_element_type=jnp.float32) + pool_b)
    # nn.Dropout(pooled_output): identity in eval mode (deterministic forward)
    logits = jnp.dot(pooled, clsw_ref[...],
                     preferred_element_type=jnp.float32) + cls_b      # [1, LPAD]

    # per-example cross-entropy; padded label columns carry -1e9 bias -> exp()==0
    m = jnp.max(logits, axis=-1, keepdims=True)
    lse = jnp.log(jnp.sum(jnp.exp(logits - m), axis=-1, keepdims=True)) + m
    tgt = jnp.sum(onehot_ref[...] * logits, axis=-1, keepdims=True)   # [1, 1]
    loss = lse - tgt                                                  # [1, 1]

    # one full (8,128)-tile store: row 0 = logits, row 1 = per-example loss
    out_ref[...] = jnp.concatenate(
        [logits,
         jnp.broadcast_to(loss, (1, LPAD)),
         jnp.zeros((6, LPAD), jnp.float32)], axis=0)


# ------------------------------ pallas_call glue ------------------------------
def _full_spec(a):
    nd = a.ndim
    return pl.BlockSpec(tuple(a.shape), lambda b: (0,) * nd)


def _batch_spec(a):
    nd = a.ndim
    return pl.BlockSpec((None,) + tuple(a.shape[1:]),
                        lambda b: (b,) + (0,) * (nd - 1))


def _bert_pallas_forward(emb, mask_bias, onehot, p):
    consts = [p['w_qkv'], p['w_o'], p['w_ff1'], p['w_ff2'],
              p['layer_small'], p['const_small'], p['pool_w'], p['cls_w']]
    return pl.pallas_call(
        bert_batch_kernel,
        grid=(B,),
        in_specs=([_batch_spec(emb), _batch_spec(mask_bias), _batch_spec(onehot)]
                  + [_full_spec(a) for a in consts]),
        out_specs=pl.BlockSpec((None, 8, LPAD), lambda b: (b, 0, 0)),
        out_shape=jax.ShapeDtypeStruct((B, 8, LPAD), jnp.float32),
        scratch_shapes=[pltpu.VMEM((3, NUM_HEADS, S, DH), jnp.float32),  # q/k/v head-major
                        pltpu.VMEM((S, H), jnp.float32)],                # context assembly
        compiler_params=pltpu.CompilerParams(
            dimension_semantics=("parallel",),          # v7x: batch across the 2 TCs
            vmem_limit_bytes=32 * 1024 * 1024),         # raise further when scaling up
    )(emb, mask_bias, onehot, *consts)


# ------------------------------ model forward ---------------------------------
def bert_domain_classifier_forward(params, input_ids, attention_mask, labels=None):
    # TODO(synk): embedding-table gather (word/pos/type) stays in plain-JAX glue.
    emb = (jnp.take(params['word_emb'], input_ids, axis=0)
           + params['pos_emb'][None, :S, :]
           + params['type_emb'][0][None, None, :])                  # [B, S, H]

    # HF-style additive key-pad bias, tiny [B, 1, S] (no dense [B*S,B*S] tensor)
    mask_f = attention_mask.astype(jnp.float32)
    mask_bias = ((1.0 - mask_f) * -10000.0).reshape(B, 1, S)

    if labels is not None:
        onehot = jax.nn.one_hot(labels, LPAD, dtype=jnp.float32).reshape(B, 1, LPAD)
    else:
        onehot = jnp.zeros((B, 1, LPAD), jnp.float32)

    out = _bert_pallas_forward(emb, mask_bias, onehot, params)       # [B, 8, LPAD]
    logits = out[:, 0, :NUM_LABELS]
    loss = jnp.mean(out[:, 1, 0]) if labels is not None else None
    return {'loss': loss, 'logits': logits}


# ------------------------------ parameter init --------------------------------
def init_params(key):
    keys = iter(jax.random.split(key, 16))

    def nrm(shape):
        return jax.random.normal(next(keys), shape, jnp.float32) * 0.02

    def nrm_l(shape):
        return jax.random.normal(next(keys), (NUM_LAYERS,) + shape, jnp.float32) * 0.02

    # fold the 1/sqrt(DH) attention scale into the q columns (review item 8)
    scale = 1.0 / math.sqrt(DH)
    w_qkv = nrm_l((H, 3 * H)).at[:, :, 0:H].multiply(scale)
    b_qkv = jnp.zeros((NUM_LAYERS, 3 * H), jnp.float32).at[:, 0:H].multiply(scale)

    # pack all small per-layer vectors into ONE (8,128) tile per layer
    ones_h = jnp.ones((NUM_LAYERS, H), jnp.float32)
    zeros_h = jnp.zeros((NUM_LAYERS, H), jnp.float32)
    layer_small = jnp.zeros((NUM_LAYERS, 8, 128), jnp.float32)
    layer_small = layer_small.at[:, 0, 0:3 * H].set(b_qkv)                           # b_qkv
    layer_small = layer_small.at[:, 1, 0:INTER].set(jnp.zeros((NUM_LAYERS, INTER)))  # b_ff1
    layer_small = layer_small.at[:, 2, 0:H].set(zeros_h)                             # b_o
    layer_small = layer_small.at[:, 3, 0:H].set(ones_h)                              # ln1_g
    layer_small = layer_small.at[:, 4, 0:H].set(zeros_h)                             # ln1_b
    layer_small = layer_small.at[:, 5, 0:H].set(zeros_h)                             # b_ff2
    layer_small = layer_small.at[:, 6, 0:H].set(ones_h)                              # ln2_g
    layer_small = layer_small.at[:, 7, 0:H].set(zeros_h)                             # ln2_b

    # packed constants: emb-LN gamma/beta, pooler bias, classifier bias (pad -1e9)
    cls_b = jnp.full((LPAD,), -1e9, jnp.float32).at[0:NUM_LABELS].set(0.0)
    const_small = jnp.zeros((8, 128), jnp.float32)
    const_small = const_small.at[0, 0:H].set(1.0)     # emb_ln_g (rows 1,2 stay zero)
    const_small = const_small.at[3, :].set(cls_b)     # cls_b

    cls_w = jnp.zeros((H, LPAD), jnp.float32).at[:, 0:NUM_LABELS].set(nrm((H, NUM_LABELS)))

    return {
        'word_emb': nrm((VOCAB, H)),
        'pos_emb': nrm((MAX_POS, H)),
        'type_emb': nrm((2, H)),
        # encoder matmul weights in bf16 (MXU), f32 accumulation
        'w_qkv': w_qkv.astype(jnp.bfloat16),
        'w_o':   nrm_l((H, H)).astype(jnp.bfloat16),
        'w_ff1': nrm_l((H, INTER)).astype(jnp.bfloat16),
        'w_ff2': nrm_l((INTER, H)).astype(jnp.bfloat16),
        'layer_small': layer_small,
        'const_small': const_small,
        # pooler / classifier kept in f32 (tiny matmuls; avoids bf16 drift)
        'pool_w': nrm((H, H)),
        'cls_w': cls_w,
    }


if __name__ == "__main__":
    key = jax.random.PRNGKey(0)
    pk, ik, lk = jax.random.split(key, 3)
    params = init_params(pk)

    input_ids = jax.random.randint(ik, (B, S), 0, VOCAB, dtype=jnp.int32)
    attention_mask = jnp.ones((B, S), jnp.int32).at[1, S - 2:].set(0)  # pad last 2 of row 1
    labels = jax.random.randint(lk, (B,), 0, NUM_LABELS, dtype=jnp.int32)

    out = bert_domain_classifier_forward(params, input_ids, attention_mask, labels)
    jax.block_until_ready(out['logits'])
    jax.block_until_ready(out['loss'])
    print("KERNEL_OK")
</pallas_src>

<mosaic_0001>
module attributes {stable_mosaic.version = 11 : i64} {
  func.func @bert_batch_kernel(%arg0: i32, %arg1: memref<1x8x32xf32, #tpu.memory_space<vmem>>, %arg2: memref<1x1x8xf32, #tpu.memory_space<vmem>>, %arg3: memref<1x1x128xf32, #tpu.memory_space<vmem>>, %arg4: memref<2x32x96xbf16, #tpu.memory_space<vmem>>, %arg5: memref<2x32x32xbf16, #tpu.memory_space<vmem>>, %arg6: memref<2x32x64xbf16, #tpu.memory_space<vmem>>, %arg7: memref<2x64x32xbf16, #tpu.memory_space<vmem>>, %arg8: memref<2x8x128xf32, #tpu.memory_space<vmem>>, %arg9: memref<8x128xf32, #tpu.memory_space<vmem>>, %arg10: memref<32x32xf32, #tpu.memory_space<vmem>>, %arg11: memref<32x128xf32, #tpu.memory_space<vmem>>, %arg12: memref<1x8x128xf32, #tpu.memory_space<vmem>>, %arg13: memref<3x4x8x8xf32, #tpu.memory_space<vmem>>, %arg14: memref<8x32xf32, #tpu.memory_space<vmem>>) attributes {dimension_semantics = [#tpu.dimension_semantics<parallel>], iteration_bounds = array<i64: 2>, scalar_prefetch = 0 : i64, scratch_operands = 2 : i64, tpu.core_type = #tpu.core_type<tc>, window_params = [{transform_indices = @transform_0, window_bounds = array<i64: 1, 8, 32>}, {transform_indices = @transform_1, window_bounds = array<i64: 1, 1, 8>}, {transform_indices = @transform_2, window_bounds = array<i64: 1, 1, 128>}, {pipeline_mode = #tpu.pipeline_mode<synchronous>, transform_indices = @transform_3, window_bounds = array<i64: 2, 32, 96>}, {pipeline_mode = #tpu.pipeline_mode<synchronous>, transform_indices = @transform_4, window_bounds = array<i64: 2, 32, 32>}, {pipeline_mode = #tpu.pipeline_mode<synchronous>, transform_indices = @transform_5, window_bounds = array<i64: 2, 32, 64>}, {pipeline_mode = #tpu.pipeline_mode<synchronous>, transform_indices = @transform_6, window_bounds = array<i64: 2, 64, 32>}, {pipeline_mode = #tpu.pipeline_mode<synchronous>, transform_indices = @transform_7, window_bounds = array<i64: 2, 8, 128>}, {pipeline_mode = #tpu.pipeline_mode<synchronous>, transform_indices = @transform_8, window_bounds = array<i64: 8, 128>}, {pipeline_mode = #tpu.pipeline_mode<synchronous>, transform_indices = @transform_9, window_bounds = array<i64: 32, 32>}, {pipeline_mode = #tpu.pipeline_mode<synchronous>, transform_indices = @transform_10, window_bounds = array<i64: 32, 128>}, {transform_indices = @transform_11, window_bounds = array<i64: 1, 8, 128>}]} {
    %c0 = arith.constant 0 : index
    %c0_0 = arith.constant 0 : index
    %0 = vector.load %arg9[%c0, %c0_0] : memref<8x128xf32, #tpu.memory_space<vmem>>, vector<8x128xf32>
    %1 = vector.extract_strided_slice %0 {offsets = [0, 0], sizes = [1, 32], strides = [1, 1]} : vector<8x128xf32> to vector<1x32xf32>
    %2 = vector.extract_strided_slice %0 {offsets = [1, 0], sizes = [1, 32], strides = [1, 1]} : vector<8x128xf32> to vector<1x32xf32>
    %3 = vector.extract_strided_slice %0 {offsets = [2, 0], sizes = [1, 32], strides = [1, 1]} : vector<8x128xf32> to vector<1x32xf32>
    %4 = vector.extract_strided_slice %0 {offsets = [3, 0], sizes = [1, 128], strides = [1, 1]} : vector<8x128xf32> to vector<1x128xf32>
    %c0_1 = arith.constant 0 : index
    %c0_2 = arith.constant 0 : index
    %c0_3 = arith.constant 0 : index
    %5 = vector.load %arg2[%c0_1, %c0_2, %c0_3] : memref<1x1x8xf32, #tpu.memory_space<vmem>>, vector<1x1x8xf32>
    %6 = vector.shape_cast %5 : vector<1x1x8xf32> to vector<1x8xf32>
    %7 = vector.shape_cast %6 : vector<1x8xf32> to vector<1x1x8xf32>
    %c0_4 = arith.constant 0 : index
    %c0_5 = arith.constant 0 : index
    %c0_6 = arith.constant 0 : index
    %8 = vector.load %arg1[%c0_4, %c0_5, %c0_6] : memref<1x8x32xf32, #tpu.memory_space<vmem>>, vector<1x8x32xf32>
    %9 = vector.shape_cast %8 : vector<1x8x32xf32> to vector<8x32xf32>
    %cst = arith.constant dense<0.000000e+00> : vector<8xf32>
    %10 = vector.multi_reduction <add>, %9, %cst [1] : vector<8x32xf32> to vector<8xf32>
    %11 = vector.shape_cast %10 : vector<8xf32> to vector<8x1xf32>
    %cst_7 = arith.constant 3.200000e+01 : f32
    %12 = vector.broadcast %cst_7 : f32 to vector<8x1xf32>
    %13 = arith.divf %11, %12 : vector<8x1xf32>
    %14 = vector.broadcast %13 : vector<8x1xf32> to vector<8x32xf32>
    %15 = arith.subf %9, %14 : vector<8x32xf32>
    %16 = arith.mulf %15, %15 : vector<8x32xf32>
    %cst_8 = arith.constant dense<0.000000e+00> : vector<8xf32>
    %17 = vector.multi_reduction <add>, %16, %cst_8 [1] : vector<8x32xf32> to vector<8xf32>
    %18 = vector.shape_cast %17 : vector<8xf32> to vector<8x1xf32>
    %cst_9 = arith.constant 3.200000e+01 : f32
    %19 = vector.broadcast %cst_9 : f32 to vector<8x1xf32>
    %20 = arith.divf %18, %19 : vector<8x1xf32>
    %21 = vector.broadcast %13 : vector<8x1xf32> to vector<8x32xf32>
    %22 = arith.subf %9, %21 : vector<8x32xf32>
    %cst_10 = arith.constant 9.99999996E-13 : f32
    %23 = vector.broadcast %cst_10 : f32 to vector<8x1xf32>
    %24 = arith.addf %20, %23 : vector<8x1xf32>
    %25 = math.rsqrt %24 : vector<8x1xf32>
    %26 = vector.broadcast %25 : vector<8x1xf32> to vector<8x32xf32>
    %27 = arith.mulf %22, %26 : vector<8x32xf32>
    %28 = vector.broadcast %1 : vector<1x32xf32> to vector<8x32xf32>
    %29 = arith.mulf %27, %28 : vector<8x32xf32>
    %30 = vector.broadcast %2 : vector<1x32xf32> to vector<8x32xf32>
    %31 = arith.addf %29, %30 : vector<8x32xf32>
    %c0_11 = arith.constant 0 : index
    %c0_12 = arith.constant 0 : index
    %c0_13 = arith.constant 0 : index
    %32 = vector.load %arg8[%c0_11, %c0_12, %c0_13] : memref<2x8x128xf32, #tpu.memory_space<vmem>>, vector<1x8x128xf32>
    %33 = vector.shape_cast %32 : vector<1x8x128xf32> to vector<8x128xf32>
    %34 = vector.extract_strided_slice %33 {offsets = [0, 0], sizes = [1, 96], strides = [1, 1]} : vector<8x128xf32> to vector<1x96xf32>
    %35 = vector.extract_strided_slice %33 {offsets = [1, 0], sizes = [1, 64], strides = [1, 1]} : vector<8x128xf32> to vector<1x64xf32>
    %36 = vector.extract_strided_slice %33 {offsets = [2, 0], sizes = [1, 32], strides = [1, 1]} : vector<8x128xf32> to vector<1x32xf32>
    %37 = vector.extract_strided_slice %33 {offsets = [3, 0], sizes = [1, 32], strides = [1, 1]} : vector<8x128xf32> to vector<1x32xf32>
    %38 = vector.extract_strided_slice %33 {offsets = [4, 0], sizes = [1, 32], strides = [1, 1]} : vector<8x128xf32> to vector<1x32xf32>
    %39 = vector.extract_strided_slice %33 {offsets = [5, 0], sizes = [1, 32], strides = [1, 1]} : vector<8x128xf32> to vector<1x32xf32>
    %40 = vector.extract_strided_slice %33 {offsets = [6, 0], sizes = [1, 32], strides = [1, 1]} : vector<8x128xf32> to vector<1x32xf32>
    %41 = vector.extract_strided_slice %33 {offsets = [7, 0], sizes = [1, 32], strides = [1, 1]} : vector<8x128xf32> to vector<1x32xf32>
    %42 = arith.truncf %31 : vector<8x32xf32> to vector<8x32xbf16>
    %c0_14 = arith.constant 0 : index
    %c0_15 = arith.constant 0 : index
    %c0_16 = arith.constant 0 : index
    %43 = vector.load %arg4[%c0_14, %c0_15, %c0_16] : memref<2x32x96xbf16, #tpu.memory_space<vmem>>, vector<1x32x96xbf16>
    %44 = vector.shape_cast %43 : vector<1x32x96xbf16> to vector<32x96xbf16>
    %cst_17 = arith.constant dense<0.000000e+00> : vector<8x96xf32>
    %45 = tpu.matmul %42, %44, %cst_17 {dimension_numbers = #tpu.dot_dimension_numbers<[1], [0], [0], [1], [0, 0, 1, 1], [], []>} : vector<8x32xbf16>, vector<32x96xbf16>, vector<8x96xf32> -> vector<8x96xf32>
    %46 = vector.broadcast %34 : vector<1x96xf32> to vector<8x96xf32>
    %47 = arith.addf %45, %46 : vector<8x96xf32>
    %48 = vector.extract_strided_slice %47 {offsets = [0, 0], sizes = [8, 8], strides = [1, 1]} : vector<8x96xf32> to vector<8x8xf32>
    %c0_18 = arith.constant 0 : index
    %c0_19 = arith.constant 0 : index
    %c0_20 = arith.constant 0 : index
    %c0_21 = arith.constant 0 : index
    %49 = vector.load %arg13[%c0_18, %c0_19, %c0_20, %c0_21] : memref<3x4x8x8xf32, #tpu.memory_space<vmem>>, vector<1x1x8x8xf32>
    %50 = vector.shape_cast %49 : vector<1x1x8x8xf32> to vector<8x8xf32>
    %51 = vector.shape_cast %48 : vector<8x8xf32> to vector<1x1x8x8xf32>
    tpu.vector_store %arg13[%c0_18, %c0_19, %c0_20, %c0_21], %51 {strides = array<i32>} : memref<3x4x8x8xf32, #tpu.memory_space<vmem>>, vector<1x1x8x8xf32>,
    %52 = vector.extract_strided_slice %47 {offsets = [0, 32], sizes = [8, 8], strides = [1, 1]} : vector<8x96xf32> to vector<8x8xf32>
    %c1 = arith.constant 1 : index
    %c0_22 = arith.constant 0 : index
    %c0_23 = arith.constant 0 : index
    %c0_24 = arith.constant 0 : index
    %53 = vector.load %arg13[%c1, %c0_22, %c0_23, %c0_24] : memref<3x4x8x8xf32, #tpu.memory_space<vmem>>, vector<1x1x8x8xf32>
    %54 = vector.shape_cast %53 : vector<1x1x8x8xf32> to vector<8x8xf32>
    %55 = vector.shape_cast %52 : vector<8x8xf32> to vector<1x1x8x8xf32>
    tpu.vector_store %arg13[%c1, %c0_22, %c0_23, %c0_24], %55 {strides = array<i32>} : memref<3x4x8x8xf32, #tpu.memory_space<vmem>>, vector<1x1x8x8xf32>,
    %56 = vector.extract_strided_slice %47 {offsets = [0, 64], sizes = [8, 8], strides = [1, 1]} : vector<8x96xf32> to vector<8x8xf32>
    %c2 = arith.constant 2 : index
    %c0_25 = arith.constant 0 : index
    %c0_26 = arith.constant 0 : index
    %c0_27 = arith.constant 0 : index
    %57 = vector.load %arg13[%c2, %c0_25, %c0_26, %c0_27] : memref<3x4x8x8xf32, #tpu.memory_space<vmem>>, vector<1x1x8x8xf32>
    %58 = vector.shape_cast %57 : vector<1x1x8x8xf32> to vector<8x8xf32>
    %59 = vector.shape_cast %56 : vector<8x8xf32> to vector<1x1x8x8xf32>
    tpu.vector_store %arg13[%c2, %c0_25, %c0_26, %c0_27], %59 {strides = array<i32>} : memref<3x4x8x8xf32, #tpu.memory_space<vmem>>, vector<1x1x8x8xf32>,
    %60 = vector.extract_strided_slice %47 {offsets = [0, 8], sizes = [8, 8], strides = [1, 1]} : vector<8x96xf32> to vector<8x8xf32>
    %c0_28 = arith.constant 0 : index
    %c1_29 = arith.constant 1 : index
    %c0_30 = arith.constant 0 : index
    %c0_31 = arith.constant 0 : index
    %61 = vector.load %arg13[%c0_28, %c1_29, %c0_30, %c0_31] : memref<3x4x8x8xf32, #tpu.memory_space<vmem>>, vector<1x1x8x8xf32>
    %62 = vector.shape_cast %61 : vector<1x1x8x8xf32> to vector<8x8xf32>
    %63 = vector.shape_cast %60 : vector<8x8xf32> to vector<1x1x8x8xf32>
    tpu.vector_store %arg13[%c0_28, %c1_29, %c0_30, %c0_31], %63 {strides = array<i32>} : memref<3x4x8x8xf32, #tpu.memory_space<vmem>>, vector<1x1x8x8xf32>,
    %64 = vector.extract_strided_slice %47 {offsets = [0, 40], sizes = [8, 8], strides = [1, 1]} : vector<8x96xf32> to vector<8x8xf32>
    %c1_32 = arith.constant 1 : index
    %c1_33 = arith.constant 1 : index
    %c0_34 = arith.constant 0 : index
    %c0_35 = arith.constant 0 : index
    %65 = vector.load %arg13[%c1_32, %c1_33, %c0_34, %c0_35] : memref<3x4x8x8xf32, #tpu.memory_space<vmem>>, vector<1x1x8x8xf32>
    %66 = vector.shape_cast %65 : vector<1x1x8x8xf32> to vector<8x8xf32>
    %67 = vector.shape_cast %64 : vector<8x8xf32> to vector<1x1x8x8xf32>
    tpu.vector_store %arg13[%c1_32, %c1_33, %c0_34, %c0_35], %67 {strides = array<i32>} : memref<3x4x8x8xf32, #tpu.memory_space<vmem>>, vector<1x1x8x8xf32>,
    %68 = vector.extract_strided_slice %47 {offsets = [0, 72], sizes = [8, 8], strides = [1, 1]} : vector<8x96xf32> to vector<8x8xf32>
    %c2_36 = arith.constant 2 : index
    %c1_37 = arith.constant 1 : index
    %c0_38 = arith.constant 0 : index
    %c0_39 = arith.constant 0 : index
    %69 = vector.load %arg13[%c2_36, %c1_37, %c0_38, %c0_39] : memref<3x4x8x8xf32, #tpu.memory_space<vmem>>, vector<1x1x8x8xf32>
    %70 = vector.shape_cast %69 : vector<1x1x8x8xf32> to vector<8x8xf32>
    %71 = vector.shape_cast %68 : vector<8x8xf32> to vector<1x1x8x8xf32>
    tpu.vector_store %arg13[%c2_36, %c1_37, %c0_38, %c0_39], %71 {strides = array<i32>} : memref<3x4x8x8xf32, #tpu.memory_space<vmem>>, vector<1x1x8x8xf32>,
    %72 = vector.extract_strided_slice %47 {offsets = [0, 16], sizes = [8, 8], strides = [1, 1]} : vector<8x96xf32> to vector<8x8xf32>
    %c0_40 = arith.constant 0 : index
    %c2_41 = arith.constant 2 : index
    %c0_42 = arith.constant 0 : index
    %c0_43 = arith.constant 0 : index
    %73 = vector.load %arg13[%c0_40, %c2_41, %c0_42, %c0_43] : memref<3x4x8x8xf32, #tpu.memory_space<vmem>>, vector<1x1x8x8xf32>
    %74 = vector.shape_cast %73 : vector<1x1x8x8xf32> to vector<8x8xf32>
    %75 = vector.shape_cast %72 : vector<8x8xf32> to vector<1x1x8x8xf32>
    tpu.vector_store %arg13[%c0_40, %c2_41, %c0_42, %c0_43], %75 {strides = array<i32>} : memref<3x4x8x8xf32, #tpu.memory_space<vmem>>, vector<1x1x8x8xf32>,
    %76 = vector.extract_strided_slice %47 {offsets = [0, 48], sizes = [8, 8], strides = [1, 1]} : vector<8x96xf32> to vector<8x8xf32>
    %c1_44 = arith.constant 1 : index
    %c2_45 = arith.constant 2 : index
    %c0_46 = arith.constant 0 : index
    %c0_47 = arith.constant 0 : index
    %77 = vector.load %arg13[%c1_44, %c2_45, %c0_46, %c0_47] : memref<3x4x8x8xf32, #tpu.memory_space<vmem>>, vector<1x1x8x8xf32>
    %78 = vector.shape_cast %77 : vector<1x1x8x8xf32> to vector<8x8xf32>
    %79 = vector.shape_cast %76 : vector<8x8xf32> to vector<1x1x8x8xf32>
    tpu.vector_store %arg13[%c1_44, %c2_45, %c0_46, %c0_47], %79 {strides = array<i32>} : memref<3x4x8x8xf32, #tpu.memory_space<vmem>>, vector<1x1x8x8xf32>,
    %80 = vector.extract_strided_slice %47 {offsets = [0, 80], sizes = [8, 8], strides = [1, 1]} : vector<8x96xf32> to vector<8x8xf32>
    %c2_48 = arith.constant 2 : index
    %c2_49 = arith.constant 2 : index
    %c0_50 = arith.constant 0 : index
    %c0_51 = arith.constant 0 : index
    %81 = vector.load %arg13[%c2_48, %c2_49, %c0_50, %c0_51] : memref<3x4x8x8xf32, #tpu.memory_space<vmem>>, vector<1x1x8x8xf32>
    %82 = vector.shape_cast %81 : vector<1x1x8x8xf32> to vector<8x8xf32>
    %83 = vector.shape_cast %80 : vector<8x8xf32> to vector<1x1x8x8xf32>
    tpu.vector_store %arg13[%c2_48, %c2_49, %c0_50, %c0_51], %83 {strides = array<i32>} : memref<3x4x8x8xf32, #tpu.memory_space<vmem>>, vector<1x1x8x8xf32>,
    %84 = vector.extract_strided_slice %47 {offsets = [0, 24], sizes = [8, 8], strides = [1, 1]} : vector<8x96xf32> to vector<8x8xf32>
    %c0_52 = arith.constant 0 : index
    %c3 = arith.constant 3 : index
    %c0_53 = arith.constant 0 : index
    %c0_54 = arith.constant 0 : index
    %85 = vector.load %arg13[%c0_52, %c3, %c0_53, %c0_54] : memref<3x4x8x8xf32, #tpu.memory_space<vmem>>, vector<1x1x8x8xf32>
    %86 = vector.shape_cast %85 : vector<1x1x8x8xf32> to vector<8x8xf32>
    %87 = vector.shape_cast %84 : vector<8x8xf32> to vector<1x1x8x8xf32>
    tpu.vector_store %arg13[%c0_52, %c3, %c0_53, %c0_54], %87 {strides = array<i32>} : memref<3x4x8x8xf32, #tpu.memory_space<vmem>>, vector<1x1x8x8xf32>,
    %88 = vector.extract_strided_slice %47 {offsets = [0, 56], sizes = [8, 8], strides = [1, 1]} : vector<8x96xf32> to vector<8x8xf32>
    %c1_55 = arith.constant 1 : index
    %c3_56 = arith.constant 3 : index
    %c0_57 = arith.constant 0 : index
    %c0_58 = arith.constant 0 : index
    %89 = vector.load %arg13[%c1_55, %c3_56, %c0_57, %c0_58] : memref<3x4x8x8xf32, #tpu.memory_space<vmem>>, vector<1x1x8x8xf32>
    %90 = vector.shape_cast %89 : vector<1x1x8x8xf32> to vector<8x8xf32>
    %91 = vector.shape_cast %88 : vector<8x8xf32> to vector<1x1x8x8xf32>
    tpu.vector_store %arg13[%c1_55, %c3_56, %c0_57, %c0_58], %91 {strides = array<i32>} : memref<3x4x8x8xf32, #tpu.memory_space<vmem>>, vector<1x1x8x8xf32>,
    %92 = vector.extract_strided_slice %47 {offsets = [0, 88], sizes = [8, 8], strides = [1, 1]} : vector<8x96xf32> to vector<8x8xf32>
    %c2_59 = arith.constant 2 : index
    %c3_60 = arith.constant 3 : index
    %c0_61 = arith.constant 0 : index
    %c0_62 = arith.constant 0 : index
    %93 = vector.load %arg13[%c2_59, %c3_60, %c0_61, %c0_62] : memref<3x4x8x8xf32, #tpu.memory_space<vmem>>, vector<1x1x8x8xf32>
    %94 = vector.shape_cast %93 : vector<1x1x8x8xf32> to vector<8x8xf32>
    %95 = vector.shape_cast %92 : vector<8x8xf32> to vector<1x1x8x8xf32>
    tpu.vector_store %arg13[%c2_59, %c3_60, %c0_61, %c0_62], %95 {strides = array<i32>} : memref<3x4x8x8xf32, #tpu.memory_space<vmem>>, vector<1x1x8x8xf32>,
    %c0_63 = arith.constant 0 : index
    %c0_64 = arith.constant 0 : index
    %c0_65 = arith.constant 0 : index
    %c0_66 = arith.constant 0 : index
    %96 = vector.load %arg13[%c0_63, %c0_64, %c0_65, %c0_66] : memref<3x4x8x8xf32, #tpu.memory_space<vmem>>, vector<1x4x8x8xf32>
    %97 = vector.shape_cast %96 : vector<1x4x8x8xf32> to vector<4x8x8xf32>
    %98 = arith.truncf %97 : vector<4x8x8xf32> to vector<4x8x8xbf16>
    %c1_67 = arith.constant 1 : index
    %c0_68 = arith.constant 0 : index
    %c0_69 = arith.constant 0 : index
    %c0_70 = arith.constant 0 : index
    %99 = vector.load %arg13[%c1_67, %c0_68, %c0_69, %c0_70] : memref<3x4x8x8xf32, #tpu.memory_space<vmem>>, vector<1x4x8x8xf32>
    %100 = vector.shape_cast %99 : vector<1x4x8x8xf32> to vector<4x8x8xf32>
    %101 = arith.truncf %100 : vector<4x8x8xf32> to vector<4x8x8xbf16>
    %c2_71 = arith.constant 2 : index
    %c0_72 = arith.constant 0 : index
    %c0_73 = arith.constant 0 : index
    %c0_74 = arith.constant 0 : index
    %102 = vector.load %arg13[%c2_71, %c0_72, %c0_73, %c0_74] : memref<3x4x8x8xf32, #tpu.memory_space<vmem>>, vector<1x4x8x8xf32>
    %103 = vector.shape_cast %102 : vector<1x4x8x8xf32> to vector<4x8x8xf32>
    %104 = arith.truncf %103 : vector<4x8x8xf32> to vector<4x8x8xbf16>
    "tpu.trace_start"() <{level = 10 : i32, message = "hqd,hkd->hqk"}> : () -> ()
    %cst_75 = arith.constant dense<0.000000e+00> : vector<4x8x8xf32>
    %105 = tpu.matmul %98, %101, %cst_75 {dimension_numbers = #tpu.dot_dimension_numbers<[2], [2], [1], [1], [0, 0, 0, 1, 1, 1], [0], [0]>} : vector<4x8x8xbf16>, vector<4x8x8xbf16>, vector<4x8x8xf32> -> vector<4x8x8xf32>
    "tpu.trace_stop"() : () -> ()
    %106 = vector.broadcast %7 : vector<1x1x8xf32> to vector<4x8x8xf32>
    %107 = arith.addf %105, %106 : vector<4x8x8xf32>
    %cst_76 = arith.constant dense<0xFF800000> : vector<4x8xf32>
    %108 = vector.multi_reduction <maximumf>, %107, %cst_76 [2] : vector<4x8x8xf32> to vector<4x8xf32>
    %109 = vector.shape_cast %108 : vector<4x8xf32> to vector<4x8x1xf32>
    %110 = vector.broadcast %109 : vector<4x8x1xf32> to vector<4x8x8xf32>
    %111 = arith.subf %107, %110 : vector<4x8x8xf32>
    %112 = math.exp %111 : vector<4x8x8xf32>
    %cst_77 = arith.constant dense<0.000000e+00> : vector<4x8xf32>
    %113 = vector.multi_reduction <add>, %112, %cst_77 [2] : vector<4x8x8xf32> to vector<4x8xf32>
    %114 = vector.shape_cast %113 : vector<4x8xf32> to vector<4x8x1xf32>
    %115 = tpu.reciprocal %114 {approx = true} : vector<4x8x1xf32> -> vector<4x8x1xf32>
    %116 = vector.broadcast %115 : vector<4x8x1xf32> to vector<4x8x8xf32>
    %117 = arith.mulf %112, %116 : vector<4x8x8xf32>
    %118 = arith.truncf %117 : vector<4x8x8xf32> to vector<4x8x8xbf16>
    "tpu.trace_start"() <{level = 10 : i32, message = "hqk,hkd->hqd"}> : () -> ()
    %cst_78 = arith.constant dense<0.000000e+00> : vector<4x8x8xf32>
    %119 = tpu.matmul %118, %104, %cst_78 {dimension_numbers = #tpu.dot_dimension_numbers<[2], [1], [1], [2], [0, 0, 0, 1, 1, 2], [0], [0]>} : vector<4x8x8xbf16>, vector<4x8x8xbf16>, vector<4x8x8xf32> -> vector<4x8x8xf32>
    "tpu.trace_stop"() : () -> ()
    %120 = vector.extract_strided_slice %119 {offsets = [0, 0, 0], sizes = [1, 8, 8], strides = [1, 1, 1]} : vector<4x8x8xf32> to vector<1x8x8xf32>
    %121 = vector.shape_cast %120 : vector<1x8x8xf32> to vector<8x8xf32>
    %c0_79 = arith.constant 0 : index
    %c0_80 = arith.constant 0 : index
    %122 = vector.load %arg14[%c0_79, %c0_80] : memref<8x32xf32, #tpu.memory_space<vmem>>, vector<8x8xf32>
    tpu.vector_store %arg14[%c0_79, %c0_80], %121 {strides = array<i32>} : memref<8x32xf32, #tpu.memory_space<vmem>>, vector<8x8xf32>,
    %123 = vector.extract_strided_slice %119 {offsets = [1, 0, 0], sizes = [1, 8, 8], strides = [1, 1, 1]} : vector<4x8x8xf32> to vector<1x8x8xf32>
    %124 = vector.shape_cast %123 : vector<1x8x8xf32> to vector<8x8xf32>
    %c0_81 = arith.constant 0 : index
    %c8 = arith.constant 8 : index
    %125 = vector.load %arg14[%c0_81, %c8] : memref<8x32xf32, #tpu.memory_space<vmem>>, vector<8x8xf32>
    tpu.vector_store %arg14[%c0_81, %c8], %124 {strides = array<i32>} : memref<8x32xf32, #tpu.memory_space<vmem>>, vector<8x8xf32>,
    %126 = vector.extract_strided_slice %119 {offsets = [2, 0, 0], sizes = [1, 8, 8], strides = [1, 1, 1]} : vector<4x8x8xf32> to vector<1x8x8xf32>
    %127 = vector.shape_cast %126 : vector<1x8x8xf32> to vector<8x8xf32>
    %c0_82 = arith.constant 0 : index
    %c16 = arith.constant 16 : index
    %128 = vector.load %arg14[%c0_82, %c16] : memref<8x32xf32, #tpu.memory_space<vmem>>, vector<8x8xf32>
    tpu.vector_store %arg14[%c0_82, %c16], %127 {strides = array<i32>} : memref<8x32xf32, #tpu.memory_space<vmem>>, vector<8x8xf32>,
    %129 = vector.extract_strided_slice %119 {offsets = [3, 0, 0], sizes = [1, 8, 8], strides = [1, 1, 1]} : vector<4x8x8xf32> to vector<1x8x8xf32>
    %130 = vector.shape_cast %129 : vector<1x8x8xf32> to vector<8x8xf32>
    %c0_83 = arith.constant 0 : index
    %c24 = arith.constant 24 : index
    %131 = vector.load %arg14[%c0_83, %c24] : memref<8x32xf32, #tpu.memory_space<vmem>>, vector<8x8xf32>
    tpu.vector_store %arg14[%c0_83, %c24], %130 {strides = array<i32>} : memref<8x32xf32, #tpu.memory_space<vmem>>, vector<8x8xf32>,
    %c0_84 = arith.constant 0 : index
    %c0_85 = arith.constant 0 : index
    %132 = vector.load %arg14[%c0_84, %c0_85] : memref<8x32xf32, #tpu.memory_space<vmem>>, vector<8x32xf32>
    %133 = arith.truncf %132 : vector<8x32xf32> to vector<8x32xbf16>
    %c0_86 = arith.constant 0 : index
    %c0_87 = arith.constant 0 : index
    %c0_88 = arith.constant 0 : index
    %134 = vector.load %arg5[%c0_86, %c0_87, %c0_88] : memref<2x32x32xbf16, #tpu.memory_space<vmem>>, vector<1x32x32xbf16>
    %135 = vector.shape_cast %134 : vector<1x32x32xbf16> to vector<32x32xbf16>
    %cst_89 = arith.constant dense<0.000000e+00> : vector<8x32xf32>
    %136 = tpu.matmul %133, %135, %cst_89 {dimension_numbers = #tpu.dot_dimension_numbers<[1], [0], [0], [1], [0, 0, 1, 1], [], []>} : vector<8x32xbf16>, vector<32x32xbf16>, vector<8x32xf32> -> vector<8x32xf32>
    %137 = vector.broadcast %36 : vector<1x32xf32> to vector<8x32xf32>
    %138 = arith.addf %136, %137 : vector<8x32xf32>
    %139 = arith.addf %31, %138 : vector<8x32xf32>
    %cst_90 = arith.constant dense<0.000000e+00> : vector<8xf32>
    %140 = vector.multi_reduction <add>, %139, %cst_90 [1] : vector<8x32xf32> to vector<8xf32>
    %141 = vector.shape_cast %140 : vector<8xf32> to vector<8x1xf32>
    %cst_91 = arith.constant 3.200000e+01 : f32
    %142 = vector.broadcast %cst_91 : f32 to vector<8x1xf32>
    %143 = arith.divf %141, %142 : vector<8x1xf32>
    %144 = vector.broadcast %143 : vector<8x1xf32> to vector<8x32xf32>
    %145 = arith.subf %139, %144 : vector<8x32xf32>
    %146 = arith.mulf %145, %145 : vector<8x32xf32>
    %cst_92 = arith.constant dense<0.000000e+00> : vector<8xf32>
    %147 = vector.multi_reduction <add>, %146, %cst_92 [1] : vector<8x32xf32> to vector<8xf32>
    %148 = vector.shape_cast %147 : vector<8xf32> to vector<8x1xf32>
    %cst_93 = arith.constant 3.200000e+01 : f32
    %149 = vector.broadcast %cst_93 : f32 to vector<8x1xf32>
    %150 = arith.divf %148, %149 : vector<8x1xf32>
    %151 = vector.broadcast %143 : vector<8x1xf32> to vector<8x32xf32>
    %152 = arith.subf %139, %151 : vector<8x32xf32>
    %cst_94 = arith.constant 9.99999996E-13 : f32
    %153 = vector.broadcast %cst_94 : f32 to vector<8x1xf32>
    %154 = arith.addf %150, %153 : vector<8x1xf32>
    %155 = math.rsqrt %154 : vector<8x1xf32>
    %156 = vector.broadcast %155 : vector<8x1xf32> to vector<8x32xf32>
    %157 = arith.mulf %152, %156 : vector<8x32xf32>
    %158 = vector.broadcast %37 : vector<1x32xf32> to vector<8x32xf32>
    %159 = arith.mulf %157, %158 : vector<8x32xf32>
    %160 = vector.broadcast %38 : vector<1x32xf32> to vector<8x32xf32>
    %161 = arith.addf %159, %160 : vector<8x32xf32>
    %162 = arith.truncf %161 : vector<8x32xf32> to vector<8x32xbf16>
    %c0_95 = arith.constant 0 : index
    %c0_96 = arith.constant 0 : index
    %c0_97 = arith.constant 0 : index
    %163 = vector.load %arg6[%c0_95, %c0_96, %c0_97] : memref<2x32x64xbf16, #tpu.memory_space<vmem>>, vector<1x32x64xbf16>
    %164 = vector.shape_cast %163 : vector<1x32x64xbf16> to vector<32x64xbf16>
    %cst_98 = arith.constant dense<0.000000e+00> : vector<8x64xf32>
    %165 = tpu.matmul %162, %164, %cst_98 {dimension_numbers = #tpu.dot_dimension_numbers<[1], [0], [0], [1], [0, 0, 1, 1], [], []>} : vector<8x32xbf16>, vector<32x64xbf16>, vector<8x64xf32> -> vector<8x64xf32>
    %166 = vector.broadcast %35 : vector<1x64xf32> to vector<8x64xf32>
    %167 = arith.addf %165, %166 : vector<8x64xf32>
    %cst_99 = arith.constant 5.000000e-01 : f32
    %168 = vector.broadcast %cst_99 : f32 to vector<8x64xf32>
    %169 = arith.mulf %168, %167 : vector<8x64xf32>
    %cst_100 = arith.constant 4.471500e-02 : f32
    %170 = vector.broadcast %cst_100 : f32 to vector<8x64xf32>
    %171 = arith.mulf %170, %167 : vector<8x64xf32>
    %172 = arith.mulf %171, %167 : vector<8x64xf32>
    %173 = arith.mulf %172, %167 : vector<8x64xf32>
    %174 = arith.addf %167, %173 : vector<8x64xf32>
    %cst_101 = arith.constant 0.797884583 : f32
    %175 = vector.broadcast %cst_101 : f32 to vector<8x64xf32>
    %176 = arith.mulf %175, %174 : vector<8x64xf32>
    %177 = math.tanh %176 : vector<8x64xf32>
    %cst_102 = arith.constant 1.000000e+00 : f32
    %178 = vector.broadcast %cst_102 : f32 to vector<8x64xf32>
    %179 = arith.addf %178, %177 : vector<8x64xf32>
    %180 = arith.mulf %169, %179 : vector<8x64xf32>
    %181 = arith.truncf %180 : vector<8x64xf32> to vector<8x64xbf16>
    %c0_103 = arith.constant 0 : index
    %c0_104 = arith.constant 0 : index
    %c0_105 = arith.constant 0 : index
    %182 = vector.load %arg7[%c0_103, %c0_104, %c0_105] : memref<2x64x32xbf16, #tpu.memory_space<vmem>>, vector<1x64x32xbf16>
    %183 = vector.shape_cast %182 : vector<1x64x32xbf16> to vector<64x32xbf16>
    %cst_106 = arith.constant dense<0.000000e+00> : vector<8x32xf32>
    %184 = tpu.matmul %181, %183, %cst_106 {dimension_numbers = #tpu.dot_dimension_numbers<[1], [0], [0], [1], [0, 0, 1, 1], [], []>} : vector<8x64xbf16>, vector<64x32xbf16>, vector<8x32xf32> -> vector<8x32xf32>
    %185 = vector.broadcast %39 : vector<1x32xf32> to vector<8x32xf32>
    %186 = arith.addf %184, %185 : vector<8x32xf32>
    %187 = arith.addf %161, %186 : vector<8x32xf32>
    %cst_107 = arith.constant dense<0.000000e+00> : vector<8xf32>
    %188 = vector.multi_reduction <add>, %187, %cst_107 [1] : vector<8x32xf32> to vector<8xf32>
    %189 = vector.shape_cast %188 : vector<8xf32> to vector<8x1xf32>
    %cst_108 = arith.constant 3.200000e+01 : f32
    %190 = vector.broadcast %cst_108 : f32 to vector<8x1xf32>
    %191 = arith.divf %189, %190 : vector<8x1xf32>
    %192 = vector.broadcast %191 : vector<8x1xf32> to vector<8x32xf32>
    %193 = arith.subf %187, %192 : vector<8x32xf32>
    %194 = arith.mulf %193, %193 : vector<8x32xf32>
    %cst_109 = arith.constant dense<0.000000e+00> : vector<8xf32>
    %195 = vector.multi_reduction <add>, %194, %cst_109 [1] : vector<8x32xf32> to vector<8xf32>
    %196 = vector.shape_cast %195 : vector<8xf32> to vector<8x1xf32>
    %cst_110 = arith.constant 3.200000e+01 : f32
    %197 = vector.broadcast %cst_110 : f32 to vector<8x1xf32>
    %198 = arith.divf %196, %197 : vector<8x1xf32>
    %199 = vector.broadcast %191 : vector<8x1xf32> to vector<8x32xf32>
    %200 = arith.subf %187, %199 : vector<8x32xf32>
    %cst_111 = arith.constant 9.99999996E-13 : f32
    %201 = vector.broadcast %cst_111 : f32 to vector<8x1xf32>
    %202 = arith.addf %198, %201 : vector<8x1xf32>
    %203 = math.rsqrt %202 : vector<8x1xf32>
    %204 = vector.broadcast %203 : vector<8x1xf32> to vector<8x32xf32>
    %205 = arith.mulf %200, %204 : vector<8x32xf32>
    %206 = vector.broadcast %40 : vector<1x32xf32> to vector<8x32xf32>
    %207 = arith.mulf %205, %206 : vector<8x32xf32>
    %208 = vector.broadcast %41 : vector<1x32xf32> to vector<8x32xf32>
    %209 = arith.addf %207, %208 : vector<8x32xf32>
    %c1_112 = arith.constant 1 : index
    %c0_113 = arith.constant 0 : index
    %c0_114 = arith.constant 0 : index
    %210 = vector.load %arg8[%c1_112, %c0_113, %c0_114] : memref<2x8x128xf32, #tpu.memory_space<vmem>>, vector<1x8x128xf32>
    %211 = vector.shape_cast %210 : vector<1x8x128xf32> to vector<8x128xf32>
    %212 = vector.extract_strided_slice %211 {offsets = [0, 0], sizes = [1, 96], strides = [1, 1]} : vector<8x128xf32> to vector<1x96xf32>
    %213 = vector.extract_strided_slice %211 {offsets = [1, 0], sizes = [1, 64], strides = [1, 1]} : vector<8x128xf32> to vector<1x64xf32>
    %214 = vector.extract_strided_slice %211 {offsets = [2, 0], sizes = [1, 32], strides = [1, 1]} : vector<8x128xf32> to vector<1x32xf32>
    %215 = vector.extract_strided_slice %211 {offsets = [3, 0], sizes = [1, 32], strides = [1, 1]} : vector<8x128xf32> to vector<1x32xf32>
    %216 = vector.extract_strided_slice %211 {offsets = [4, 0], sizes = [1, 32], strides = [1, 1]} : vector<8x128xf32> to vector<1x32xf32>
    %217 = vector.extract_strided_slice %211 {offsets = [5, 0], sizes = [1, 32], strides = [1, 1]} : vector<8x128xf32> to vector<1x32xf32>
    %218 = vector.extract_strided_slice %211 {offsets = [6, 0], sizes = [1, 32], strides = [1, 1]} : vector<8x128xf32> to vector<1x32xf32>
    %219 = vector.extract_strided_slice %211 {offsets = [7, 0], sizes = [1, 32], strides = [1, 1]} : vector<8x128xf32> to vector<1x32xf32>
    %220 = arith.truncf %209 : vector<8x32xf32> to vector<8x32xbf16>
    %c1_115 = arith.constant 1 : index
    %c0_116 = arith.constant 0 : index
    %c0_117 = arith.constant 0 : index
    %221 = vector.load %arg4[%c1_115, %c0_116, %c0_117] : memref<2x32x96xbf16, #tpu.memory_space<vmem>>, vector<1x32x96xbf16>
    %222 = vector.shape_cast %221 : vector<1x32x96xbf16> to vector<32x96xbf16>
    %cst_118 = arith.constant dense<0.000000e+00> : vector<8x96xf32>
    %223 = tpu.matmul %220, %222, %cst_118 {dimension_numbers = #tpu.dot_dimension_numbers<[1], [0], [0], [1], [0, 0, 1, 1], [], []>} : vector<8x32xbf16>, vector<32x96xbf16>, vector<8x96xf32> -> vector<8x96xf32>
    %224 = vector.broadcast %212 : vector<1x96xf32> to vector<8x96xf32>
    %225 = arith.addf %223, %224 : vector<8x96xf32>
    %226 = vector.extract_strided_slice %225 {offsets = [0, 0], sizes = [8, 8], strides = [1, 1]} : vector<8x96xf32> to vector<8x8xf32>
    %c0_119 = arith.constant 0 : index
    %c0_120 = arith.constant 0 : index
    %c0_121 = arith.constant 0 : index
    %c0_122 = arith.constant 0 : index
    %227 = vector.load %arg13[%c0_119, %c0_120, %c0_121, %c0_122] : memref<3x4x8x8xf32, #tpu.memory_space<vmem>>, vector<1x1x8x8xf32>
    %228 = vector.shape_cast %227 : vector<1x1x8x8xf32> to vector<8x8xf32>
    %229 = vector.shape_cast %226 : vector<8x8xf32> to vector<1x1x8x8xf32>
    tpu.vector_store %arg13[%c0_119, %c0_120, %c0_121, %c0_122], %229 {strides = array<i32>} : memref<3x4x8x8xf32, #tpu.memory_space<vmem>>, vector<1x1x8x8xf32>,
    %230 = vector.extract_strided_slice %225 {offsets = [0, 32], sizes = [8, 8], strides = [1, 1]} : vector<8x96xf32> to vector<8x8xf32>
    %c1_123 = arith.constant 1 : index
    %c0_124 = arith.constant 0 : index
    %c0_125 = arith.constant 0 : index
    %c0_126 = arith.constant 0 : index
    %231 = vector.load %arg13[%c1_123, %c0_124, %c0_125, %c0_126] : memref<3x4x8x8xf32, #tpu.memory_space<vmem>>, vector<1x1x8x8xf32>
    %232 = vector.shape_cast %231 : vector<1x1x8x8xf32> to vector<8x8xf32>
    %233 = vector.shape_cast %230 : vector<8x8xf32> to vector<1x1x8x8xf32>
    tpu.vector_store %arg13[%c1_123, %c0_124, %c0_125, %c0_126], %233 {strides = array<i32>} : memref<3x4x8x8xf32, #tpu.memory_space<vmem>>, vector<1x1x8x8xf32>,
    %234 = vector.extract_strided_slice %225 {offsets = [0, 64], sizes = [8, 8], strides = [1, 1]} : vector<8x96xf32> to vector<8x8xf32>
    %c2_127 = arith.constant 2 : index
    %c0_128 = arith.constant 0 : index
    %c0_129 = arith.constant 0 : index
    %c0_130 = arith.constant 0 : index
    %235 = vector.load %arg13[%c2_127, %c0_128, %c0_129, %c0_130] : memref<3x4x8x8xf32, #tpu.memory_space<vmem>>, vector<1x1x8x8xf32>
    %236 = vector.shape_cast %235 : vector<1x1x8x8xf32> to vector<8x8xf32>
    %237 = vector.shape_cast %234 : vector<8x8xf32> to vector<1x1x8x8xf32>
    tpu.vector_store %arg13[%c2_127, %c0_128, %c0_129, %c0_130], %237 {strides = array<i32>} : memref<3x4x8x8xf32, #tpu.memory_space<vmem>>, vector<1x1x8x8xf32>,
    %238 = vector.extract_strided_slice %225 {offsets = [0, 8], sizes = [8, 8], strides = [1, 1]} : vector<8x96xf32> to vector<8x8xf32>
    %c0_131 = arith.constant 0 : index
    %c1_132 = arith.constant 1 : index
    %c0_133 = arith.constant 0 : index
    %c0_134 = arith.constant 0 : index
    %239 = vector.load %arg13[%c0_131, %c1_132, %c0_133, %c0_134] : memref<3x4x8x8xf32, #tpu.memory_space<vmem>>, vector<1x1x8x8xf32>
    %240 = vector.shape_cast %239 : vector<1x1x8x8xf32> to vector<8x8xf32>
    %241 = vector.shape_cast %238 : vector<8x8xf32> to vector<1x1x8x8xf32>
    tpu.vector_store %arg13[%c0_131, %c1_132, %c0_133, %c0_134], %241 {strides = array<i32>} : memref<3x4x8x8xf32, #tpu.memory_space<vmem>>, vector<1x1x8x8xf32>,
    %242 = vector.extract_strided_slice %225 {offsets = [0, 40], sizes = [8, 8], strides = [1, 1]} : vector<8x96xf32> to vector<8x8xf32>
    %c1_135 = arith.constant 1 : index
    %c1_136 = arith.constant 1 : index
    %c0_137 = arith.constant 0 : index
    %c0_138 = arith.constant 0 : index
    %243 = vector.load %arg13[%c1_135, %c1_136, %c0_137, %c0_138] : memref<3x4x8x8xf32, #tpu.memory_space<vmem>>, vector<1x1x8x8xf32>
    %244 = vector.shape_cast %243 : vector<1x1x8x8xf32> to vector<8x8xf32>
    %245 = vector.shape_cast %242 : vector<8x8xf32> to vector<1x1x8x8xf32>
    tpu.vector_store %arg13[%c1_135, %c1_136, %c0_137, %c0_138], %245 {strides = array<i32>} : memref<3x4x8x8xf32, #tpu.memory_space<vmem>>, vector<1x1x8x8xf32>,
    %246 = vector.extract_strided_slice %225 {offsets = [0, 72], sizes = [8, 8], strides = [1, 1]} : vector<8x96xf32> to vector<8x8xf32>
    %c2_139 = arith.constant 2 : index
    %c1_140 = arith.constant 1 : index
    %c0_141 = arith.constant 0 : index
    %c0_142 = arith.constant 0 : index
    %247 = vector.load %arg13[%c2_139, %c1_140, %c0_141, %c0_142] : memref<3x4x8x8xf32, #tpu.memory_space<vmem>>, vector<1x1x8x8xf32>
    %248 = vector.shape_cast %247 : vector<1x1x8x8xf32> to vector<8x8xf32>
    %249 = vector.shape_cast %246 : vector<8x8xf32> to vector<1x1x8x8xf32>
    tpu.vector_store %arg13[%c2_139, %c1_140, %c0_141, %c0_142], %249 {strides = array<i32>} : memref<3x4x8x8xf32, #tpu.memory_space<vmem>>, vector<1x1x8x8xf32>,
    %250 = vector.extract_strided_slice %225 {offsets = [0, 16], sizes = [8, 8], strides = [1, 1]} : vector<8x96xf32> to vector<8x8xf32>
    %c0_143 = arith.constant 0 : index
    %c2_144 = arith.constant 2 : index
    %c0_145 = arith.constant 0 : index
    %c0_146 = arith.constant 0 : index
    %251 = vector.load %arg13[%c0_143, %c2_144, %c0_145, %c0_146] : memref<3x4x8x8xf32, #tpu.memory_space<vmem>>, vector<1x1x8x8xf32>
    %252 = vector.shape_cast %251 : vector<1x1x8x8xf32> to vector<8x8xf32>
    %253 = vector.shape_cast %250 : vector<8x8xf32> to vector<1x1x8x8xf32>
    tpu.vector_store %arg13[%c0_143, %c2_144, %c0_145, %c0_146], %253 {strides = array<i32>} : memref<3x4x8x8xf32, #tpu.memory_space<vmem>>, vector<1x1x8x8xf32>,
    %254 = vector.extract_strided_slice %225 {offsets = [0, 48], sizes = [8, 8], strides = [1, 1]} : vector<8x96xf32> to vector<8x8xf32>
    %c1_147 = arith.constant 1 : index
    %c2_148 = arith.constant 2 : index
    %c0_149 = arith.constant 0 : index
    %c0_150 = arith.constant 0 : index
    %255 = vector.load %arg13[%c1_147, %c2_148, %c0_149, %c0_150] : memref<3x4x8x8xf32, #tpu.memory_space<vmem>>, vector<1x1x8x8xf32>
    %256 = vector.shape_cast %255 : vector<1x1x8x8xf32> to vector<8x8xf32>
    %257 = vector.shape_cast %254 : vector<8x8xf32> to vector<1x1x8x8xf32>
    tpu.vector_store %arg13[%c1_147, %c2_148, %c0_149, %c0_150], %257 {strides = array<i32>} : memref<3x4x8x8xf32, #tpu.memory_space<vmem>>, vector<1x1x8x8xf32>,
    %258 = vector.extract_strided_slice %225 {offsets = [0, 80], sizes = [8, 8], strides = [1, 1]} : vector<8x96xf32> to vector<8x8xf32>
    %c2_151 = arith.constant 2 : index
    %c2_152 = arith.constant 2 : index
    %c0_153 = arith.constant 0 : index
    %c0_154 = arith.constant 0 : index
    %259 = vector.load %arg13[%c2_151, %c2_152, %c0_153, %c0_154] : memref<3x4x8x8xf32, #tpu.memory_space<vmem>>, vector<1x1x8x8xf32>
    %260 = vector.shape_cast %259 : vector<1x1x8x8xf32> to vector<8x8xf32>
    %261 = vector.shape_cast %258 : vector<8x8xf32> to vector<1x1x8x8xf32>
    tpu.vector_store %arg13[%c2_151, %c2_152, %c0_153, %c0_154], %261 {strides = array<i32>} : memref<3x4x8x8xf32, #tpu.memory_space<vmem>>, vector<1x1x8x8xf32>,
    %262 = vector.extract_strided_slice %225 {offsets = [0, 24], sizes = [8, 8], strides = [1, 1]} : vector<8x96xf32> to vector<8x8xf32>
    %c0_155 = arith.constant 0 : index
    %c3_156 = arith.constant 3 : index
    %c0_157 = arith.constant 0 : index
    %c0_158 = arith.constant 0 : index
    %263 = vector.load %arg13[%c0_155, %c3_156, %c0_157, %c0_158] : memref<3x4x8x8xf32, #tpu.memory_space<vmem>>, vector<1x1x8x8xf32>
    %264 = vector.shape_cast %263 : vector<1x1x8x8xf32> to vector<8x8xf32>
    %265 = vector.shape_cast %262 : vector<8x8xf32> to vector<1x1x8x8xf32>
    tpu.vector_store %arg13[%c0_155, %c3_156, %c0_157, %c0_158], %265 {strides = array<i32>} : memref<3x4x8x8xf32, #tpu.memory_space<vmem>>, vector<1x1x8x8xf32>,
    %266 = vector.extract_strided_slice %225 {offsets = [0, 56], sizes = [8, 8], strides = [1, 1]} : vector<8x96xf32> to vector<8x8xf32>
    %c1_159 = arith.constant 1 : index
    %c3_160 = arith.constant 3 : index
    %c0_161 = arith.constant 0 : index
    %c0_162 = arith.constant 0 : index
    %267 = vector.load %arg13[%c1_159, %c3_160, %c0_161, %c0_162] : memref<3x4x8x8xf32, #tpu.memory_space<vmem>>, vector<1x1x8x8xf32>
    %268 = vector.shape_cast %267 : vector<1x1x8x8xf32> to vector<8x8xf32>
    %269 = vector.shape_cast %266 : vector<8x8xf32> to vector<1x1x8x8xf32>
    tpu.vector_store %arg13[%c1_159, %c3_160, %c0_161, %c0_162], %269 {strides = array<i32>} : memref<3x4x8x8xf32, #tpu.memory_space<vmem>>, vector<1x1x8x8xf32>,
    %270 = vector.extract_strided_slice %225 {offsets = [0, 88], sizes = [8, 8], strides = [1, 1]} : vector<8x96xf32> to vector<8x8xf32>
    %c2_163 = arith.constant 2 : index
    %c3_164 = arith.constant 3 : index
    %c0_165 = arith.constant 0 : index
    %c0_166 = arith.constant 0 : index
    %271 = vector.load %arg13[%c2_163, %c3_164, %c0_165, %c0_166] : memref<3x4x8x8xf32, #tpu.memory_space<vmem>>, vector<1x1x8x8xf32>
    %272 = vector.shape_cast %271 : vector<1x1x8x8xf32> to vector<8x8xf32>
    %273 = vector.shape_cast %270 : vector<8x8xf32> to vector<1x1x8x8xf32>
    tpu.vector_store %arg13[%c2_163, %c3_164, %c0_165, %c0_166], %273 {strides = array<i32>} : memref<3x4x8x8xf32, #tpu.memory_space<vmem>>, vector<1x1x8x8xf32>,
    %c0_167 = arith.constant 0 : index
    %c0_168 = arith.constant 0 : index
    %c0_169 = arith.constant 0 : index
    %c0_170 = arith.constant 0 : index
    %274 = vector.load %arg13[%c0_167, %c0_168, %c0_169, %c0_170] : memref<3x4x8x8xf32, #tpu.memory_space<vmem>>, vector<1x4x8x8xf32>
    %275 = vector.shape_cast %274 : vector<1x4x8x8xf32> to vector<4x8x8xf32>
    %276 = arith.truncf %275 : vector<4x8x8xf32> to vector<4x8x8xbf16>
    %c1_171 = arith.constant 1 : index
    %c0_172 = arith.constant 0 : index
    %c0_173 = arith.constant 0 : index
    %c0_174 = arith.constant 0 : index
    %277 = vector.load %arg13[%c1_171, %c0_172, %c0_173, %c0_174] : memref<3x4x8x8xf32, #tpu.memory_space<vmem>>, vector<1x4x8x8xf32>
    %278 = vector.shape_cast %277 : vector<1x4x8x8xf32> to vector<4x8x8xf32>
    %279 = arith.truncf %278 : vector<4x8x8xf32> to vector<4x8x8xbf16>
    %c2_175 = arith.constant 2 : index
    %c0_176 = arith.constant 0 : index
    %c0_177 = arith.constant 0 : index
    %c0_178 = arith.constant 0 : index
    %280 = vector.load %arg13[%c2_175, %c0_176, %c0_177, %c0_178] : memref<3x4x8x8xf32, #tpu.memory_space<vmem>>, vector<1x4x8x8xf32>
    %281 = vector.shape_cast %280 : vector<1x4x8x8xf32> to vector<4x8x8xf32>
    %282 = arith.truncf %281 : vector<4x8x8xf32> to vector<4x8x8xbf16>
    "tpu.trace_start"() <{level = 10 : i32, message = "hqd,hkd->hqk"}> : () -> ()
    %cst_179 = arith.constant dense<0.000000e+00> : vector<4x8x8xf32>
    %283 = tpu.matmul %276, %279, %cst_179 {dimension_numbers = #tpu.dot_dimension_numbers<[2], [2], [1], [1], [0, 0, 0, 1, 1, 1], [0], [0]>} : vector<4x8x8xbf16>, vector<4x8x8xbf16>, vector<4x8x8xf32> -> vector<4x8x8xf32>
    "tpu.trace_stop"() : () -> ()
    %284 = vector.broadcast %7 : vector<1x1x8xf32> to vector<4x8x8xf32>
    %285 = arith.addf %283, %284 : vector<4x8x8xf32>
    %cst_180 = arith.constant dense<0xFF800000> : vector<4x8xf32>
    %286 = vector.multi_reduction <maximumf>, %285, %cst_180 [2] : vector<4x8x8xf32> to vector<4x8xf32>
    %287 = vector.shape_cast %286 : vector<4x8xf32> to vector<4x8x1xf32>
    %288 = vector.broadcast %287 : vector<4x8x1xf32> to vector<4x8x8xf32>
    %289 = arith.subf %285, %288 : vector<4x8x8xf32>
    %290 = math.exp %289 : vector<4x8x8xf32>
    %cst_181 = arith.constant dense<0.000000e+00> : vector<4x8xf32>
    %291 = vector.multi_reduction <add>, %290, %cst_181 [2] : vector<4x8x8xf32> to vector<4x8xf32>
    %292 = vector.shape_cast %291 : vector<4x8xf32> to vector<4x8x1xf32>
    %293 = tpu.reciprocal %292 {approx = true} : vector<4x8x1xf32> -> vector<4x8x1xf32>
    %294 = vector.broadcast %293 : vector<4x8x1xf32> to vector<4x8x8xf32>
    %295 = arith.mulf %290, %294 : vector<4x8x8xf32>
    %296 = arith.truncf %295 : vector<4x8x8xf32> to vector<4x8x8xbf16>
    "tpu.trace_start"() <{level = 10 : i32, message = "hqk,hkd->hqd"}> : () -> ()
    %cst_182 = arith.constant dense<0.000000e+00> : vector<4x8x8xf32>
    %297 = tpu.matmul %296, %282, %cst_182 {dimension_numbers = #tpu.dot_dimension_numbers<[2], [1], [1], [2], [0, 0, 0, 1, 1, 2], [0], [0]>} : vector<4x8x8xbf16>, vector<4x8x8xbf16>, vector<4x8x8xf32> -> vector<4x8x8xf32>
    "tpu.trace_stop"() : () -> ()
    %298 = vector.extract_strided_slice %297 {offsets = [0, 0, 0], sizes = [1, 8, 8], strides = [1, 1, 1]} : vector<4x8x8xf32> to vector<1x8x8xf32>
    %299 = vector.shape_cast %298 : vector<1x8x8xf32> to vector<8x8xf32>
    %c0_183 = arith.constant 0 : index
    %c0_184 = arith.constant 0 : index
    %300 = vector.load %arg14[%c0_183, %c0_184] : memref<8x32xf32, #tpu.memory_space<vmem>>, vector<8x8xf32>
    tpu.vector_store %arg14[%c0_183, %c0_184], %299 {strides = array<i32>} : memref<8x32xf32, #tpu.memory_space<vmem>>, vector<8x8xf32>,
    %301 = vector.extract_strided_slice %297 {offsets = [1, 0, 0], sizes = [1, 8, 8], strides = [1, 1, 1]} : vector<4x8x8xf32> to vector<1x8x8xf32>
    %302 = vector.shape_cast %301 : vector<1x8x8xf32> to vector<8x8xf32>
    %c0_185 = arith.constant 0 : index
    %c8_186 = arith.constant 8 : index
    %303 = vector.load %arg14[%c0_185, %c8_186] : memref<8x32xf32, #tpu.memory_space<vmem>>, vector<8x8xf32>
    tpu.vector_store %arg14[%c0_185, %c8_186], %302 {strides = array<i32>} : memref<8x32xf32, #tpu.memory_space<vmem>>, vector<8x8xf32>,
    %304 = vector.extract_strided_slice %297 {offsets = [2, 0, 0], sizes = [1, 8, 8], strides = [1, 1, 1]} : vector<4x8x8xf32> to vector<1x8x8xf32>
    %305 = vector.shape_cast %304 : vector<1x8x8xf32> to vector<8x8xf32>
    %c0_187 = arith.constant 0 : index
    %c16_188 = arith.constant 16 : index
    %306 = vector.load %arg14[%c0_187, %c16_188] : memref<8x32xf32, #tpu.memory_space<vmem>>, vector<8x8xf32>
    tpu.vector_store %arg14[%c0_187, %c16_188], %305 {strides = array<i32>} : memref<8x32xf32, #tpu.memory_space<vmem>>, vector<8x8xf32>,
    %307 = vector.extract_strided_slice %297 {offsets = [3, 0, 0], sizes = [1, 8, 8], strides = [1, 1, 1]} : vector<4x8x8xf32> to vector<1x8x8xf32>
    %308 = vector.shape_cast %307 : vector<1x8x8xf32> to vector<8x8xf32>
    %c0_189 = arith.constant 0 : index
    %c24_190 = arith.constant 24 : index
    %309 = vector.load %arg14[%c0_189, %c24_190] : memref<8x32xf32, #tpu.memory_space<vmem>>, vector<8x8xf32>
    tpu.vector_store %arg14[%c0_189, %c24_190], %308 {strides = array<i32>} : memref<8x32xf32, #tpu.memory_space<vmem>>, vector<8x8xf32>,
    %c0_191 = arith.constant 0 : index
    %c0_192 = arith.constant 0 : index
    %310 = vector.load %arg14[%c0_191, %c0_192] : memref<8x32xf32, #tpu.memory_space<vmem>>, vector<8x32xf32>
    %311 = arith.truncf %310 : vector<8x32xf32> to vector<8x32xbf16>
    %c1_193 = arith.constant 1 : index
    %c0_194 = arith.constant 0 : index
    %c0_195 = arith.constant 0 : index
    %312 = vector.load %arg5[%c1_193, %c0_194, %c0_195] : memref<2x32x32xbf16, #tpu.memory_space<vmem>>, vector<1x32x32xbf16>
    %313 = vector.shape_cast %312 : vector<1x32x32xbf16> to vector<32x32xbf16>
    %cst_196 = arith.constant dense<0.000000e+00> : vector<8x32xf32>
    %314 = tpu.matmul %311, %313, %cst_196 {dimension_numbers = #tpu.dot_dimension_numbers<[1], [0], [0], [1], [0, 0, 1, 1], [], []>} : vector<8x32xbf16>, vector<32x32xbf16>, vector<8x32xf32> -> vector<8x32xf32>
    %315 = vector.broadcast %214 : vector<1x32xf32> to vector<8x32xf32>
    %316 = arith.addf %314, %315 : vector<8x32xf32>
    %317 = arith.addf %209, %316 : vector<8x32xf32>
    %cst_197 = arith.constant dense<0.000000e+00> : vector<8xf32>
    %318 = vector.multi_reduction <add>, %317, %cst_197 [1] : vector<8x32xf32> to vector<8xf32>
    %319 = vector.shape_cast %318 : vector<8xf32> to vector<8x1xf32>
    %cst_198 = arith.constant 3.200000e+01 : f32
    %320 = vector.broadcast %cst_198 : f32 to vector<8x1xf32>
    %321 = arith.divf %319, %320 : vector<8x1xf32>
    %322 = vector.broadcast %321 : vector<8x1xf32> to vector<8x32xf32>
    %323 = arith.subf %317, %322 : vector<8x32xf32>
    %324 = arith.mulf %323, %323 : vector<8x32xf32>
    %cst_199 = arith.constant dense<0.000000e+00> : vector<8xf32>
    %325 = vector.multi_reduction <add>, %324, %cst_199 [1] : vector<8x32xf32> to vector<8xf32>
    %326 = vector.shape_cast %325 : vector<8xf32> to vector<8x1xf32>
    %cst_200 = arith.constant 3.200000e+01 : f32
    %327 = vector.broadcast %cst_200 : f32 to vector<8x1xf32>
    %328 = arith.divf %326, %327 : vector<8x1xf32>
    %329 = vector.broadcast %321 : vector<8x1xf32> to vector<8x32xf32>
    %330 = arith.subf %317, %329 : vector<8x32xf32>
    %cst_201 = arith.constant 9.99999996E-13 : f32
    %331 = vector.broadcast %cst_201 : f32 to vector<8x1xf32>
    %332 = arith.addf %328, %331 : vector<8x1xf32>
    %333 = math.rsqrt %332 : vector<8x1xf32>
    %334 = vector.broadcast %333 : vector<8x1xf32> to vector<8x32xf32>
    %335 = arith.mulf %330, %334 : vector<8x32xf32>
    %336 = vector.broadcast %215 : vector<1x32xf32> to vector<8x32xf32>
    %337 = arith.mulf %335, %336 : vector<8x32xf32>
    %338 = vector.broadcast %216 : vector<1x32xf32> to vector<8x32xf32>
    %339 = arith.addf %337, %338 : vector<8x32xf32>
    %340 = arith.truncf %339 : vector<8x32xf32> to vector<8x32xbf16>
    %c1_202 = arith.constant 1 : index
    %c0_203 = arith.constant 0 : index
    %c0_204 = arith.constant 0 : index
    %341 = vector.load %arg6[%c1_202, %c0_203, %c0_204] : memref<2x32x64xbf16, #tpu.memory_space<vmem>>, vector<1x32x64xbf16>
    %342 = vector.shape_cast %341 : vector<1x32x64xbf16> to vector<32x64xbf16>
    %cst_205 = arith.constant dense<0.000000e+00> : vector<8x64xf32>
    %343 = tpu.matmul %340, %342, %cst_205 {dimension_numbers = #tpu.dot_dimension_numbers<[1], [0], [0], [1], [0, 0, 1, 1], [], []>} : vector<8x32xbf16>, vector<32x64xbf16>, vector<8x64xf32> -> vector<8x64xf32>
    %344 = vector.broadcast %213 : vector<1x64xf32> to vector<8x64xf32>
    %345 = arith.addf %343, %344 : vector<8x64xf32>
    %cst_206 = arith.constant 5.000000e-01 : f32
    %346 = vector.broadcast %cst_206 : f32 to vector<8x64xf32>
    %347 = arith.mulf %346, %345 : vector<8x64xf32>
    %cst_207 = arith.constant 4.471500e-02 : f32
    %348 = vector.broadcast %cst_207 : f32 to vector<8x64xf32>
    %349 = arith.mulf %348, %345 : vector<8x64xf32>
    %350 = arith.mulf %349, %345 : vector<8x64xf32>
    %351 = arith.mulf %350, %345 : vector<8x64xf32>
    %352 = arith.addf %345, %351 : vector<8x64xf32>
    %cst_208 = arith.constant 0.797884583 : f32
    %353 = vector.broadcast %cst_208 : f32 to vector<8x64xf32>
    %354 = arith.mulf %353, %352 : vector<8x64xf32>
    %355 = math.tanh %354 : vector<8x64xf32>
    %cst_209 = arith.constant 1.000000e+00 : f32
    %356 = vector.broadcast %cst_209 : f32 to vector<8x64xf32>
    %357 = arith.addf %356, %355 : vector<8x64xf32>
    %358 = arith.mulf %347, %357 : vector<8x64xf32>
    %359 = arith.truncf %358 : vector<8x64xf32> to vector<8x64xbf16>
    %c1_210 = arith.constant 1 : index
    %c0_211 = arith.constant 0 : index
    %c0_212 = arith.constant 0 : index
    %360 = vector.load %arg7[%c1_210, %c0_211, %c0_212] : memref<2x64x32xbf16, #tpu.memory_space<vmem>>, vector<1x64x32xbf16>
    %361 = vector.shape_cast %360 : vector<1x64x32xbf16> to vector<64x32xbf16>
    %cst_213 = arith.constant dense<0.000000e+00> : vector<8x32xf32>
    %362 = tpu.matmul %359, %361, %cst_213 {dimension_numbers = #tpu.dot_dimension_numbers<[1], [0], [0], [1], [0, 0, 1, 1], [], []>} : vector<8x64xbf16>, vector<64x32xbf16>, vector<8x32xf32> -> vector<8x32xf32>
    %363 = vector.broadcast %217 : vector<1x32xf32> to vector<8x32xf32>
    %364 = arith.addf %362, %363 : vector<8x32xf32>
    %365 = arith.addf %339, %364 : vector<8x32xf32>
    %cst_214 = arith.constant dense<0.000000e+00> : vector<8xf32>
    %366 = vector.multi_reduction <add>, %365, %cst_214 [1] : vector<8x32xf32> to vector<8xf32>
    %367 = vector.shape_cast %366 : vector<8xf32> to vector<8x1xf32>
    %cst_215 = arith.constant 3.200000e+01 : f32
    %368 = vector.broadcast %cst_215 : f32 to vector<8x1xf32>
    %369 = arith.divf %367, %368 : vector<8x1xf32>
    %370 = vector.broadcast %369 : vector<8x1xf32> to vector<8x32xf32>
    %371 = arith.subf %365, %370 : vector<8x32xf32>
    %372 = arith.mulf %371, %371 : vector<8x32xf32>
    %cst_216 = arith.constant dense<0.000000e+00> : vector<8xf32>
    %373 = vector.multi_reduction <add>, %372, %cst_216 [1] : vector<8x32xf32> to vector<8xf32>
    %374 = vector.shape_cast %373 : vector<8xf32> to vector<8x1xf32>
    %cst_217 = arith.constant 3.200000e+01 : f32
    %375 = vector.broadcast %cst_217 : f32 to vector<8x1xf32>
    %376 = arith.divf %374, %375 : vector<8x1xf32>
    %377 = vector.broadcast %369 : vector<8x1xf32> to vector<8x32xf32>
    %378 = arith.subf %365, %377 : vector<8x32xf32>
    %cst_218 = arith.constant 9.99999996E-13 : f32
    %379 = vector.broadcast %cst_218 : f32 to vector<8x1xf32>
    %380 = arith.addf %376, %379 : vector<8x1xf32>
    %381 = math.rsqrt %380 : vector<8x1xf32>
    %382 = vector.broadcast %381 : vector<8x1xf32> to vector<8x32xf32>
    %383 = arith.mulf %378, %382 : vector<8x32xf32>
    %384 = vector.broadcast %218 : vector<1x32xf32> to vector<8x32xf32>
    %385 = arith.mulf %383, %384 : vector<8x32xf32>
    %386 = vector.broadcast %219 : vector<1x32xf32> to vector<8x32xf32>
    %387 = arith.addf %385, %386 : vector<8x32xf32>
    %388 = vector.extract_strided_slice %387 {offsets = [0, 0], sizes = [1, 32], strides = [1, 1]} : vector<8x32xf32> to vector<1x32xf32>
    %c0_219 = arith.constant 0 : index
    %c0_220 = arith.constant 0 : index
    %389 = vector.load %arg10[%c0_219, %c0_220] : memref<32x32xf32, #tpu.memory_space<vmem>>, vector<32x32xf32>
    %cst_221 = arith.constant dense<0.000000e+00> : vector<1x32xf32>
    %390 = tpu.matmul %388, %389, %cst_221 {dimension_numbers = #tpu.dot_dimension_numbers<[1], [0], [0], [1], [0, 0, 1, 1], [], []>} : vector<1x32xf32>, vector<32x32xf32>, vector<1x32xf32> -> vector<1x32xf32>
    %391 = arith.addf %390, %3 : vector<1x32xf32>
    %392 = math.tanh %391 : vector<1x32xf32>
    %c0_222 = arith.constant 0 : index
    %c0_223 = arith.constant 0 : index
    %393 = vector.load %arg11[%c0_222, %c0_223] : memref<32x128xf32, #tpu.memory_space<vmem>>, vector<32x128xf32>
    %cst_224 = arith.constant dense<0.000000e+00> : vector<1x128xf32>
    %394 = tpu.matmul %392, %393, %cst_224 {dimension_numbers = #tpu.dot_dimension_numbers<[1], [0], [0], [1], [0, 0, 1, 1], [], []>} : vector<1x32xf32>, vector<32x128xf32>, vector<1x128xf32> -> vector<1x128xf32>
    %395 = arith.addf %394, %4 : vector<1x128xf32>
    %cst_225 = arith.constant dense<0xFF800000> : vector<1xf32>
    %396 = vector.multi_reduction <maximumf>, %395, %cst_225 [1] : vector<1x128xf32> to vector<1xf32>
    %397 = vector.shape_cast %396 : vector<1xf32> to vector<1x1xf32>
    %398 = vector.broadcast %397 : vector<1x1xf32> to vector<1x128xf32>
    %399 = arith.subf %395, %398 : vector<1x128xf32>
    %400 = math.exp %399 : vector<1x128xf32>
    %cst_226 = arith.constant dense<0.000000e+00> : vector<1xf32>
    %401 = vector.multi_reduction <add>, %400, %cst_226 [1] : vector<1x128xf32> to vector<1xf32>
    %402 = vector.shape_cast %401 : vector<1xf32> to vector<1x1xf32>
    %403 = math.log %402 : vector<1x1xf32>
    %404 = arith.addf %403, %397 : vector<1x1xf32>
    %c0_227 = arith.constant 0 : index
    %c0_228 = arith.constant 0 : index
    %c0_229 = arith.constant 0 : index
    %405 = vector.load %arg3[%c0_227, %c0_228, %c0_229] : memref<1x1x128xf32, #tpu.memory_space<vmem>>, vector<1x1x128xf32>
    %406 = vector.shape_cast %405 : vector<1x1x128xf32> to vector<1x128xf32>
    %407 = arith.mulf %406, %395 : vector<1x128xf32>
    %cst_230 = arith.constant dense<0.000000e+00> : vector<1xf32>
    %408 = vector.multi_reduction <add>, %407, %cst_230 [1] : vector<1x128xf32> to vector<1xf32>
    %409 = vector.shape_cast %408 : vector<1xf32> to vector<1x1xf32>
    %410 = arith.subf %404, %409 : vector<1x1xf32>
    %411 = vector.shape_cast %410 : vector<1x1xf32> to vector<1x1xf32>
    %412 = vector.broadcast %411 : vector<1x1xf32> to vector<1x128xf32>
    %cst_231 = arith.constant 0.000000e+00 : f32
    %413 = vector.broadcast %cst_231 : f32 to vector<6x128xf32>
    %414 = tpu.concatenate %395, %412, %413 in 0 : vector<1x128xf32>, vector<1x128xf32>, vector<6x128xf32> -> vector<8x128xf32>
    %c0_232 = arith.constant 0 : index
    %c0_233 = arith.constant 0 : index
    %c0_234 = arith.constant 0 : index
    %415 = vector.load %arg12[%c0_232, %c0_233, %c0_234] : memref<1x8x128xf32, #tpu.memory_space<vmem>>, vector<1x8x128xf32>
    %416 = vector.shape_cast %415 : vector<1x8x128xf32> to vector<8x128xf32>
    %417 = vector.shape_cast %414 : vector<8x128xf32> to vector<1x8x128xf32>
    tpu.vector_store %arg12[%c0_232, %c0_233, %c0_234], %417 {strides = array<i32>} : memref<1x8x128xf32, #tpu.memory_space<vmem>>, vector<1x8x128xf32>,
    return
  }
  func.func @transform_0(%arg0: i32) -> (i32, i32, i32) {
    %c0_i32 = arith.constant 0 : i32
    %c0_i32_0 = arith.constant 0 : i32
    %c0_i32_1 = arith.constant 0 : i32
    return %arg0, %c0_i32, %c0_i32_0 : i32, i32, i32
  }
  func.func @transform_1(%arg0: i32) -> (i32, i32, i32) {
    %c0_i32 = arith.constant 0 : i32
    %c0_i32_0 = arith.constant 0 : i32
    %c0_i32_1 = arith.constant 0 : i32
    return %arg0, %c0_i32, %c0_i32_0 : i32, i32, i32
  }
  func.func @transform_2(%arg0: i32) -> (i32, i32, i32) {
    %c0_i32 = arith.constant 0 : i32
    %c0_i32_0 = arith.constant 0 : i32
    %c0_i32_1 = arith.constant 0 : i32
    return %arg0, %c0_i32, %c0_i32_0 : i32, i32, i32
  }
  func.func @transform_3(%arg0: i32) -> (i32, i32, i32) {
    %c0_i32 = arith.constant 0 : i32
    %c0_i32_0 = arith.constant 0 : i32
    %c0_i32_1 = arith.constant 0 : i32
    %c0_i32_2 = arith.constant 0 : i32
    return %c0_i32, %c0_i32_0, %c0_i32_1 : i32, i32, i32
  }
  func.func @transform_4(%arg0: i32) -> (i32, i32, i32) {
    %c0_i32 = arith.constant 0 : i32
    %c0_i32_0 = arith.constant 0 : i32
    %c0_i32_1 = arith.constant 0 : i32
    %c0_i32_2 = arith.constant 0 : i32
    return %c0_i32, %c0_i32_0, %c0_i32_1 : i32, i32, i32
  }
  func.func @transform_5(%arg0: i32) -> (i32, i32, i32) {
    %c0_i32 = arith.constant 0 : i32
    %c0_i32_0 = arith.constant 0 : i32
    %c0_i32_1 = arith.constant 0 : i32
    %c0_i32_2 = arith.constant 0 : i32
    return %c0_i32, %c0_i32_0, %c0_i32_1 : i32, i32, i32
  }
  func.func @transform_6(%arg0: i32) -> (i32, i32, i32) {
    %c0_i32 = arith.constant 0 : i32
    %c0_i32_0 = arith.constant 0 : i32
    %c0_i32_1 = arith.constant 0 : i32
    %c0_i32_2 = arith.constant 0 : i32
    return %c0_i32, %c0_i32_0, %c0_i32_1 : i32, i32, i32
  }
  func.func @transform_7(%arg0: i32) -> (i32, i32, i32) {
    %c0_i32 = arith.constant 0 : i32
    %c0_i32_0 = arith.constant 0 : i32
    %c0_i32_1 = arith.constant 0 : i32
    %c0_i32_2 = arith.constant 0 : i32
    return %c0_i32, %c0_i32_0, %c0_i32_1 : i32, i32, i32
  }
  func.func @transform_8(%arg0: i32) -> (i32, i32) {
    %c0_i32 = arith.constant 0 : i32
    %c0_i32_0 = arith.constant 0 : i32
    %c0_i32_1 = arith.constant 0 : i32
    return %c0_i32, %c0_i32_0 : i32, i32
  }
  func.func @transform_9(%arg0: i32) -> (i32, i32) {
    %c0_i32 = arith.constant 0 : i32
    %c0_i32_0 = arith.constant 0 : i32
    %c0_i32_1 = arith.constant 0 : i32
    return %c0_i32, %c0_i32_0 : i32, i32
  }
  func.func @transform_10(%arg0: i32) -> (i32, i32) {
    %c0_i32 = arith.constant 0 : i32
    %c0_i32_0 = arith.constant 0 : i32
    %c0_i32_1 = arith.constant 0 : i32
    return %c0_i32, %c0_i32_0 : i32, i32
  }
  func.func @transform_11(%arg0: i32) -> (i32, i32, i32) {
    %c0_i32 = arith.constant 0 : i32
    %c0_i32_0 = arith.constant 0 : i32
    %c0_i32_1 = arith.constant 0 : i32
    return %arg0, %c0_i32, %c0_i32_0 : i32, i32, i32
  }
}

</mosaic_0001>

<llo_original>
// kernel: tpu_custom_call.1
$region0: #{tpu_custom_call.1}
  #allocation0 [shape = 'u32[]', space=smem, size = 0x4, offset = 0x4, fixed_abs, tag = 'smem constant byte address 0x4 - core index']
  #allocation1 [shape = 'u32[144,128]{1,0:T(1,128)}', space=vmem, size = 0x12000, scoped, tag = 'internal scratch']
  #allocation2 [shape = 'f32[3,4,8,8]{3,2,1,0:T(8,128)}', space=vmem, size = 0xc000, scoped, tag = 'scratch operand']
  #allocation3 [shape = 'f32[8,32]{1,0:T(8,128)}', space=vmem, size = 0x1000, scoped, tag = 'scratch operand']
  %s0 = inlined_call_operand.hbm [shape: f32[2,8,32], index: 0, kind: input, shape index: {}]
  %s1 = inlined_call_operand.hbm [shape: f32[2,1,8], index: 1, kind: input, shape index: {}]
  %s2 = inlined_call_operand.hbm [shape: f32[2,1,128], index: 2, kind: input, shape index: {}]
  %s3 = inlined_call_operand.vmem [shape: bf16[2,32,96], index: 3, kind: input, shape index: {}]
  %s4 = inlined_call_operand.vmem [shape: bf16[2,32,32], index: 4, kind: input, shape index: {}]
  %s5 = inlined_call_operand.vmem [shape: bf16[2,32,64], index: 5, kind: input, shape index: {}]
  %s6 = inlined_call_operand.vmem [shape: bf16[2,64,32], index: 6, kind: input, shape index: {}]
  %s7 = inlined_call_operand.hbm [shape: f32[2,8,128], index: 7, kind: input, shape index: {}]
  %s8 = inlined_call_operand.vmem [shape: f32[8,128], index: 8, kind: input, shape index: {}]
  %s9 = inlined_call_operand.hbm [shape: f32[32,32], index: 9, kind: input, shape index: {}]
  %s10 = inlined_call_operand.hbm [shape: f32[32,128], index: 10, kind: input, shape index: {}]
  %s11 = inlined_call_operand.hbm [shape: f32[2,8,128], index: 11, kind: output, shape index: {}]
  %s12 = sld [smem:[#allocation0]]
  $region101: #{tpu_custom_call.1} parent=0
    _
  %s14 = ssub.s32 1, %s12
  %s15 = scalar_select 0, %s14, %s12
  $region1: #{tpu_custom_call.1} parent=0
    #allocation4 [shape = 'u8[8192]{0}', space=vmem, size = 0x2000, scoped, tag = 'input window, operand 0']
    #allocation5 [shape = 's32[2]{0}', space=sflag, size = 0x8, scoped, tag = 'scoped memory for tpu_custom_call.1']
    #allocation6 [shape = 's32[2]{0}', space=sflag, size = 0x8, scoped, tag = 'scoped memory for tpu_custom_call.1']
    #allocation7 [shape = 'u8[1024]{0}', space=vmem, size = 0x400, scoped, tag = 'input window, operand 1']
    #allocation8 [shape = 's32[2]{0}', space=sflag, size = 0x8, scoped, tag = 'scoped memory for tpu_custom_call.1']
    #allocation9 [shape = 'u8[1024]{0}', space=vmem, size = 0x400, scoped, tag = 'input window, operand 2']
    #allocation10 [shape = 'u8[8192]{0}', space=vmem, size = 0x2000, scoped, tag = 'input window, operand 7, single buffered']
    #allocation11 [shape = 's32[1]{0}', space=sflag, size = 0x4, scoped, tag = 'scoped memory for tpu_custom_call.1']
    #allocation12 [shape = 'u8[16384]{0}', space=vmem, size = 0x4000, scoped, tag = 'input window, operand 9, single buffered']
    #allocation13 [shape = 'u8[16384]{0}', space=vmem, size = 0x4000, scoped, tag = 'input window, operand 10, single buffered']
    #allocation14 [shape = 's32[1]{0}', space=sflag, size = 0x4, scoped, tag = 'scoped memory for tpu_custom_call.1']
    #allocation15 [shape = 'u8[8192]{0}', space=vmem, size = 0x2000, scoped, tag = 'output window, operand 0']
    %16 = vsyncpa [#allocation5], 0
    %s17 = scalar_lea.sflag [#allocation5], 1
    %18 = vsyncpa %s17, 0
    %19 = vsyncpa [#allocation8], 0
    %s20 = scalar_lea.sflag [#allocation8], 1
    %21 = vsyncpa %s20, 0
    %22 = vsyncpa [#allocation11], 0
    %23 = vsyncpa [#allocation14], 0
    %24 = vsyncpa [#allocation6], 0
    %s25 = scalar_lea.sflag [#allocation6], 1
    %26 = vsyncpa %s25, 0
    loop: start=0, step=1, limit=4
    $region2: #{tpu_custom_call.1} parent=1 // loop_pre_header
      _
    $region3: #{tpu_custom_call.1} parent=1 // loop_header
      %s28 = sphi 0, %s32
      %p29 = scmp.ge.s32.totalorder %s28, 4
      %s38 = sphi 0, %s40
      %s41 = sphi 0, %s38
      %s42 = sphi 0, %s41
      %s58 = sphi 0, %s42
      %s64 = sphi 0, %s66
      %s67 = sphi 0, %s64
      %s68 = sphi 0, %s67
      %s84 = sphi 0, %s68
      %s90 = sphi 0, %s92
      %s93 = sphi 0, %s90
      %s94 = sphi 0, %s93
      %s110 = sphi 0, %s94
      %s114 = sphi 0, %s114
      %s116 = sphi 0, %s114
      %s117 = sphi 0, %s116
      %s131 = sphi 0, %s117
      %s135 = sphi 0, %s135
      %s137 = sphi 0, %s135
      %s138 = sphi 0, %s137
      %s152 = sphi 0, %s138
      %s156 = sphi 0, %s156
      %s158 = sphi 0, %s156
      %s159 = sphi 0, %s158
      %s173 = sphi 0, %s159
      %s177 = sphi 0, %s177
      %s179 = sphi 0, %s177
      %s180 = sphi 0, %s179
      %s194 = sphi 0, %s180
      %s198 = sphi 0, %s198
      %s200 = sphi 0, %s198
      %s201 = sphi 0, %s200
      %s215 = sphi 0, %s201
      %s219 = sphi 0, %s219
      %s221 = sphi 0, %s219
      %s222 = sphi 0, %s221
      %s236 = sphi 0, %s222
      %s240 = sphi 0, %s240
      %s242 = sphi 0, %s240
      %s243 = sphi 0, %s242
      %s257 = sphi 0, %s243
      %s261 = sphi 0, %s261
      %s263 = sphi 0, %s261
      %s264 = sphi 0, %s263
      %s278 = sphi 0, %s264
      %s284 = sphi 0, %s286
      %s287 = sphi 0, %s284
      %s288 = sphi 0, %s287
      %s304 = sphi 0, %s288
    $region4: #{tpu_custom_call.1} parent=1 // loop_header_branch
      %31 = sbr.rel (%p29) target = $region8
    $region5: #{tpu_custom_call.1} parent=1 // loop_body
      %s33 = ssub.s32 %s28, 1
      %s34 = ssub.s32 %s28, 2
      %s35 = sadd.s32 %s28, 1
      %s36 = ssub.s32 %s28, %s35
      %p37 = scmp.eq.s32.totalorder %s36, 0
      %s39 = sadd.s32 %s38, 1
      %s40 = scalar_select %p37, %s38, %s39
      %p43 = pneg %p37
      %p44 = scmp.eq.s32.totalorder %s28, 1
      %p45 = por %p43, %p44
      %p46 = scmp.ne.s32.totalorder %s38, %s41
      %p47 = scmp.eq.s32.totalorder %s28, 0
      %p48 = por %p46, %p47
      %p49 = scmp.ne.s32.totalorder %s38, %s41
      %p50 = scmp.eq.s32.totalorder %s33, 1
      %p51 = por %p49, %p50
      %p52 = scmp.ne.s32.totalorder %s41, %s42
      %p53 = scmp.eq.s32.totalorder %s33, 0
      %p54 = por %p52, %p53
      %p55 = scmp.ne.s32.totalorder %s41, %s42
      %p56 = scmp.eq.s32.totalorder %s34, 1
      %p57 = por %p55, %p56
      %p59 = scmp.ne.s32.totalorder %s42, %s58
      %p60 = scmp.eq.s32.totalorder %s34, 0
      %p61 = por %p59, %p60
      %s62 = ssub.s32 %s28, %s35
      %p63 = scmp.eq.s32.totalorder %s62, 0
      %s65 = sadd.s32 %s64, 1
      %s66 = scalar_select %p63, %s64, %s65
      %p69 = pneg %p63
      %p70 = scmp.eq.s32.totalorder %s28, 1
      %p71 = por %p69, %p70
      %p72 = scmp.ne.s32.totalorder %s64, %s67
      %p73 = scmp.eq.s32.totalorder %s28, 0
      %p74 = por %p72, %p73
      %p75 = scmp.ne.s32.totalorder %s64, %s67
      %p76 = scmp.eq.s32.totalorder %s33, 1
      %p77 = por %p75, %p76
      %p78 = scmp.ne.s32.totalorder %s67, %s68
      %p79 = scmp.eq.s32.totalorder %s33, 0
      %p80 = por %p78, %p79
      %p81 = scmp.ne.s32.totalorder %s67, %s68
      %p82 = scmp.eq.s32.totalorder %s34, 1
      %p83 = por %p81, %p82
      %p85 = scmp.ne.s32.totalorder %s68, %s84
      %p86 = scmp.eq.s32.totalorder %s34, 0
      %p87 = por %p85, %p86
      %s88 = ssub.s32 %s28, %s35
      %p89 = scmp.eq.s32.totalorder %s88, 0
      %s91 = sadd.s32 %s90, 1
      %s92 = scalar_select %p89, %s90, %s91
      %p95 = pneg %p89
      %p96 = scmp.eq.s32.totalorder %s28, 1
      %p97 = por %p95, %p96
      %p98 = scmp.ne.s32.totalorder %s90, %s93
      %p99 = scmp.eq.s32.totalorder %s28, 0
      %p100 = por %p98, %p99
      %p101 = scmp.ne.s32.totalorder %s90, %s93
      %p102 = scmp.eq.s32.totalorder %s33, 1
      %p103 = por %p101, %p102
      %p104 = scmp.ne.s32.totalorder %s93, %s94
      %p105 = scmp.eq.s32.totalorder %s33, 0
      %p106 = por %p104, %p105
      %p107 = scmp.ne.s32.totalorder %s93, %s94
      %p108 = scmp.eq.s32.totalorder %s34, 1
      %p109 = por %p107, %p108
      %p111 = scmp.ne.s32.totalorder %s94, %s110
      %p112 = scmp.eq.s32.totalorder %s34, 0
      %p113 = por %p111, %p112
      %s115 = sadd.s32 %s114, 1
      %p118 = scmp.eq.s32.totalorder %s28, 1
      %p119 = scmp.ne.s32.totalorder %s114, %s116
      %p120 = scmp.eq.s32.totalorder %s28, 0
      %p121 = por %p119, %p120
      %p122 = scmp.ne.s32.totalorder %s114, %s116
      %p123 = scmp.eq.s32.totalorder %s33, 1
      %p124 = por %p122, %p123
      %p125 = scmp.ne.s32.totalorder %s116, %s117
      %p126 = scmp.eq.s32.totalorder %s33, 0
      %p127 = por %p125, %p126
      %p128 = scmp.ne.s32.totalorder %s116, %s117
      %p129 = scmp.eq.s32.totalorder %s34, 1
      %p130 = por %p128, %p129
      %p132 = scmp.ne.s32.totalorder %s117, %s131
      %p133 = scmp.eq.s32.totalorder %s34, 0
      %p134 = por %p132, %p133
      %s136 = sadd.s32 %s135, 1
      %p139 = scmp.eq.s32.totalorder %s28, 1
      %p140 = scmp.ne.s32.totalorder %s135, %s137
      %p141 = scmp.eq.s32.totalorder %s28, 0
      %p142 = por %p140, %p141
      %p143 = scmp.ne.s32.totalorder %s135, %s137
      %p144 = scmp.eq.s32.totalorder %s33, 1
      %p145 = por %p143, %p144
      %p146 = scmp.ne.s32.totalorder %s137, %s138
      %p147 = scmp.eq.s32.totalorder %s33, 0
      %p148 = por %p146, %p147
      %p149 = scmp.ne.s32.totalorder %s137, %s138
      %p150 = scmp.eq.s32.totalorder %s34, 1
      %p151 = por %p149, %p150
      %p153 = scmp.ne.s32.totalorder %s138, %s152
      %p154 = scmp.eq.s32.totalorder %s34, 0
      %p155 = por %p153, %p154
      %s157 = sadd.s32 %s156, 1
      %p160 = scmp.eq.s32.totalorder %s28, 1
      %p161 = scmp.ne.s32.totalorder %s156, %s158
      %p162 = scmp.eq.s32.totalorder %s28, 0
      %p163 = por %p161, %p162
      %p164 = scmp.ne.s32.totalorder %s156, %s158
      %p165 = scmp.eq.s32.totalorder %s33, 1
      %p166 = por %p164, %p165
      %p167 = scmp.ne.s32.totalorder %s158, %s159
      %p168 = scmp.eq.s32.totalorder %s33, 0
      %p169 = por %p167, %p168
      %p170 = scmp.ne.s32.totalorder %s158, %s159
      %p171 = scmp.eq.s32.totalorder %s34, 1
      %p172 = por %p170, %p171
      %p174 = scmp.ne.s32.totalorder %s159, %s173
      %p175 = scmp.eq.s32.totalorder %s34, 0
      %p176 = por %p174, %p175
      %s178 = sadd.s32 %s177, 1
      %p181 = scmp.eq.s32.totalorder %s28, 1
      %p182 = scmp.ne.s32.totalorder %s177, %s179
      %p183 = scmp.eq.s32.totalorder %s28, 0
      %p184 = por %p182, %p183
      %p185 = scmp.ne.s32.totalorder %s177, %s179
      %p186 = scmp.eq.s32.totalorder %s33, 1
      %p187 = por %p185, %p186
      %p188 = scmp.ne.s32.totalorder %s179, %s180
      %p189 = scmp.eq.s32.totalorder %s33, 0
      %p190 = por %p188, %p189
      %p191 = scmp.ne.s32.totalorder %s179, %s180
      %p192 = scmp.eq.s32.totalorder %s34, 1
      %p193 = por %p191, %p192
      %p195 = scmp.ne.s32.totalorder %s180, %s194
      %p196 = scmp.eq.s32.totalorder %s34, 0
      %p197 = por %p195, %p196
      %s199 = sadd.s32 %s198, 1
      %p202 = scmp.eq.s32.totalorder %s28, 1
      %p203 = scmp.ne.s32.totalorder %s198, %s200
      %p204 = scmp.eq.s32.totalorder %s28, 0
      %p205 = por %p203, %p204
      %p206 = scmp.ne.s32.totalorder %s198, %s200
      %p207 = scmp.eq.s32.totalorder %s33, 1
      %p208 = por %p206, %p207
      %p209 = scmp.ne.s32.totalorder %s200, %s201
      %p210 = scmp.eq.s32.totalorder %s33, 0
      %p211 = por %p209, %p210
      %p212 = scmp.ne.s32.totalorder %s200, %s201
      %p213 = scmp.eq.s32.totalorder %s34, 1
      %p214 = por %p212, %p213
      %p216 = scmp.ne.s32.totalorder %s201, %s215
      %p217 = scmp.eq.s32.totalorder %s34, 0
      %p218 = por %p216, %p217
      %s220 = sadd.s32 %s219, 1
      %p223 = scmp.eq.s32.totalorder %s28, 1
      %p224 = scmp.ne.s32.totalorder %s219, %s221
      %p225 = scmp.eq.s32.totalorder %s28, 0
      %p226 = por %p224, %p225
      %p227 = scmp.ne.s32.totalorder %s219, %s221
      %p228 = scmp.eq.s32.totalorder %s33, 1
      %p229 = por %p227, %p228
      %p230 = scmp.ne.s32.totalorder %s221, %s222
      %p231 = scmp.eq.s32.totalorder %s33, 0
      %p232 = por %p230, %p231
      %p233 = scmp.ne.s32.totalorder %s221, %s222
      %p234 = scmp.eq.s32.totalorder %s34, 1
      %p235 = por %p233, %p234
      %p237 = scmp.ne.s32.totalorder %s222, %s236
      %p238 = scmp.eq.s32.totalorder %s34, 0
      %p239 = por %p237, %p238
      %s241 = sadd.s32 %s240, 1
      %p244 = scmp.eq.s32.totalorder %s28, 1
      %p245 = scmp.ne.s32.totalorder %s240, %s242
      %p246 = scmp.eq.s32.totalorder %s28, 0
      %p247 = por %p245, %p246
      %p248 = scmp.ne.s32.totalorder %s240, %s242
      %p249 = scmp.eq.s32.totalorder %s33, 1
      %p250 = por %p248, %p249
      %p251 = scmp.ne.s32.totalorder %s242, %s243
      %p252 = scmp.eq.s32.totalorder %s33, 0
      %p253 = por %p251, %p252
      %p254 = scmp.ne.s32.totalorder %s242, %s243
      %p255 = scmp.eq.s32.totalorder %s34, 1
      %p256 = por %p254, %p255
      %p258 = scmp.ne.s32.totalorder %s243, %s257
      %p259 = scmp.eq.s32.totalorder %s34, 0
      %p260 = por %p258, %p259
      %s262 = sadd.s32 %s261, 1
      %p265 = scmp.eq.s32.totalorder %s28, 1
      %p266 = scmp.ne.s32.totalorder %s261, %s263
      %p267 = scmp.eq.s32.totalorder %s28, 0
      %p268 = por %p266, %p267
      %p269 = scmp.ne.s32.totalorder %s261, %s263
      %p270 = scmp.eq.s32.totalorder %s33, 1
      %p271 = por %p269, %p270
      %p272 = scmp.ne.s32.totalorder %s263, %s264
      %p273 = scmp.eq.s32.totalorder %s33, 0
      %p274 = por %p272, %p273
      %p275 = scmp.ne.s32.totalorder %s263, %s264
      %p276 = scmp.eq.s32.totalorder %s34, 1
      %p277 = por %p275, %p276
      %p279 = scmp.ne.s32.totalorder %s264, %s278
      %p280 = scmp.eq.s32.totalorder %s34, 0
      %p281 = por %p279, %p280
      %s282 = ssub.s32 %s28, %s35
      %p283 = scmp.eq.s32.totalorder %s282, 0
      %s285 = sadd.s32 %s284, 1
      %s286 = scalar_select %p283, %s284, %s285
      %p289 = pneg %p283
      %p290 = scmp.eq.s32.totalorder %s28, 1
      %p291 = por %p289, %p290
      %p292 = scmp.ne.s32.totalorder %s284, %s287
      %p293 = scmp.eq.s32.totalorder %s28, 0
      %p294 = por %p292, %p293
      %p295 = scmp.ne.s32.totalorder %s284, %s287
      %p296 = scmp.eq.s32.totalorder %s33, 1
      %p297 = por %p295, %p296
      %p298 = scmp.ne.s32.totalorder %s287, %s288
      %p299 = scmp.eq.s32.totalorder %s33, 0
      %p300 = por %p298, %p299
      %p301 = scmp.ne.s32.totalorder %s287, %s288
      %p302 = scmp.eq.s32.totalorder %s34, 1
      %p303 = por %p301, %p302
      %p305 = scmp.ne.s32.totalorder %s288, %s304
      %p306 = scmp.eq.s32.totalorder %s34, 0
      %p307 = por %p305, %p306
      %p308 = scmp.le.s32.totalorder 1, %s28
      %p309 = scmp.lt.s32.totalorder %s28, 3
      %p310 = pnand %p308, %p309
      %p311 = pneg %p310
      // Predicated region
      $region9: #{tpu_custom_call.1} parent=5 // pred_check
        _
      $region10: #{tpu_custom_call.1} parent=5 // pred_check_branch
        %313 = sbr.rel (%p310) target = $region12
      $region11: #{tpu_custom_call.1} parent=5 // pred_region
        %s314 = ssub.s32 %s28, 1
        // Predicated region
        $region13: #{tpu_custom_call.1} parent=11 // pred_check
          %p315 = pneg %p127
        $region14: #{tpu_custom_call.1} parent=11 // pred_check_branch
          %317 = sbr.rel (%p315) target = $region16
        $region15: #{tpu_custom_call.1} parent=11 // pred_region
          _
        $region16: #{tpu_custom_call.1} parent=11 // pred_fallthru
          _
        // Predicated region
        $region17: #{tpu_custom_call.1} parent=11 // pred_check
          %p318 = pneg %p148
        $region18: #{tpu_custom_call.1} parent=11 // pred_check_branch
          %320 = sbr.rel (%p318) target = $region20
        $region19: #{tpu_custom_call.1} parent=11 // pred_region
          _
        $region20: #{tpu_custom_call.1} parent=11 // pred_fallthru
          _
        // Predicated region
        $region21: #{tpu_custom_call.1} parent=11 // pred_check
          %p321 = pneg %p169
        $region22: #{tpu_custom_call.1} parent=11 // pred_check_branch
          %323 = sbr.rel (%p321) target = $region24
        $region23: #{tpu_custom_call.1} parent=11 // pred_region
          _
        $region24: #{tpu_custom_call.1} parent=11 // pred_fallthru
          _
        // Predicated region
        $region25: #{tpu_custom_call.1} parent=11 // pred_check
          %p324 = pneg %p190
        $region26: #{tpu_custom_call.1} parent=11 // pred_check_branch
          %326 = sbr.rel (%p324) target = $region28
        $region27: #{tpu_custom_call.1} parent=11 // pred_region
          _
        $region28: #{tpu_custom_call.1} parent=11 // pred_fallthru
          _
        // Predicated region
        $region29: #{tpu_custom_call.1} parent=11 // pred_check
          %p327 = pneg %p211
        $region30: #{tpu_custom_call.1} parent=11 // pred_check_branch
          %329 = sbr.rel (%p327) target = $region32
        $region31: #{tpu_custom_call.1} parent=11 // pred_region
          %s331 = ssub.s32 256, 256
          %332 = vsyncadd [#allocation11], %s331
          %s333 = sshll.u32 [#allocation10], 4
          %s334 = int_to_ptr.vmem [resolvable:$true] %s333
          %339 = dma.hbm_to_vmem [thread:$0]  %s7, 256, %s334, [#allocation11], 128, 128, 8
        $region32: #{tpu_custom_call.1} parent=11 // pred_fallthru
          _
        // Predicated region
        $region33: #{tpu_custom_call.1} parent=11 // pred_check
          %p340 = pneg %p232
        $region34: #{tpu_custom_call.1} parent=11 // pred_check_branch
          %342 = sbr.rel (%p340) target = $region36
        $region35: #{tpu_custom_call.1} parent=11 // pred_region
          _
        $region36: #{tpu_custom_call.1} parent=11 // pred_fallthru
          _
        // Predicated region
        $region37: #{tpu_custom_call.1} parent=11 // pred_check
          %p343 = pneg %p253
        $region38: #{tpu_custom_call.1} parent=11 // pred_check_branch
          %345 = sbr.rel (%p343) target = $region40
        $region39: #{tpu_custom_call.1} parent=11 // pred_region
          %s347 = ssub.s32 512, 512
          %348 = vsyncadd [#allocation11], %s347
          %s349 = sshll.u32 [#allocation12], 4
          %s350 = int_to_ptr.vmem [resolvable:$true] %s349
          %355 = dma.hbm_to_vmem [thread:$0]  %s9, 512, %s350, [#allocation11], 128, 128, 8
        $region40: #{tpu_custom_call.1} parent=11 // pred_fallthru
          _
        // Predicated region
        $region41: #{tpu_custom_call.1} parent=11 // pred_check
          %p356 = pneg %p274
        $region42: #{tpu_custom_call.1} parent=11 // pred_check_branch
          %358 = sbr.rel (%p356) target = $region44
        $region43: #{tpu_custom_call.1} parent=11 // pred_region
          %s360 = ssub.s32 512, 512
          %361 = vsyncadd [#allocation14], %s360
          %s362 = sshll.u32 [#allocation13], 4
          %s363 = int_to_ptr.vmem [resolvable:$true] %s362
          %368 = dma.hbm_to_vmem [thread:$0]  %s10, 512, %s363, [#allocation14], 128, 128, 8
        $region44: #{tpu_custom_call.1} parent=11 // pred_fallthru
          _
      $region12: #{tpu_custom_call.1} parent=5 // pred_fallthru
        _
      %p369 = scmp.lt.s32.totalorder %s28, 2
      // Predicated region
      $region45: #{tpu_custom_call.1} parent=5 // pred_check
        %p370 = pneg %p369
      $region46: #{tpu_custom_call.1} parent=5 // pred_check_branch
        %372 = sbr.rel (%p370) target = $region48
      $region47: #{tpu_custom_call.1} parent=5 // pred_region
        // Predicated region
        $region49: #{tpu_custom_call.1} parent=47 // pred_check
          %p373 = pneg %p48
        $region50: #{tpu_custom_call.1} parent=47 // pred_check_branch
          %375 = sbr.rel (%p373) target = $region52
        $region51: #{tpu_custom_call.1} parent=47 // pred_region
          %s376 = sand.u32 %s38, 1
          %s377 = scalar_lea.sflag [#allocation5], %s376
          %s378 = sand.u32 %s38, 1
          %s379 = smul.addr %s378, 8
          %s380 = scalar_lea.vmem [#allocation4], %s379
          %s382 = ssub.s32 128, 128
          %383 = vsyncadd %s377, %s382
          %s384 = smul.addr %s28, 128
          %s385 = scalar_lea.hbm %s0, %s384
          %s387 = sshll.u32 %s380, 4
          %s388 = int_to_ptr.vmem [resolvable:$true] %s387
          %390 = dma.hbm_to_vmem [thread:$0]  %s385, 128, %s388, %s377
        $region52: #{tpu_custom_call.1} parent=47 // pred_fallthru
          _
        // Predicated region
        $region53: #{tpu_custom_call.1} parent=47 // pred_check
          %p391 = pneg %p74
        $region54: #{tpu_custom_call.1} parent=47 // pred_check_branch
          %393 = sbr.rel (%p391) target = $region56
        $region55: #{tpu_custom_call.1} parent=47 // pred_region
          %s394 = sand.u32 %s28, 1
          %s395 = scalar_lea.sflag [#allocation8], %s394
          %s396 = sand.u32 %s64, 1
          %s397 = scalar_lea.vmem [#allocation7], %s396
          %s399 = ssub.s32 16, 16
          %400 = vsyncadd %s395, %s399
          %s401 = smul.addr %s28, 16
          %s402 = scalar_lea.hbm %s1, %s401
          %s404 = sshll.u32 %s397, 4
          %s405 = int_to_ptr.vmem [resolvable:$true] %s404
          %407 = dma.hbm_to_vmem [thread:$0]  %s402, 16, %s405, %s395
        $region56: #{tpu_custom_call.1} parent=47 // pred_fallthru
          _
        // Predicated region
        $region57: #{tpu_custom_call.1} parent=47 // pred_check
          %p408 = pneg %p100
        $region58: #{tpu_custom_call.1} parent=47 // pred_check_branch
          %410 = sbr.rel (%p408) target = $region60
        $region59: #{tpu_custom_call.1} parent=47 // pred_region
          %s411 = sand.u32 %s28, 1
          %s412 = scalar_lea.sflag [#allocation8], %s411
          %s413 = sand.u32 %s90, 1
          %s414 = scalar_lea.vmem [#allocation9], %s413
          %s416 = ssub.s32 16, 16
          %417 = vsyncadd %s412, %s416
          %s418 = smul.addr %s28, 16
          %s419 = scalar_lea.hbm %s2, %s418
          %s421 = sshll.u32 %s414, 4
          %s422 = int_to_ptr.vmem [resolvable:$true] %s421
          %424 = dma.hbm_to_vmem [thread:$0]  %s419, 16, %s422, %s412
        $region60: #{tpu_custom_call.1} parent=47 // pred_fallthru
          _
      $region48: #{tpu_custom_call.1} parent=5 // pred_fallthru
        _
      %p425 = scmp.le.s32.totalorder 1, %s28
      %p426 = scmp.lt.s32.totalorder %s28, 3
      %p427 = pnand %p425, %p426
      %p428 = pneg %p427
      // Predicated region
      $region61: #{tpu_custom_call.1} parent=5 // pred_check
        _
      $region62: #{tpu_custom_call.1} parent=5 // pred_check_branch
        %430 = sbr.rel (%p427) target = $region64
      $region63: #{tpu_custom_call.1} parent=5 // pred_region
        %s431 = ssub.s32 %s28, 1
        %s432 = sand.u32 %s41, 1
        %s433 = scalar_lea.sflag [#allocation5], %s432
        %s434 = sand.u32 %s41, 1
        %s435 = smul.addr %s434, 8
        %s436 = scalar_lea.vmem [#allocation4], %s435
        // Predicated region
        $region65: #{tpu_custom_call.1} parent=63 // pred_check
          %p437 = pneg %p54
        $region66: #{tpu_custom_call.1} parent=63 // pred_check_branch
          %439 = sbr.rel (%p437) target = $region68
        $region67: #{tpu_custom_call.1} parent=63 // pred_region
          %440 = dma.done %s433, 128
        $region68: #{tpu_custom_call.1} parent=63 // pred_fallthru
          _
        %s441 = sand.u32 %s33, 1
        %s442 = scalar_lea.sflag [#allocation8], %s441
        %s443 = sand.u32 %s67, 1
        %s444 = scalar_lea.vmem [#allocation7], %s443
        // Predicated region
        $region69: #{tpu_custom_call.1} parent=63 // pred_check
          %p445 = pneg %p80
        $region70: #{tpu_custom_call.1} parent=63 // pred_check_branch
          %447 = sbr.rel (%p445) target = $region72
        $region71: #{tpu_custom_call.1} parent=63 // pred_region
          %448 = dma.done %s442, 16
        $region72: #{tpu_custom_call.1} parent=63 // pred_fallthru
          _
        %s449 = sand.u32 %s33, 1
        %s450 = scalar_lea.sflag [#allocation8], %s449
        %s451 = sand.u32 %s93, 1
        %s452 = scalar_lea.vmem [#allocation9], %s451
        // Predicated region
        $region73: #{tpu_custom_call.1} parent=63 // pred_check
          %p453 = pneg %p106
        $region74: #{tpu_custom_call.1} parent=63 // pred_check_branch
          %455 = sbr.rel (%p453) target = $region76
        $region75: #{tpu_custom_call.1} parent=63 // pred_region
          %456 = dma.done %s450, 16
        $region76: #{tpu_custom_call.1} parent=63 // pred_fallthru
          _
        // Predicated region
        $region77: #{tpu_custom_call.1} parent=63 // pred_check
          %p457 = pneg %p211
        $region78: #{tpu_custom_call.1} parent=63 // pred_check_branch
          %459 = sbr.rel (%p457) target = $region80
        $region79: #{tpu_custom_call.1} parent=63 // pred_region
          %460 = dma.done [#allocation11], 256
        $region80: #{tpu_custom_call.1} parent=63 // pred_fallthru
          _
        // Predicated region
        $region81: #{tpu_custom_call.1} parent=63 // pred_check
          %p461 = pneg %p253
        $region82: #{tpu_custom_call.1} parent=63 // pred_check_branch
          %463 = sbr.rel (%p461) target = $region84
        $region83: #{tpu_custom_call.1} parent=63 // pred_region
          %464 = dma.done [#allocation11], 512
        $region84: #{tpu_custom_call.1} parent=63 // pred_fallthru
          _
        // Predicated region
        $region85: #{tpu_custom_call.1} parent=63 // pred_check
          %p465 = pneg %p274
        $region86: #{tpu_custom_call.1} parent=63 // pred_check_branch
          %467 = sbr.rel (%p465) target = $region88
        $region87: #{tpu_custom_call.1} parent=63 // pred_region
          %468 = dma.done [#allocation14], 512
        $region88: #{tpu_custom_call.1} parent=63 // pred_fallthru
          _
        %s469 = sand.u32 %s41, 1
        %s470 = scalar_lea.sflag [#allocation5], %s469
        %s471 = sand.u32 %s41, 1
        %s472 = smul.addr %s471, 8
        %s473 = scalar_lea.vmem [#allocation4], %s472
        %p474 = pneg %p54
        %p475 = pneg %p51
        %s476 = sand.u32 %s33, 1
        %s477 = scalar_lea.sflag [#allocation8], %s476
        %s478 = sand.u32 %s67, 1
        %s479 = scalar_lea.vmem [#allocation7], %s478
        %p480 = pneg %p80
        %p481 = pneg %p77
        %s482 = sand.u32 %s33, 1
        %s483 = scalar_lea.sflag [#allocation8], %s482
        %s484 = sand.u32 %s93, 1
        %s485 = scalar_lea.vmem [#allocation9], %s484
        %p486 = pneg %p106
        %p487 = pneg %p103
        %p488 = pneg %p127
        %p489 = pneg %p124
        %p490 = pneg %p148
        %p491 = pneg %p145
        %p492 = pneg %p169
        %p493 = pneg %p166
        %p494 = pneg %p190
        %p495 = pneg %p187
        %p496 = pneg %p211
        %p497 = pneg %p208
        %p498 = pneg %p232
        %p499 = pneg %p229
        %p500 = pneg %p253
        %p501 = pneg %p250
        %p502 = pneg %p274
        %p503 = pneg %p271
        %p504 = pneg %p300
        %p505 = pneg %p297
        %s506 = sand.u32 %s287, 1
        %s507 = scalar_lea.sflag [#allocation6], %s506
        %s508 = sand.u32 %s287, 1
        %s509 = smul.addr %s508, 8
        %s510 = scalar_lea.vmem [#allocation15], %s509
        %v512 = vld [vmem:[%s8] sm:$0xff]
        %v513 = vld [vmem:[%s444] sm:$0x1]
        %v514 = vld [vmem:[%s436] sm:$0xff]
        %vm515 = vcmask 261120
        %v516 = vsel %vm515, %v514, 0.0
        %517 = vadd.xlane.f32.xlu0 %v516
        %v518 = vpop.xlane.xlu0 %517
        %v519 = vrcp.pop 32.0
        %v520 = vmul.f32 %v518, %v519
        %v521 = vsub.f32 %v514, %v520
        %v522 = vmul.f32 %v521, %v521
        %v523 = vsel %vm515, %v522, 0.0
        %524 = vadd.xlane.f32.xlu0 %v523
        %v525 = vpop.xlane.xlu0 %524
        %v526 = vmul.f32 %v525, %v519
        %v527 = vadd.f32 %v526, 1e-12
        %v528 = vrsqrt.pop %v527
        %v529 = vmul.f32 %v521, %v528
        %v530 = vlaneseq
        %v531 = vshrl.u32 %v530, 7
        %v532 = vsub.s32 0, %v531
        %v533 = vrot.slane %v512, %v532
        %v534 = vmul.f32 %v529, %v533
        %v535 = vlaneseq
        %v536 = vshrl.u32 %v535, 7
        %v537 = vsub.s32 1, %v536
        %v538 = vrot.slane %v512, %v537
        %v539 = vadd.f32 %v534, %v538
        %v540 = vld [vmem:[#allocation10] sm:$0xff]
        %v541 = vpack.c.bf16 %v539, %v539
        %v542 = vld [vmem:[%s3] sm:$0xf]
        %v543 = vld [vmem:[%s3 + $0x4] sm:$0xf]
        %v544 = vld [vmem:[%s3 + $0x8] sm:$0xf]
        %v545 = vld [vmem:[%s3 + $0xc] sm:$0xf]
        %v546 = vlaneseq
        %v547 = vshrl.u32 %v546, 7
        %v548 = vsub.s32 0, %v547
        %v549 = vrot.slane %v540, %v548
        %v554 = vunpack.c.l.b16 %v542
        %v555 = vunpack.c.l.b16 %v543
        %v556 = vunpack.c.l.b16 %v544
        %v557 = vunpack.c.l.b16 %v545
        %v558 = vpack.c.b16 %v555, %v554
        %v559 = vpack.c.b16 %v557, %v556
        %v563 = vsel %vm515, %v541, 0
        %565 = vmatprep.subr.bf16.mxu0 0
        %566 = vmatpush1.bf16.msra.mxu0 0
        %567 = vmatprep.subr.bf16.mxu0 0
        %568 = vmatpush1.bf16.msra.mxu0 0
        %569 = vmatprep.subr.bf16.mxu0 0
        %570 = vmatpush1.bf16.msra.mxu0 0
        %571 = vmatprep.subr.bf16.mxu0 0
        %572 = vmatpush1.bf16.msra.mxu0 0
        %573 = vmatprep.subr.bf16.mxu0 0
        %574 = vmatpush1.bf16.msra.mxu0 0
        %575 = vmatprep.subr.bf16.mxu0 0
        %576 = vmatpush1.bf16.msra.mxu0 0
        %577 = vmatprep.subr.bf16.mxu0 0
        %578 = vmatpush1.bf16.msra.mxu0 %v559
        %579 = vmatprep.subr.bf16.mxu0 0
        %580 = vmatpush1.bf16.msra.mxu0 %v558
        %581 = vmatprep.subr.bf16.mxu0 0
        %582 = vmatpush2.bf16.msra.mxu0 0
        %583 = vmatprep.subr.bf16.mxu0 0
        %584 = vmatpush2.bf16.msra.mxu0 0
        %585 = vmatprep.subr.bf16.mxu0 0
        %586 = vmatpush2.bf16.msra.mxu0 0
        %587 = vmatprep.subr.bf16.mxu0 0
        %588 = vmatpush2.bf16.msra.mxu0 0
        %589 = vmatprep.subr.bf16.mxu0 0
        %590 = vmatpush2.bf16.msra.mxu0 0
        %591 = vmatprep.subr.bf16.mxu0 0
        %592 = vmatpush2.bf16.msra.mxu0 0
        %593 = vmatprep.subr.bf16.mxu0 0
        %594 = vmatpush2.bf16.msra.mxu0 0
        %595 = vmatprep.subr.bf16.mxu0 0
        %596 = vmatpush2.bf16.msra.mxu0 0
        %597 = vmatprep.mubr.bf16.mxu0 0
        %598 = vmatmul.mubr.bf16.gmra.mxu0 %v563
        %v599 = vpop.f32.mrf.mxu0
        %v600 = vadd.f32 %v549, %v599
        %v601 = vpop.f32.mrf.mxu0
        %v602 = vpop.f32.mrf.mxu0
        %v603 = vpop.f32.mrf.mxu0
        %604 = vdwg.mxu0
        %vm605 = vcmask 64512
        %606 = vst.msk [vmem:[#allocation2] sm:$0xff] %vm605, %v600
        %608 = vrot.lane.b32.xlu0 %v600, 96
        %v609 = vpop.permute.xlu0 %608
        %s611 = scalar_lea.vmem [#allocation2], 32
        %612 = vst.msk [vmem:[%s611] sm:$0xff] %vm605, %v609
        %613 = vrot.lane.b32.xlu0 %v600, 64
        %v614 = vpop.permute.xlu0 %613
        %s616 = scalar_lea.vmem [#allocation2], 64
        %617 = vst.msk [vmem:[%s616] sm:$0xff] %vm605, %v614
        %618 = vrot.lane.b32.xlu0 %v600, 120
        %v619 = vpop.permute.xlu0 %618
        %s621 = scalar_lea.vmem [#allocation2], 8
        %622 = vst.msk [vmem:[%s621] sm:$0xff] %vm605, %v619
        %623 = vrot.lane.b32.xlu0 %v600, 88
        %v624 = vpop.permute.xlu0 %623
        %s626 = scalar_lea.vmem [#allocation2], 40
        %627 = vst.msk [vmem:[%s626] sm:$0xff] %vm605, %v624
        %628 = vrot.lane.b32.xlu0 %v600, 56
        %v629 = vpop.permute.xlu0 %628
        %s631 = scalar_lea.vmem [#allocation2], 72
        %632 = vst.msk [vmem:[%s631] sm:$0xff] %vm605, %v629
        %633 = vrot.lane.b32.xlu0 %v600, 112
        %v634 = vpop.permute.xlu0 %633
        %s636 = scalar_lea.vmem [#allocation2], 16
        %637 = vst.msk [vmem:[%s636] sm:$0xff] %vm605, %v634
        %638 = vrot.lane.b32.xlu0 %v600, 80
        %v639 = vpop.permute.xlu0 %638
        %s641 = scalar_lea.vmem [#allocation2], 48
        %642 = vst.msk [vmem:[%s641] sm:$0xff] %vm605, %v639
        %643 = vrot.lane.b32.xlu0 %v600, 48
        %v644 = vpop.permute.xlu0 %643
        %s646 = scalar_lea.vmem [#allocation2], 80
        %647 = vst.msk [vmem:[%s646] sm:$0xff] %vm605, %v644
        %648 = vrot.lane.b32.xlu0 %v600, 104
        %v649 = vpop.permute.xlu0 %648
        %s651 = scalar_lea.vmem [#allocation2], 24
        %652 = vst.msk [vmem:[%s651] sm:$0xff] %vm605, %v649
        %653 = vrot.lane.b32.xlu0 %v600, 72
        %v654 = vpop.permute.xlu0 %653
        %s656 = scalar_lea.vmem [#allocation2], 56
        %657 = vst.msk [vmem:[%s656] sm:$0xff] %vm605, %v654
        %658 = vrot.lane.b32.xlu0 %v600, 40
        %v659 = vpop.permute.xlu0 %658
        %s661 = scalar_lea.vmem [#allocation2], 88
        %662 = vst.msk [vmem:[%s661] sm:$0xff] %vm605, %v659
        %v663 = vld [vmem:[#allocation2] sm:$0xff]
        %v664 = vld [vmem:[#allocation2 + $0x8] sm:$0xff]
        %v665 = vld [vmem:[#allocation2 + $0x10] sm:$0xff]
        %v666 = vld [vmem:[#allocation2 + $0x18] sm:$0xff]
        %v667 = vpack.c.bf16 %v663, %v663
        %v668 = vpack.c.bf16 %v664, %v664
        %v669 = vpack.c.bf16 %v665, %v665
        %v670 = vpack.c.bf16 %v666, %v666
        %v671 = vld [vmem:[%s611] sm:$0xff]
        %v672 = vld [vmem:[%s611 + $0x8] sm:$0xff]
        %v673 = vld [vmem:[%s611 + $0x10] sm:$0xff]
        %v674 = vld [vmem:[%s611 + $0x18] sm:$0xff]
        %v675 = vpack.c.bf16 %v671, %v671
        %v676 = vpack.c.bf16 %v672, %v672
        %v677 = vpack.c.bf16 %v673, %v673
        %v678 = vpack.c.bf16 %v674, %v674
        %v679 = vld [vmem:[%s616] sm:$0xff]
        %v680 = vld [vmem:[%s616 + $0x8] sm:$0xff]
        %v681 = vld [vmem:[%s616 + $0x10] sm:$0xff]
        %v682 = vld [vmem:[%s616 + $0x18] sm:$0xff]
        %v683 = vpack.c.bf16 %v679, %v679
        %v684 = vpack.c.bf16 %v680, %v680
        %v685 = vpack.c.bf16 %v681, %v681
        %v686 = vpack.c.bf16 %v682, %v682
        %v688 = vlaneseq
        %v689 = vshrl.u32 %v688, 7
        %v690 = vsub.s32 0, %v689
        %v691 = vrot.slane %v513, %v690
        %v694 = vsel %vm605, %v667, 0
        %v697 = vsel %vm605, %v675, 0
        %699 = vmatprep.subr.bf16.mxu0 0
        %700 = vmatpush1.bf16.xpose.msra.mxu0 0
        %701 = vmatprep.subr.bf16.mxu0 0
        %702 = vmatpush1.bf16.xpose.msra.mxu0 0
        %703 = vmatprep.subr.bf16.mxu0 0
        %704 = vmatpush1.bf16.xpose.msra.mxu0 0
        %705 = vmatprep.subr.bf16.mxu0 0
        %706 = vmatpush1.bf16.xpose.msra.mxu0 0
        %707 = vmatprep.subr.bf16.mxu0 0
        %708 = vmatpush1.bf16.xpose.msra.mxu0 0
        %709 = vmatprep.subr.bf16.mxu0 0
        %710 = vmatpush1.bf16.xpose.msra.mxu0 0
        %711 = vmatprep.subr.bf16.mxu0 0
        %712 = vmatpush1.bf16.xpose.msra.mxu0 0
        %713 = vmatprep.subr.bf16.mxu0 0
        %714 = vmatpush1.bf16.xpose.msra.mxu0 %v697
        %715 = vmatprep.subr.bf16.mxu0 0
        %716 = vmatpush2.bf16.xpose.msra.mxu0 0
        %717 = vmatprep.subr.bf16.mxu0 0
        %718 = vmatpush2.bf16.xpose.msra.mxu0 0
        %719 = vmatprep.subr.bf16.mxu0 0
        %720 = vmatpush2.bf16.xpose.msra.mxu0 0
        %721 = vmatprep.subr.bf16.mxu0 0
        %722 = vmatpush2.bf16.xpose.msra.mxu0 0
        %723 = vmatprep.subr.bf16.mxu0 0
        %724 = vmatpush2.bf16.xpose.msra.mxu0 0
        %725 = vmatprep.subr.bf16.mxu0 0
        %726 = vmatpush2.bf16.xpose.msra.mxu0 0
        %727 = vmatprep.subr.bf16.mxu0 0
        %728 = vmatpush2.bf16.xpose.msra.mxu0 0
        %729 = vmatprep.subr.bf16.mxu0 0
        %730 = vmatpush2.bf16.xpose.msra.mxu0 0
        %731 = vmatprep.mubr.bf16.mxu0 0
        %732 = vmatmul.mubr.bf16.gmra.mxu0 %v694
        %v733 = vpop.f32.mrf.mxu0
        %v734 = vadd.f32 %v691, %v733
        %v735 = vpop.f32.mrf.mxu0
        %v736 = vpop.f32.mrf.mxu0
        %v737 = vpop.f32.mrf.mxu0
        %738 = vdwg.mxu0
        %v740 = vsel %vm605, %v668, 0
        %v743 = vsel %vm605, %v676, 0
        %745 = vmatprep.subr.bf16.mxu0 0
        %746 = vmatpush1.bf16.xpose.msra.mxu0 0
        %747 = vmatprep.subr.bf16.mxu0 0
        %748 = vmatpush1.bf16.xpose.msra.mxu0 0
        %749 = vmatprep.subr.bf16.mxu0 0
        %750 = vmatpush1.bf16.xpose.msra.mxu0 0
        %751 = vmatprep.subr.bf16.mxu0 0
        %752 = vmatpush1.bf16.xpose.msra.mxu0 0
        %753 = vmatprep.subr.bf16.mxu0 0
        %754 = vmatpush1.bf16.xpose.msra.mxu0 0
        %755 = vmatprep.subr.bf16.mxu0 0
        %756 = vmatpush1.bf16.xpose.msra.mxu0 0
        %757 = vmatprep.subr.bf16.mxu0 0
        %758 = vmatpush1.bf16.xpose.msra.mxu0 0
        %759 = vmatprep.subr.bf16.mxu0 0
        %760 = vmatpush1.bf16.xpose.msra.mxu0 %v743
        %761 = vmatprep.subr.bf16.mxu0 0
        %762 = vmatpush2.bf16.xpose.msra.mxu0 0
        %763 = vmatprep.subr.bf16.mxu0 0
        %764 = vmatpush2.bf16.xpose.msra.mxu0 0
        %765 = vmatprep.subr.bf16.mxu0 0
        %766 = vmatpush2.bf16.xpose.msra.mxu0 0
        %767 = vmatprep.subr.bf16.mxu0 0
        %768 = vmatpush2.bf16.xpose.msra.mxu0 0
        %769 = vmatprep.subr.bf16.mxu0 0
        %770 = vmatpush2.bf16.xpose.msra.mxu0 0
        %771 = vmatprep.subr.bf16.mxu0 0
        %772 = vmatpush2.bf16.xpose.msra.mxu0 0
        %773 = vmatprep.subr.bf16.mxu0 0
        %774 = vmatpush2.bf16.xpose.msra.mxu0 0
        %775 = vmatprep.subr.bf16.mxu0 0
        %776 = vmatpush2.bf16.xpose.msra.mxu0 0
        %777 = vmatprep.mubr.bf16.mxu0 0
        %778 = vmatmul.mubr.bf16.gmra.mxu0 %v740
        %v779 = vpop.f32.mrf.mxu0
        %v780 = vadd.f32 %v691, %v779
        %v781 = vpop.f32.mrf.mxu0
        %v782 = vpop.f32.mrf.mxu0
        %v783 = vpop.f32.mrf.mxu0
        %784 = vdwg.mxu0
        %v786 = vsel %vm605, %v669, 0
        %v789 = vsel %vm605, %v677, 0
        %791 = vmatprep.subr.bf16.mxu0 0
        %792 = vmatpush1.bf16.xpose.msra.mxu0 0
        %793 = vmatprep.subr.bf16.mxu0 0
        %794 = vmatpush1.bf16.xpose.msra.mxu0 0
        %795 = vmatprep.subr.bf16.mxu0 0
        %796 = vmatpush1.bf16.xpose.msra.mxu0 0
        %797 = vmatprep.subr.bf16.mxu0 0
        %798 = vmatpush1.bf16.xpose.msra.mxu0 0
        %799 = vmatprep.subr.bf16.mxu0 0
        %800 = vmatpush1.bf16.xpose.msra.mxu0 0
        %801 = vmatprep.subr.bf16.mxu0 0
        %802 = vmatpush1.bf16.xpose.msra.mxu0 0
        %803 = vmatprep.subr.bf16.mxu0 0
        %804 = vmatpush1.bf16.xpose.msra.mxu0 0
        %805 = vmatprep.subr.bf16.mxu0 0
        %806 = vmatpush1.bf16.xpose.msra.mxu0 %v789
        %807 = vmatprep.subr.bf16.mxu0 0
        %808 = vmatpush2.bf16.xpose.msra.mxu0 0
        %809 = vmatprep.subr.bf16.mxu0 0
        %810 = vmatpush2.bf16.xpose.msra.mxu0 0
        %811 = vmatprep.subr.bf16.mxu0 0
        %812 = vmatpush2.bf16.xpose.msra.mxu0 0
        %813 = vmatprep.subr.bf16.mxu0 0
        %814 = vmatpush2.bf16.xpose.msra.mxu0 0
        %815 = vmatprep.subr.bf16.mxu0 0
        %816 = vmatpush2.bf16.xpose.msra.mxu0 0
        %817 = vmatprep.subr.bf16.mxu0 0
        %818 = vmatpush2.bf16.xpose.msra.mxu0 0
        %819 = vmatprep.subr.bf16.mxu0 0
        %820 = vmatpush2.bf16.xpose.msra.mxu0 0
        %821 = vmatprep.subr.bf16.mxu0 0
        %822 = vmatpush2.bf16.xpose.msra.mxu0 0
        %823 = vmatprep.mubr.bf16.mxu0 0
        %824 = vmatmul.mubr.bf16.gmra.mxu0 %v786
        %v825 = vpop.f32.mrf.mxu0
        %v826 = vadd.f32 %v691, %v825
        %v827 = vpop.f32.mrf.mxu0
        %v828 = vpop.f32.mrf.mxu0
        %v829 = vpop.f32.mrf.mxu0
        %830 = vdwg.mxu0
        %v832 = vsel %vm605, %v670, 0
        %v835 = vsel %vm605, %v678, 0
        %837 = vmatprep.subr.bf16.mxu0 0
        %838 = vmatpush1.bf16.xpose.msra.mxu0 0
        %839 = vmatprep.subr.bf16.mxu0 0
        %840 = vmatpush1.bf16.xpose.msra.mxu0 0
        %841 = vmatprep.subr.bf16.mxu0 0
        %842 = vmatpush1.bf16.xpose.msra.mxu0 0
        %843 = vmatprep.subr.bf16.mxu0 0
        %844 = vmatpush1.bf16.xpose.msra.mxu0 0
        %845 = vmatprep.subr.bf16.mxu0 0
        %846 = vmatpush1.bf16.xpose.msra.mxu0 0
        %847 = vmatprep.subr.bf16.mxu0 0
        %848 = vmatpush1.bf16.xpose.msra.mxu0 0
        %849 = vmatprep.subr.bf16.mxu0 0
        %850 = vmatpush1.bf16.xpose.msra.mxu0 0
        %851 = vmatprep.subr.bf16.mxu0 0
        %852 = vmatpush1.bf16.xpose.msra.mxu0 %v835
        %853 = vmatprep.subr.bf16.mxu0 0
        %854 = vmatpush2.bf16.xpose.msra.mxu0 0
        %855 = vmatprep.subr.bf16.mxu0 0
        %856 = vmatpush2.bf16.xpose.msra.mxu0 0
        %857 = vmatprep.subr.bf16.mxu0 0
        %858 = vmatpush2.bf16.xpose.msra.mxu0 0
        %859 = vmatprep.subr.bf16.mxu0 0
        %860 = vmatpush2.bf16.xpose.msra.mxu0 0
        %861 = vmatprep.subr.bf16.mxu0 0
        %862 = vmatpush2.bf16.xpose.msra.mxu0 0
        %863 = vmatprep.subr.bf16.mxu0 0
        %864 = vmatpush2.bf16.xpose.msra.mxu0 0
        %865 = vmatprep.subr.bf16.mxu0 0
        %866 = vmatpush2.bf16.xpose.msra.mxu0 0
        %867 = vmatprep.subr.bf16.mxu0 0
        %868 = vmatpush2.bf16.xpose.msra.mxu0 0
        %869 = vmatprep.mubr.bf16.mxu0 0
        %870 = vmatmul.mubr.bf16.gmra.mxu0 %v832
        %v871 = vpop.f32.mrf.mxu0
        %v872 = vadd.f32 %v691, %v871
        %v873 = vpop.f32.mrf.mxu0
        %v874 = vpop.f32.mrf.mxu0
        %v875 = vpop.f32.mrf.mxu0
        %876 = vdwg.mxu0
        %v877 = vsel %vm605, %v734, -inf
        %878 = vmax.xlane.f32.xlu0 %v877
        %v879 = vpop.xlane.xlu0 %878
        %v880 = vsel %vm605, %v780, -inf
        %881 = vmax.xlane.f32.xlu0 %v880
        %v882 = vpop.xlane.xlu0 %881
        %v883 = vsel %vm605, %v826, -inf
        %884 = vmax.xlane.f32.xlu0 %v883
        %v885 = vpop.xlane.xlu0 %884
        %v886 = vsel %vm605, %v872, -inf
        %887 = vmax.xlane.f32.xlu0 %v886
        %v888 = vpop.xlane.xlu0 %887
        %v889 = vsub.f32 %v734, %v879
        %v890 = vsub.f32 %v780, %v882
        %v891 = vsub.f32 %v826, %v885
        %v892 = vsub.f32 %v872, %v888
        %v893 = vmul.f32 %v889, 1.442695
        %v894 = vpow.pop %v893
        %v895 = vmul.f32 %v890, 1.442695
        %v896 = vpow.pop %v895
        %v897 = vmul.f32 %v891, 1.442695
        %v898 = vpow.pop %v897
        %v899 = vmul.f32 %v892, 1.442695
        %v900 = vpow.pop %v899
        %v901 = vsel %vm605, %v894, 0.0
        %902 = vadd.xlane.f32.xlu0 %v901
        %v903 = vpop.xlane.xlu0 %902
        %v904 = vsel %vm605, %v896, 0.0
        %905 = vadd.xlane.f32.xlu0 %v904
        %v906 = vpop.xlane.xlu0 %905
        %v907 = vsel %vm605, %v898, 0.0
        %908 = vadd.xlane.f32.xlu0 %v907
        %v909 = vpop.xlane.xlu0 %908
        %v910 = vsel %vm605, %v900, 0.0
        %911 = vadd.xlane.f32.xlu0 %v910
        %v912 = vpop.xlane.xlu0 %911
        %v913 = vrcp.pop %v903
        %v914 = vrcp.pop %v906
        %v915 = vrcp.pop %v909
        %v916 = vrcp.pop %v912
        %v917 = vmul.f32 %v894, %v913
        %v918 = vmul.f32 %v896, %v914
        %v919 = vmul.f32 %v898, %v915
        %v920 = vmul.f32 %v900, %v916
        %v921 = vpack.c.bf16 %v917, %v917
        %v922 = vpack.c.bf16 %v918, %v918
        %v923 = vpack.c.bf16 %v919, %v919
        %v924 = vpack.c.bf16 %v920, %v920
        %v926 = vsel %vm605, %v921, 0
        %vm928 = vcmask 1043456
        %v930 = vsel %vm928, %v683, 0
        %932 = vmatprep.subr.bf16.mxu0 0
        %933 = vmatpush1.bf16.msra.mxu0 0
        %934 = vmatprep.subr.bf16.mxu0 0
        %935 = vmatpush1.bf16.msra.mxu0 0
        %936 = vmatprep.subr.bf16.mxu0 0
        %937 = vmatpush1.bf16.msra.mxu0 0
        %938 = vmatprep.subr.bf16.mxu0 0
        %939 = vmatpush1.bf16.msra.mxu0 0
        %940 = vmatprep.subr.bf16.mxu0 0
        %941 = vmatpush1.bf16.msra.mxu0 0
        %942 = vmatprep.subr.bf16.mxu0 0
        %943 = vmatpush1.bf16.msra.mxu0 0
        %944 = vmatprep.subr.bf16.mxu0 0
        %945 = vmatpush1.bf16.msra.mxu0 0
        %946 = vmatprep.subr.bf16.mxu0 0
        %947 = vmatpush1.bf16.msra.mxu0 %v930
        %948 = vmatprep.subr.bf16.mxu0 0
        %949 = vmatpush2.bf16.msra.mxu0 0
        %950 = vmatprep.subr.bf16.mxu0 0
        %951 = vmatpush2.bf16.msra.mxu0 0
        %952 = vmatprep.subr.bf16.mxu0 0
        %953 = vmatpush2.bf16.msra.mxu0 0
        %954 = vmatprep.subr.bf16.mxu0 0
        %955 = vmatpush2.bf16.msra.mxu0 0
        %956 = vmatprep.subr.bf16.mxu0 0
        %957 = vmatpush2.bf16.msra.mxu0 0
        %958 = vmatprep.subr.bf16.mxu0 0
        %959 = vmatpush2.bf16.msra.mxu0 0
        %960 = vmatprep.subr.bf16.mxu0 0
        %961 = vmatpush2.bf16.msra.mxu0 0
        %962 = vmatprep.subr.bf16.mxu0 0
        %963 = vmatpush2.bf16.msra.mxu0 0
        %964 = vmatprep.mubr.bf16.mxu0 0
        %965 = vmatmul.mubr.bf16.gmra.mxu0 %v926
        %v966 = vpop.f32.mrf.mxu0
        %v967 = vadd.f32 0.0, %v966
        %v968 = vpop.f32.mrf.mxu0
        %v969 = vpop.f32.mrf.mxu0
        %v970 = vpop.f32.mrf.mxu0
        %971 = vdwg.mxu0
        %v973 = vsel %vm605, %v922, 0
        %v976 = vsel %vm928, %v684, 0
        %978 = vmatprep.subr.bf16.mxu0 0
        %979 = vmatpush1.bf16.msra.mxu0 0
        %980 = vmatprep.subr.bf16.mxu0 0
        %981 = vmatpush1.bf16.msra.mxu0 0
        %982 = vmatprep.subr.bf16.mxu0 0
        %983 = vmatpush1.bf16.msra.mxu0 0
        %984 = vmatprep.subr.bf16.mxu0 0
        %985 = vmatpush1.bf16.msra.mxu0 0
        %986 = vmatprep.subr.bf16.mxu0 0
        %987 = vmatpush1.bf16.msra.mxu0 0
        %988 = vmatprep.subr.bf16.mxu0 0
        %989 = vmatpush1.bf16.msra.mxu0 0
        %990 = vmatprep.subr.bf16.mxu0 0
        %991 = vmatpush1.bf16.msra.mxu0 0
        %992 = vmatprep.subr.bf16.mxu0 0
        %993 = vmatpush1.bf16.msra.mxu0 %v976
        %994 = vmatprep.subr.bf16.mxu0 0
        %995 = vmatpush2.bf16.msra.mxu0 0
        %996 = vmatprep.subr.bf16.mxu0 0
        %997 = vmatpush2.bf16.msra.mxu0 0
        %998 = vmatprep.subr.bf16.mxu0 0
        %999 = vmatpush2.bf16.msra.mxu0 0
        %1000 = vmatprep.subr.bf16.mxu0 0
        %1001 = vmatpush2.bf16.msra.mxu0 0
        %1002 = vmatprep.subr.bf16.mxu0 0
        %1003 = vmatpush2.bf16.msra.mxu0 0
        %1004 = vmatprep.subr.bf16.mxu0 0
        %1005 = vmatpush2.bf16.msra.mxu0 0
        %1006 = vmatprep.subr.bf16.mxu0 0
        %1007 = vmatpush2.bf16.msra.mxu0 0
        %1008 = vmatprep.subr.bf16.mxu0 0
        %1009 = vmatpush2.bf16.msra.mxu0 0
        %1010 = vmatprep.mubr.bf16.mxu0 0
        %1011 = vmatmul.mubr.bf16.gmra.mxu0 %v973
        %v1012 = vpop.f32.mrf.mxu0
        %v1013 = vadd.f32 0.0, %v1012
        %v1014 = vpop.f32.mrf.mxu0
        %v1015 = vpop.f32.mrf.mxu0
        %v1016 = vpop.f32.mrf.mxu0
        %1017 = vdwg.mxu0
        %v1019 = vsel %vm605, %v923, 0
        %v1022 = vsel %vm928, %v685, 0
        %1024 = vmatprep.subr.bf16.mxu0 0
        %1025 = vmatpush1.bf16.msra.mxu0 0
        %1026 = vmatprep.subr.bf16.mxu0 0
        %1027 = vmatpush1.bf16.msra.mxu0 0
        %1028 = vmatprep.subr.bf16.mxu0 0
        %1029 = vmatpush1.bf16.msra.mxu0 0
        %1030 = vmatprep.subr.bf16.mxu0 0
        %1031 = vmatpush1.bf16.msra.mxu0 0
        %1032 = vmatprep.subr.bf16.mxu0 0
        %1033 = vmatpush1.bf16.msra.mxu0 0
        %1034 = vmatprep.subr.bf16.mxu0 0
        %1035 = vmatpush1.bf16.msra.mxu0 0
        %1036 = vmatprep.subr.bf16.mxu0 0
        %1037 = vmatpush1.bf16.msra.mxu0 0
        %1038 = vmatprep.subr.bf16.mxu0 0
        %1039 = vmatpush1.bf16.msra.mxu0 %v1022
        %1040 = vmatprep.subr.bf16.mxu0 0
        %1041 = vmatpush2.bf16.msra.mxu0 0
        %1042 = vmatprep.subr.bf16.mxu0 0
        %1043 = vmatpush2.bf16.msra.mxu0 0
        %1044 = vmatprep.subr.bf16.mxu0 0
        %1045 = vmatpush2.bf16.msra.mxu0 0
        %1046 = vmatprep.subr.bf16.mxu0 0
        %1047 = vmatpush2.bf16.msra.mxu0 0
        %1048 = vmatprep.subr.bf16.mxu0 0
        %1049 = vmatpush2.bf16.msra.mxu0 0
        %1050 = vmatprep.subr.bf16.mxu0 0
        %1051 = vmatpush2.bf16.msra.mxu0 0
        %1052 = vmatprep.subr.bf16.mxu0 0
        %1053 = vmatpush2.bf16.msra.mxu0 0
        %1054 = vmatprep.subr.bf16.mxu0 0
        %1055 = vmatpush2.bf16.msra.mxu0 0
        %1056 = vmatprep.mubr.bf16.mxu0 0
        %1057 = vmatmul.mubr.bf16.gmra.mxu0 %v1019
        %v1058 = vpop.f32.mrf.mxu0
        %v1059 = vadd.f32 0.0, %v1058
        %v1060 = vpop.f32.mrf.mxu0
        %v1061 = vpop.f32.mrf.mxu0
        %v1062 = vpop.f32.mrf.mxu0
        %1063 = vdwg.mxu0
        %v1065 = vsel %vm605, %v924, 0
        %v1068 = vsel %vm928, %v686, 0
        %1070 = vmatprep.subr.bf16.mxu0 0
        %1071 = vmatpush1.bf16.msra.mxu0 0
        %1072 = vmatprep.subr.bf16.mxu0 0
        %1073 = vmatpush1.bf16.msra.mxu0 0
        %1074 = vmatprep.subr.bf16.mxu0 0
        %1075 = vmatpush1.bf16.msra.mxu0 0
        %1076 = vmatprep.subr.bf16.mxu0 0
        %1077 = vmatpush1.bf16.msra.mxu0 0
        %1078 = vmatprep.subr.bf16.mxu0 0
        %1079 = vmatpush1.bf16.msra.mxu0 0
        %1080 = vmatprep.subr.bf16.mxu0 0
        %1081 = vmatpush1.bf16.msra.mxu0 0
        %1082 = vmatprep.subr.bf16.mxu0 0
        %1083 = vmatpush1.bf16.msra.mxu0 0
        %1084 = vmatprep.subr.bf16.mxu0 0
        %1085 = vmatpush1.bf16.msra.mxu0 %v1068
        %1086 = vmatprep.subr.bf16.mxu0 0
        %1087 = vmatpush2.bf16.msra.mxu0 0
        %1088 = vmatprep.subr.bf16.mxu0 0
        %1089 = vmatpush2.bf16.msra.mxu0 0
        %1090 = vmatprep.subr.bf16.mxu0 0
        %1091 = vmatpush2.bf16.msra.mxu0 0
        %1092 = vmatprep.subr.bf16.mxu0 0
        %1093 = vmatpush2.bf16.msra.mxu0 0
        %1094 = vmatprep.subr.bf16.mxu0 0
        %1095 = vmatpush2.bf16.msra.mxu0 0
        %1096 = vmatprep.subr.bf16.mxu0 0
        %1097 = vmatpush2.bf16.msra.mxu0 0
        %1098 = vmatprep.subr.bf16.mxu0 0
        %1099 = vmatpush2.bf16.msra.mxu0 0
        %1100 = vmatprep.subr.bf16.mxu0 0
        %1101 = vmatpush2.bf16.msra.mxu0 0
        %1102 = vmatprep.mubr.bf16.mxu0 0
        %1103 = vmatmul.mubr.bf16.gmra.mxu0 %v1065
        %v1104 = vpop.f32.mrf.mxu0
        %v1105 = vadd.f32 0.0, %v1104
        %v1106 = vpop.f32.mrf.mxu0
        %v1107 = vpop.f32.mrf.mxu0
        %v1108 = vpop.f32.mrf.mxu0
        %1109 = vdwg.mxu0
        %1110 = vst.msk [vmem:[#allocation3] sm:$0xff] %vm605, %v967
        %1112 = vrot.lane.b32.xlu0 %v1013, 8
        %v1113 = vpop.permute.xlu0 %1112
        %vm1115 = vcmask 130112
        %1116 = vst.msk [vmem:[#allocation3] sm:$0xff] %vm1115, %v1113
        %1118 = vrot.lane.b32.xlu0 %v1059, 16
        %v1119 = vpop.permute.xlu0 %1118
        %vm1121 = vcmask 195712
        %1122 = vst.msk [vmem:[#allocation3] sm:$0xff] %vm1121, %v1119
        %1124 = vrot.lane.b32.xlu0 %v1105, 24
        %v1125 = vpop.permute.xlu0 %1124
        %vm1127 = vcmask 261312
        %1128 = vst.msk [vmem:[#allocation3] sm:$0xff] %vm1127, %v1125
        %v1129 = vld [vmem:[#allocation3] sm:$0xff]
        %v1130 = vpack.c.bf16 %v1129, %v1129
        %v1131 = vld [vmem:[%s4] sm:$0xf]
        %v1132 = vld [vmem:[%s4 + $0x4] sm:$0xf]
        %v1133 = vld [vmem:[%s4 + $0x8] sm:$0xf]
        %v1134 = vld [vmem:[%s4 + $0xc] sm:$0xf]
        %v1135 = vlaneseq
        %v1136 = vshrl.u32 %v1135, 7
        %v1137 = vsub.s32 2, %v1136
        %v1138 = vrot.slane %v540, %v1137
        %v1143 = vunpack.c.l.b16 %v1131
        %v1144 = vunpack.c.l.b16 %v1132
        %v1145 = vunpack.c.l.b16 %v1133
        %v1146 = vunpack.c.l.b16 %v1134
        %v1147 = vpack.c.b16 %v1144, %v1143
        %v1148 = vpack.c.b16 %v1146, %v1145
        %v1152 = vsel %vm515, %v1130, 0
        %1154 = vmatprep.subr.bf16.mxu0 0
        %1155 = vmatpush1.bf16.msra.mxu0 0
        %1156 = vmatprep.subr.bf16.mxu0 0
        %1157 = vmatpush1.bf16.msra.mxu0 0
        %1158 = vmatprep.subr.bf16.mxu0 0
        %1159 = vmatpush1.bf16.msra.mxu0 0
        %1160 = vmatprep.subr.bf16.mxu0 0
        %1161 = vmatpush1.bf16.msra.mxu0 0
        %1162 = vmatprep.subr.bf16.mxu0 0
        %1163 = vmatpush1.bf16.msra.mxu0 0
        %1164 = vmatprep.subr.bf16.mxu0 0
        %1165 = vmatpush1.bf16.msra.mxu0 0
        %1166 = vmatprep.subr.bf16.mxu0 0
        %1167 = vmatpush1.bf16.msra.mxu0 %v1148
        %1168 = vmatprep.subr.bf16.mxu0 0
        %1169 = vmatpush1.bf16.msra.mxu0 %v1147
        %1170 = vmatprep.subr.bf16.mxu0 0
        %1171 = vmatpush2.bf16.msra.mxu0 0
        %1172 = vmatprep.subr.bf16.mxu0 0
        %1173 = vmatpush2.bf16.msra.mxu0 0
        %1174 = vmatprep.subr.bf16.mxu0 0
        %1175 = vmatpush2.bf16.msra.mxu0 0
        %1176 = vmatprep.subr.bf16.mxu0 0
        %1177 = vmatpush2.bf16.msra.mxu0 0
        %1178 = vmatprep.subr.bf16.mxu0 0
        %1179 = vmatpush2.bf16.msra.mxu0 0
        %1180 = vmatprep.subr.bf16.mxu0 0
        %1181 = vmatpush2.bf16.msra.mxu0 0
        %1182 = vmatprep.subr.bf16.mxu0 0
        %1183 = vmatpush2.bf16.msra.mxu0 0
        %1184 = vmatprep.subr.bf16.mxu0 0
        %1185 = vmatpush2.bf16.msra.mxu0 0
        %1186 = vmatprep.mubr.bf16.mxu0 0
        %1187 = vmatmul.mubr.bf16.gmra.mxu0 %v1152
        %v1188 = vpop.f32.mrf.mxu0
        %v1189 = vadd.f32 %v1138, %v1188
        %v1190 = vpop.f32.mrf.mxu0
        %v1191 = vpop.f32.mrf.mxu0
        %v1192 = vpop.f32.mrf.mxu0
        %1193 = vdwg.mxu0
        %v1194 = vadd.f32 %v539, %v1189
        %v1195 = vsel %vm515, %v1194, 0.0
        %1196 = vadd.xlane.f32.xlu0 %v1195
        %v1197 = vpop.xlane.xlu0 %1196
        %v1198 = vmul.f32 %v1197, %v519
        %v1199 = vsub.f32 %v1194, %v1198
        %v1200 = vmul.f32 %v1199, %v1199
        %v1201 = vsel %vm515, %v1200, 0.0
        %1202 = vadd.xlane.f32.xlu0 %v1201
        %v1203 = vpop.xlane.xlu0 %1202
        %v1204 = vmul.f32 %v1203, %v519
        %v1205 = vadd.f32 %v1204, 1e-12
        %v1206 = vrsqrt.pop %v1205
        %v1207 = vmul.f32 %v1199, %v1206
        %v1208 = vlaneseq
        %v1209 = vshrl.u32 %v1208, 7
        %v1210 = vsub.s32 3, %v1209
        %v1211 = vrot.slane %v540, %v1210
        %v1212 = vmul.f32 %v1207, %v1211
        %v1213 = vlaneseq
        %v1214 = vshrl.u32 %v1213, 7
        %v1215 = vsub.s32 4, %v1214
        %v1216 = vrot.slane %v540, %v1215
        %v1217 = vadd.f32 %v1212, %v1216
        %v1218 = vpack.c.bf16 %v1217, %v1217
        %v1219 = vld [vmem:[%s5] sm:$0xf]
        %v1220 = vld [vmem:[%s5 + $0x4] sm:$0xf]
        %v1221 = vld [vmem:[%s5 + $0x8] sm:$0xf]
        %v1222 = vld [vmem:[%s5 + $0xc] sm:$0xf]
        %v1223 = vlaneseq
        %v1224 = vshrl.u32 %v1223, 7
        %v1225 = vsub.s32 1, %v1224
        %v1226 = vrot.slane %v540, %v1225
        %v1231 = vunpack.c.l.b16 %v1219
        %v1232 = vunpack.c.l.b16 %v1220
        %v1233 = vunpack.c.l.b16 %v1221
        %v1234 = vunpack.c.l.b16 %v1222
        %v1235 = vpack.c.b16 %v1232, %v1231
        %v1236 = vpack.c.b16 %v1234, %v1233
        %v1240 = vsel %vm515, %v1218, 0
        %1242 = vmatprep.subr.bf16.mxu0 0
        %1243 = vmatpush1.bf16.msra.mxu0 0
        %1244 = vmatprep.subr.bf16.mxu0 0
        %1245 = vmatpush1.bf16.msra.mxu0 0
        %1246 = vmatprep.subr.bf16.mxu0 0
        %1247 = vmatpush1.bf16.msra.mxu0 0
        %1248 = vmatprep.subr.bf16.mxu0 0
        %1249 = vmatpush1.bf16.msra.mxu0 0
        %1250 = vmatprep.subr.bf16.mxu0 0
        %1251 = vmatpush1.bf16.msra.mxu0 0
        %1252 = vmatprep.subr.bf16.mxu0 0
        %1253 = vmatpush1.bf16.msra.mxu0 0
        %1254 = vmatprep.subr.bf16.mxu0 0
        %1255 = vmatpush1.bf16.msra.mxu0 %v1236
        %1256 = vmatprep.subr.bf16.mxu0 0
        %1257 = vmatpush1.bf16.msra.mxu0 %v1235
        %1258 = vmatprep.subr.bf16.mxu0 0
        %1259 = vmatpush2.bf16.msra.mxu0 0
        %1260 = vmatprep.subr.bf16.mxu0 0
        %1261 = vmatpush2.bf16.msra.mxu0 0
        %1262 = vmatprep.subr.bf16.mxu0 0
        %1263 = vmatpush2.bf16.msra.mxu0 0
        %1264 = vmatprep.subr.bf16.mxu0 0
        %1265 = vmatpush2.bf16.msra.mxu0 0
        %1266 = vmatprep.subr.bf16.mxu0 0
        %1267 = vmatpush2.bf16.msra.mxu0 0
        %1268 = vmatprep.subr.bf16.mxu0 0
        %1269 = vmatpush2.bf16.msra.mxu0 0
        %1270 = vmatprep.subr.bf16.mxu0 0
        %1271 = vmatpush2.bf16.msra.mxu0 0
        %1272 = vmatprep.subr.bf16.mxu0 0
        %1273 = vmatpush2.bf16.msra.mxu0 0
        %1274 = vmatprep.mubr.bf16.mxu0 0
        %1275 = vmatmul.mubr.bf16.gmra.mxu0 %v1240
        %v1276 = vpop.f32.mrf.mxu0
        %v1277 = vadd.f32 %v1226, %v1276
        %v1278 = vpop.f32.mrf.mxu0
        %v1279 = vpop.f32.mrf.mxu0
        %v1280 = vpop.f32.mrf.mxu0
        %1281 = vdwg.mxu0
        %v1282 = vmul.f32 %v1277, 0.5
        %v1283 = vmul.f32 %v1277, 0.044715
        %v1284 = vmul.f32 %v1283, %v1277
        %v1285 = vmul.f32 %v1284, %v1277
        %v1286 = vadd.f32 %v1277, %v1285
        %v1287 = vmul.f32 %v1286, 0.7978846
        %v1288 = vtanh.pop %v1287
        %v1289 = vadd.f32 %v1288, 1.0
        %v1290 = vmul.f32 %v1282, %v1289
        %v1291 = vpack.c.bf16 %v1290, %v1290
        %v1292 = vld [vmem:[%s6] sm:$0xf]
        %v1293 = vld [vmem:[%s6 + $0x4] sm:$0xf]
        %v1294 = vld [vmem:[%s6 + $0x8] sm:$0xf]
        %v1295 = vld [vmem:[%s6 + $0xc] sm:$0xf]
        %v1296 = vld [vmem:[%s6 + $0x10] sm:$0xf]
        %v1297 = vld [vmem:[%s6 + $0x14] sm:$0xf]
        %v1298 = vld [vmem:[%s6 + $0x18] sm:$0xf]
        %v1299 = vld [vmem:[%s6 + $0x1c] sm:$0xf]
        %v1300 = vlaneseq
        %v1301 = vshrl.u32 %v1300, 7
        %v1302 = vsub.s32 5, %v1301
        %v1303 = vrot.slane %v540, %v1302
        %v1312 = vunpack.c.l.b16 %v1292
        %v1313 = vunpack.c.l.b16 %v1293
        %v1314 = vunpack.c.l.b16 %v1294
        %v1315 = vunpack.c.l.b16 %v1295
        %v1316 = vunpack.c.l.b16 %v1296
        %v1317 = vunpack.c.l.b16 %v1297
        %v1318 = vunpack.c.l.b16 %v1298
        %v1319 = vunpack.c.l.b16 %v1299
        %v1320 = vpack.c.b16 %v1313, %v1312
        %v1321 = vpack.c.b16 %v1315, %v1314
        %v1322 = vpack.c.b16 %v1317, %v1316
        %v1323 = vpack.c.b16 %v1319, %v1318
        %vm1328 = vcmask 523264
        %v1330 = vsel %vm1328, %v1291, 0
        %1332 = vmatprep.subr.bf16.mxu0 0
        %1333 = vmatpush1.bf16.msra.mxu0 0
        %1334 = vmatprep.subr.bf16.mxu0 0
        %1335 = vmatpush1.bf16.msra.mxu0 0
        %1336 = vmatprep.subr.bf16.mxu0 0
        %1337 = vmatpush1.bf16.msra.mxu0 0
        %1338 = vmatprep.subr.bf16.mxu0 0
        %1339 = vmatpush1.bf16.msra.mxu0 0
        %1340 = vmatprep.subr.bf16.mxu0 0
        %1341 = vmatpush1.bf16.msra.mxu0 %v1323
        %1342 = vmatprep.subr.bf16.mxu0 0
        %1343 = vmatpush1.bf16.msra.mxu0 %v1322
        %1344 = vmatprep.subr.bf16.mxu0 0
        %1345 = vmatpush1.bf16.msra.mxu0 %v1321
        %1346 = vmatprep.subr.bf16.mxu0 0
        %1347 = vmatpush1.bf16.msra.mxu0 %v1320
        %1348 = vmatprep.subr.bf16.mxu0 0
        %1349 = vmatpush2.bf16.msra.mxu0 0
        %1350 = vmatprep.subr.bf16.mxu0 0
        %1351 = vmatpush2.bf16.msra.mxu0 0
        %1352 = vmatprep.subr.bf16.mxu0 0
        %1353 = vmatpush2.bf16.msra.mxu0 0
        %1354 = vmatprep.subr.bf16.mxu0 0
        %1355 = vmatpush2.bf16.msra.mxu0 0
        %1356 = vmatprep.subr.bf16.mxu0 0
        %1357 = vmatpush2.bf16.msra.mxu0 0
        %1358 = vmatprep.subr.bf16.mxu0 0
        %1359 = vmatpush2.bf16.msra.mxu0 0
        %1360 = vmatprep.subr.bf16.mxu0 0
        %1361 = vmatpush2.bf16.msra.mxu0 0
        %1362 = vmatprep.subr.bf16.mxu0 0
        %1363 = vmatpush2.bf16.msra.mxu0 0
        %1364 = vmatprep.mubr.bf16.mxu0 0
        %1365 = vmatmul.mubr.bf16.gmra.mxu0 %v1330
        %v1366 = vpop.f32.mrf.mxu0
        %v1367 = vadd.f32 %v1303, %v1366
        %v1368 = vpop.f32.mrf.mxu0
        %v1369 = vpop.f32.mrf.mxu0
        %v1370 = vpop.f32.mrf.mxu0
        %1371 = vdwg.mxu0
        %v1372 = vadd.f32 %v1217, %v1367
        %v1373 = vsel %vm515, %v1372, 0.0
        %1374 = vadd.xlane.f32.xlu0 %v1373
        %v1375 = vpop.xlane.xlu0 %1374
        %v1376 = vmul.f32 %v1375, %v519
        %v1377 = vsub.f32 %v1372, %v1376
        %v1378 = vmul.f32 %v1377, %v1377
        %v1379 = vsel %vm515, %v1378, 0.0
        %1380 = vadd.xlane.f32.xlu0 %v1379
        %v1381 = vpop.xlane.xlu0 %1380
        %v1382 = vmul.f32 %v1381, %v519
        %v1383 = vadd.f32 %v1382, 1e-12
        %v1384 = vrsqrt.pop %v1383
        %v1385 = vmul.f32 %v1377, %v1384
        %v1386 = vlaneseq
        %v1387 = vshrl.u32 %v1386, 7
        %v1388 = vsub.s32 6, %v1387
        %v1389 = vrot.slane %v540, %v1388
        %v1390 = vmul.f32 %v1385, %v1389
        %v1391 = vlaneseq
        %v1392 = vshrl.u32 %v1391, 7
        %v1393 = vsub.s32 7, %v1392
        %v1394 = vrot.slane %v540, %v1393
        %v1395 = vadd.f32 %v1390, %v1394
        %s1396 = scalar_lea.vmem [#allocation10], 8
        %v1397 = vld [vmem:[%s1396] sm:$0xff]
        %v1398 = vpack.c.bf16 %v1395, %v1395
        %s1399 = scalar_lea.vmem %s3, 16
        %v1400 = vld [vmem:[%s1399] sm:$0xf]
        %v1401 = vld [vmem:[%s1399 + $0x4] sm:$0xf]
        %v1402 = vld [vmem:[%s1399 + $0x8] sm:$0xf]
        %v1403 = vld [vmem:[%s1399 + $0xc] sm:$0xf]
        %v1404 = vlaneseq
        %v1405 = vshrl.u32 %v1404, 7
        %v1406 = vsub.s32 0, %v1405
        %v1407 = vrot.slane %v1397, %v1406
        %v1412 = vunpack.c.l.b16 %v1400
        %v1413 = vunpack.c.l.b16 %v1401
        %v1414 = vunpack.c.l.b16 %v1402
        %v1415 = vunpack.c.l.b16 %v1403
        %v1416 = vpack.c.b16 %v1413, %v1412
        %v1417 = vpack.c.b16 %v1415, %v1414
        %v1421 = vsel %vm515, %v1398, 0
        %1423 = vmatprep.subr.bf16.mxu0 0
        %1424 = vmatpush1.bf16.msra.mxu0 0
        %1425 = vmatprep.subr.bf16.mxu0 0
        %1426 = vmatpush1.bf16.msra.mxu0 0
        %1427 = vmatprep.subr.bf16.mxu0 0
        %1428 = vmatpush1.bf16.msra.mxu0 0
        %1429 = vmatprep.subr.bf16.mxu0 0
        %1430 = vmatpush1.bf16.msra.mxu0 0
        %1431 = vmatprep.subr.bf16.mxu0 0
        %1432 = vmatpush1.bf16.msra.mxu0 0
        %1433 = vmatprep.subr.bf16.mxu0 0
        %1434 = vmatpush1.bf16.msra.mxu0 0
        %1435 = vmatprep.subr.bf16.mxu0 0
        %1436 = vmatpush1.bf16.msra.mxu0 %v1417
        %1437 = vmatprep.subr.bf16.mxu0 0
        %1438 = vmatpush1.bf16.msra.mxu0 %v1416
        %1439 = vmatprep.subr.bf16.mxu0 0
        %1440 = vmatpush2.bf16.msra.mxu0 0
        %1441 = vmatprep.subr.bf16.mxu0 0
        %1442 = vmatpush2.bf16.msra.mxu0 0
        %1443 = vmatprep.subr.bf16.mxu0 0
        %1444 = vmatpush2.bf16.msra.mxu0 0
        %1445 = vmatprep.subr.bf16.mxu0 0
        %1446 = vmatpush2.bf16.msra.mxu0 0
        %1447 = vmatprep.subr.bf16.mxu0 0
        %1448 = vmatpush2.bf16.msra.mxu0 0
        %1449 = vmatprep.subr.bf16.mxu0 0
        %1450 = vmatpush2.bf16.msra.mxu0 0
        %1451 = vmatprep.subr.bf16.mxu0 0
        %1452 = vmatpush2.bf16.msra.mxu0 0
        %1453 = vmatprep.subr.bf16.mxu0 0
        %1454 = vmatpush2.bf16.msra.mxu0 0
        %1455 = vmatprep.mubr.bf16.mxu0 0
        %1456 = vmatmul.mubr.bf16.gmra.mxu0 %v1421
        %v1457 = vpop.f32.mrf.mxu0
        %v1458 = vadd.f32 %v1407, %v1457
        %v1459 = vpop.f32.mrf.mxu0
        %v1460 = vpop.f32.mrf.mxu0
        %v1461 = vpop.f32.mrf.mxu0
        %1462 = vdwg.mxu0
        %1463 = vst.msk [vmem:[#allocation2] sm:$0xff] %vm605, %v1458
        %1465 = vrot.lane.b32.xlu0 %v1458, 96
        %v1466 = vpop.permute.xlu0 %1465
        %1468 = vst.msk [vmem:[%s611] sm:$0xff] %vm605, %v1466
        %1469 = vrot.lane.b32.xlu0 %v1458, 64
        %v1470 = vpop.permute.xlu0 %1469
        %1472 = vst.msk [vmem:[%s616] sm:$0xff] %vm605, %v1470
        %1473 = vrot.lane.b32.xlu0 %v1458, 120
        %v1474 = vpop.permute.xlu0 %1473
        %1476 = vst.msk [vmem:[%s621] sm:$0xff] %vm605, %v1474
        %1477 = vrot.lane.b32.xlu0 %v1458, 88
        %v1478 = vpop.permute.xlu0 %1477
        %1480 = vst.msk [vmem:[%s626] sm:$0xff] %vm605, %v1478
        %1481 = vrot.lane.b32.xlu0 %v1458, 56
        %v1482 = vpop.permute.xlu0 %1481
        %1484 = vst.msk [vmem:[%s631] sm:$0xff] %vm605, %v1482
        %1485 = vrot.lane.b32.xlu0 %v1458, 112
        %v1486 = vpop.permute.xlu0 %1485
        %1488 = vst.msk [vmem:[%s636] sm:$0xff] %vm605, %v1486
        %1489 = vrot.lane.b32.xlu0 %v1458, 80
        %v1490 = vpop.permute.xlu0 %1489
        %1492 = vst.msk [vmem:[%s641] sm:$0xff] %vm605, %v1490
        %1493 = vrot.lane.b32.xlu0 %v1458, 48
        %v1494 = vpop.permute.xlu0 %1493
        %1496 = vst.msk [vmem:[%s646] sm:$0xff] %vm605, %v1494
        %1497 = vrot.lane.b32.xlu0 %v1458, 104
        %v1498 = vpop.permute.xlu0 %1497
        %1500 = vst.msk [vmem:[%s651] sm:$0xff] %vm605, %v1498
        %1501 = vrot.lane.b32.xlu0 %v1458, 72
        %v1502 = vpop.permute.xlu0 %1501
        %1504 = vst.msk [vmem:[%s656] sm:$0xff] %vm605, %v1502
        %1505 = vrot.lane.b32.xlu0 %v1458, 40
        %v1506 = vpop.permute.xlu0 %1505
        %1508 = vst.msk [vmem:[%s661] sm:$0xff] %vm605, %v1506
        %v1509 = vld [vmem:[#allocation2] sm:$0xff]
        %v1510 = vld [vmem:[#allocation2 + $0x8] sm:$0xff]
        %v1511 = vld [vmem:[#allocation2 + $0x10] sm:$0xff]
        %v1512 = vld [vmem:[#allocation2 + $0x18] sm:$0xff]
        %v1513 = vpack.c.bf16 %v1509, %v1509
        %v1514 = vpack.c.bf16 %v1510, %v1510
        %v1515 = vpack.c.bf16 %v1511, %v1511
        %v1516 = vpack.c.bf16 %v1512, %v1512
        %v1517 = vld [vmem:[%s611] sm:$0xff]
        %v1518 = vld [vmem:[%s611 + $0x8] sm:$0xff]
        %v1519 = vld [vmem:[%s611 + $0x10] sm:$0xff]
        %v1520 = vld [vmem:[%s611 + $0x18] sm:$0xff]
        %v1521 = vpack.c.bf16 %v1517, %v1517
        %v1522 = vpack.c.bf16 %v1518, %v1518
        %v1523 = vpack.c.bf16 %v1519, %v1519
        %v1524 = vpack.c.bf16 %v1520, %v1520
        %v1525 = vld [vmem:[%s616] sm:$0xff]
        %v1526 = vld [vmem:[%s616 + $0x8] sm:$0xff]
        %v1527 = vld [vmem:[%s616 + $0x10] sm:$0xff]
        %v1528 = vld [vmem:[%s616 + $0x18] sm:$0xff]
        %v1529 = vpack.c.bf16 %v1525, %v1525
        %v1530 = vpack.c.bf16 %v1526, %v1526
        %v1531 = vpack.c.bf16 %v1527, %v1527
        %v1532 = vpack.c.bf16 %v1528, %v1528
        %v1534 = vsel %vm605, %v1513, 0
        %v1537 = vsel %vm605, %v1521, 0
        %1539 = vmatprep.subr.bf16.mxu0 0
        %1540 = vmatpush1.bf16.xpose.msra.mxu0 0
        %1541 = vmatprep.subr.bf16.mxu0 0
        %1542 = vmatpush1.bf16.xpose.msra.mxu0 0
        %1543 = vmatprep.subr.bf16.mxu0 0
        %1544 = vmatpush1.bf16.xpose.msra.mxu0 0
        %1545 = vmatprep.subr.bf16.mxu0 0
        %1546 = vmatpush1.bf16.xpose.msra.mxu0 0
        %1547 = vmatprep.subr.bf16.mxu0 0
        %1548 = vmatpush1.bf16.xpose.msra.mxu0 0
        %1549 = vmatprep.subr.bf16.mxu0 0
        %1550 = vmatpush1.bf16.xpose.msra.mxu0 0
        %1551 = vmatprep.subr.bf16.mxu0 0
        %1552 = vmatpush1.bf16.xpose.msra.mxu0 0
        %1553 = vmatprep.subr.bf16.mxu0 0
        %1554 = vmatpush1.bf16.xpose.msra.mxu0 %v1537
        %1555 = vmatprep.subr.bf16.mxu0 0
        %1556 = vmatpush2.bf16.xpose.msra.mxu0 0
        %1557 = vmatprep.subr.bf16.mxu0 0
        %1558 = vmatpush2.bf16.xpose.msra.mxu0 0
        %1559 = vmatprep.subr.bf16.mxu0 0
        %1560 = vmatpush2.bf16.xpose.msra.mxu0 0
        %1561 = vmatprep.subr.bf16.mxu0 0
        %1562 = vmatpush2.bf16.xpose.msra.mxu0 0
        %1563 = vmatprep.subr.bf16.mxu0 0
        %1564 = vmatpush2.bf16.xpose.msra.mxu0 0
        %1565 = vmatprep.subr.bf16.mxu0 0
        %1566 = vmatpush2.bf16.xpose.msra.mxu0 0
        %1567 = vmatprep.subr.bf16.mxu0 0
        %1568 = vmatpush2.bf16.xpose.msra.mxu0 0
        %1569 = vmatprep.subr.bf16.mxu0 0
        %1570 = vmatpush2.bf16.xpose.msra.mxu0 0
        %1571 = vmatprep.mubr.bf16.mxu0 0
        %1572 = vmatmul.mubr.bf16.gmra.mxu0 %v1534
        %v1573 = vpop.f32.mrf.mxu0
        %v1574 = vadd.f32 %v691, %v1573
        %v1575 = vpop.f32.mrf.mxu0
        %v1576 = vpop.f32.mrf.mxu0
        %v1577 = vpop.f32.mrf.mxu0
        %1578 = vdwg.mxu0
        %v1580 = vsel %vm605, %v1514, 0
        %v1583 = vsel %vm605, %v1522, 0
        %1585 = vmatprep.subr.bf16.mxu0 0
        %1586 = vmatpush1.bf16.xpose.msra.mxu0 0
        %1587 = vmatprep.subr.bf16.mxu0 0
        %1588 = vmatpush1.bf16.xpose.msra.mxu0 0
        %1589 = vmatprep.subr.bf16.mxu0 0
        %1590 = vmatpush1.bf16.xpose.msra.mxu0 0
        %1591 = vmatprep.subr.bf16.mxu0 0
        %1592 = vmatpush1.bf16.xpose.msra.mxu0 0
        %1593 = vmatprep.subr.bf16.mxu0 0
        %1594 = vmatpush1.bf16.xpose.msra.mxu0 0
        %1595 = vmatprep.subr.bf16.mxu0 0
        %1596 = vmatpush1.bf16.xpose.msra.mxu0 0
        %1597 = vmatprep.subr.bf16.mxu0 0
        %1598 = vmatpush1.bf16.xpose.msra.mxu0 0
        %1599 = vmatprep.subr.bf16.mxu0 0
        %1600 = vmatpush1.bf16.xpose.msra.mxu0 %v1583
        %1601 = vmatprep.subr.bf16.mxu0 0
        %1602 = vmatpush2.bf16.xpose.msra.mxu0 0
        %1603 = vmatprep.subr.bf16.mxu0 0
        %1604 = vmatpush2.bf16.xpose.msra.mxu0 0
        %1605 = vmatprep.subr.bf16.mxu0 0
        %1606 = vmatpush2.bf16.xpose.msra.mxu0 0
        %1607 = vmatprep.subr.bf16.mxu0 0
        %1608 = vmatpush2.bf16.xpose.msra.mxu0 0
        %1609 = vmatprep.subr.bf16.mxu0 0
        %1610 = vmatpush2.bf16.xpose.msra.mxu0 0
        %1611 = vmatprep.subr.bf16.mxu0 0
        %1612 = vmatpush2.bf16.xpose.msra.mxu0 0
        %1613 = vmatprep.subr.bf16.mxu0 0
        %1614 = vmatpush2.bf16.xpose.msra.mxu0 0
        %1615 = vmatprep.subr.bf16.mxu0 0
        %1616 = vmatpush2.bf16.xpose.msra.mxu0 0
        %1617 = vmatprep.mubr.bf16.mxu0 0
        %1618 = vmatmul.mubr.bf16.gmra.mxu0 %v1580
        %v1619 = vpop.f32.mrf.mxu0
        %v1620 = vadd.f32 %v691, %v1619
        %v1621 = vpop.f32.mrf.mxu0
        %v1622 = vpop.f32.mrf.mxu0
        %v1623 = vpop.f32.mrf.mxu0
        %1624 = vdwg.mxu0
        %v1626 = vsel %vm605, %v1515, 0
        %v1629 = vsel %vm605, %v1523, 0
        %1631 = vmatprep.subr.bf16.mxu0 0
        %1632 = vmatpush1.bf16.xpose.msra.mxu0 0
        %1633 = vmatprep.subr.bf16.mxu0 0
        %1634 = vmatpush1.bf16.xpose.msra.mxu0 0
        %1635 = vmatprep.subr.bf16.mxu0 0
        %1636 = vmatpush1.bf16.xpose.msra.mxu0 0
        %1637 = vmatprep.subr.bf16.mxu0 0
        %1638 = vmatpush1.bf16.xpose.msra.mxu0 0
        %1639 = vmatprep.subr.bf16.mxu0 0
        %1640 = vmatpush1.bf16.xpose.msra.mxu0 0
        %1641 = vmatprep.subr.bf16.mxu0 0
        %1642 = vmatpush1.bf16.xpose.msra.mxu0 0
        %1643 = vmatprep.subr.bf16.mxu0 0
        %1644 = vmatpush1.bf16.xpose.msra.mxu0 0
        %1645 = vmatprep.subr.bf16.mxu0 0
        %1646 = vmatpush1.bf16.xpose.msra.mxu0 %v1629
        %1647 = vmatprep.subr.bf16.mxu0 0
        %1648 = vmatpush2.bf16.xpose.msra.mxu0 0
        %1649 = vmatprep.subr.bf16.mxu0 0
        %1650 = vmatpush2.bf16.xpose.msra.mxu0 0
        %1651 = vmatprep.subr.bf16.mxu0 0
        %1652 = vmatpush2.bf16.xpose.msra.mxu0 0
        %1653 = vmatprep.subr.bf16.mxu0 0
        %1654 = vmatpush2.bf16.xpose.msra.mxu0 0
        %1655 = vmatprep.subr.bf16.mxu0 0
        %1656 = vmatpush2.bf16.xpose.msra.mxu0 0
        %1657 = vmatprep.subr.bf16.mxu0 0
        %1658 = vmatpush2.bf16.xpose.msra.mxu0 0
        %1659 = vmatprep.subr.bf16.mxu0 0
        %1660 = vmatpush2.bf16.xpose.msra.mxu0 0
        %1661 = vmatprep.subr.bf16.mxu0 0
        %1662 = vmatpush2.bf16.xpose.msra.mxu0 0
        %1663 = vmatprep.mubr.bf16.mxu0 0
        %1664 = vmatmul.mubr.bf16.gmra.mxu0 %v1626
        %v1665 = vpop.f32.mrf.mxu0
        %v1666 = vadd.f32 %v691, %v1665
        %v1667 = vpop.f32.mrf.mxu0
        %v1668 = vpop.f32.mrf.mxu0
        %v1669 = vpop.f32.mrf.mxu0
        %1670 = vdwg.mxu0
        %v1672 = vsel %vm605, %v1516, 0
        %v1675 = vsel %vm605, %v1524, 0
        %1677 = vmatprep.subr.bf16.mxu0 0
        %1678 = vmatpush1.bf16.xpose.msra.mxu0 0
        %1679 = vmatprep.subr.bf16.mxu0 0
        %1680 = vmatpush1.bf16.xpose.msra.mxu0 0
        %1681 = vmatprep.subr.bf16.mxu0 0
        %1682 = vmatpush1.bf16.xpose.msra.mxu0 0
        %1683 = vmatprep.subr.bf16.mxu0 0
        %1684 = vmatpush1.bf16.xpose.msra.mxu0 0
        %1685 = vmatprep.subr.bf16.mxu0 0
        %1686 = vmatpush1.bf16.xpose.msra.mxu0 0
        %1687 = vmatprep.subr.bf16.mxu0 0
        %1688 = vmatpush1.bf16.xpose.msra.mxu0 0
        %1689 = vmatprep.subr.bf16.mxu0 0
        %1690 = vmatpush1.bf16.xpose.msra.mxu0 0
        %1691 = vmatprep.subr.bf16.mxu0 0
        %1692 = vmatpush1.bf16.xpose.msra.mxu0 %v1675
        %1693 = vmatprep.subr.bf16.mxu0 0
        %1694 = vmatpush2.bf16.xpose.msra.mxu0 0
        %1695 = vmatprep.subr.bf16.mxu0 0
        %1696 = vmatpush2.bf16.xpose.msra.mxu0 0
        %1697 = vmatprep.subr.bf16.mxu0 0
        %1698 = vmatpush2.bf16.xpose.msra.mxu0 0
        %1699 = vmatprep.subr.bf16.mxu0 0
        %1700 = vmatpush2.bf16.xpose.msra.mxu0 0
        %1701 = vmatprep.subr.bf16.mxu0 0
        %1702 = vmatpush2.bf16.xpose.msra.mxu0 0
        %1703 = vmatprep.subr.bf16.mxu0 0
        %1704 = vmatpush2.bf16.xpose.msra.mxu0 0
        %1705 = vmatprep.subr.bf16.mxu0 0
        %1706 = vmatpush2.bf16.xpose.msra.mxu0 0
        %1707 = vmatprep.subr.bf16.mxu0 0
        %1708 = vmatpush2.bf16.xpose.msra.mxu0 0
        %1709 = vmatprep.mubr.bf16.mxu0 0
        %1710 = vmatmul.mubr.bf16.gmra.mxu0 %v1672
        %v1711 = vpop.f32.mrf.mxu0
        %v1712 = vadd.f32 %v691, %v1711
        %v1713 = vpop.f32.mrf.mxu0
        %v1714 = vpop.f32.mrf.mxu0
        %v1715 = vpop.f32.mrf.mxu0
        %1716 = vdwg.mxu0
        %v1717 = vsel %vm605, %v1574, -inf
        %1718 = vmax.xlane.f32.xlu0 %v1717
        %v1719 = vpop.xlane.xlu0 %1718
        %v1720 = vsel %vm605, %v1620, -inf
        %1721 = vmax.xlane.f32.xlu0 %v1720
        %v1722 = vpop.xlane.xlu0 %1721
        %v1723 = vsel %vm605, %v1666, -inf
        %1724 = vmax.xlane.f32.xlu0 %v1723
        %v1725 = vpop.xlane.xlu0 %1724
        %v1726 = vsel %vm605, %v1712, -inf
        %1727 = vmax.xlane.f32.xlu0 %v1726
        %v1728 = vpop.xlane.xlu0 %1727
        %v1729 = vsub.f32 %v1574, %v1719
        %v1730 = vsub.f32 %v1620, %v1722
        %v1731 = vsub.f32 %v1666, %v1725
        %v1732 = vsub.f32 %v1712, %v1728
        %v1733 = vmul.f32 %v1729, 1.442695
        %v1734 = vpow.pop %v1733
        %v1735 = vmul.f32 %v1730, 1.442695
        %v1736 = vpow.pop %v1735
        %v1737 = vmul.f32 %v1731, 1.442695
        %v1738 = vpow.pop %v1737
        %v1739 = vmul.f32 %v1732, 1.442695
        %v1740 = vpow.pop %v1739
        %v1741 = vsel %vm605, %v1734, 0.0
        %1742 = vadd.xlane.f32.xlu0 %v1741
        %v1743 = vpop.xlane.xlu0 %1742
        %v1744 = vsel %vm605, %v1736, 0.0
        %1745 = vadd.xlane.f32.xlu0 %v1744
        %v1746 = vpop.xlane.xlu0 %1745
        %v1747 = vsel %vm605, %v1738, 0.0
        %1748 = vadd.xlane.f32.xlu0 %v1747
        %v1749 = vpop.xlane.xlu0 %1748
        %v1750 = vsel %vm605, %v1740, 0.0
        %1751 = vadd.xlane.f32.xlu0 %v1750
        %v1752 = vpop.xlane.xlu0 %1751
        %v1753 = vrcp.pop %v1743
        %v1754 = vrcp.pop %v1746
        %v1755 = vrcp.pop %v1749
        %v1756 = vrcp.pop %v1752
        %v1757 = vmul.f32 %v1734, %v1753
        %v1758 = vmul.f32 %v1736, %v1754
        %v1759 = vmul.f32 %v1738, %v1755
        %v1760 = vmul.f32 %v1740, %v1756
        %v1761 = vpack.c.bf16 %v1757, %v1757
        %v1762 = vpack.c.bf16 %v1758, %v1758
        %v1763 = vpack.c.bf16 %v1759, %v1759
        %v1764 = vpack.c.bf16 %v1760, %v1760
        %v1766 = vsel %vm605, %v1761, 0
        %v1769 = vsel %vm928, %v1529, 0
        %1771 = vmatprep.subr.bf16.mxu0 0
        %1772 = vmatpush1.bf16.msra.mxu0 0
        %1773 = vmatprep.subr.bf16.mxu0 0
        %1774 = vmatpush1.bf16.msra.mxu0 0
        %1775 = vmatprep.subr.bf16.mxu0 0
        %1776 = vmatpush1.bf16.msra.mxu0 0
        %1777 = vmatprep.subr.bf16.mxu0 0
        %1778 = vmatpush1.bf16.msra.mxu0 0
        %1779 = vmatprep.subr.bf16.mxu0 0
        %1780 = vmatpush1.bf16.msra.mxu0 0
        %1781 = vmatprep.subr.bf16.mxu0 0
        %1782 = vmatpush1.bf16.msra.mxu0 0
        %1783 = vmatprep.subr.bf16.mxu0 0
        %1784 = vmatpush1.bf16.msra.mxu0 0
        %1785 = vmatprep.subr.bf16.mxu0 0
        %1786 = vmatpush1.bf16.msra.mxu0 %v1769
        %1787 = vmatprep.subr.bf16.mxu0 0
        %1788 = vmatpush2.bf16.msra.mxu0 0
        %1789 = vmatprep.subr.bf16.mxu0 0
        %1790 = vmatpush2.bf16.msra.mxu0 0
        %1791 = vmatprep.subr.bf16.mxu0 0
        %1792 = vmatpush2.bf16.msra.mxu0 0
        %1793 = vmatprep.subr.bf16.mxu0 0
        %1794 = vmatpush2.bf16.msra.mxu0 0
        %1795 = vmatprep.subr.bf16.mxu0 0
        %1796 = vmatpush2.bf16.msra.mxu0 0
        %1797 = vmatprep.subr.bf16.mxu0 0
        %1798 = vmatpush2.bf16.msra.mxu0 0
        %1799 = vmatprep.subr.bf16.mxu0 0
        %1800 = vmatpush2.bf16.msra.mxu0 0
        %1801 = vmatprep.subr.bf16.mxu0 0
        %1802 = vmatpush2.bf16.msra.mxu0 0
        %1803 = vmatprep.mubr.bf16.mxu0 0
        %1804 = vmatmul.mubr.bf16.gmra.mxu0 %v1766
        %v1805 = vpop.f32.mrf.mxu0
        %v1806 = vadd.f32 0.0, %v1805
        %v1807 = vpop.f32.mrf.mxu0
        %v1808 = vpop.f32.mrf.mxu0
        %v1809 = vpop.f32.mrf.mxu0
        %1810 = vdwg.mxu0
        %v1812 = vsel %vm605, %v1762, 0
        %v1815 = vsel %vm928, %v1530, 0
        %1817 = vmatprep.subr.bf16.mxu0 0
        %1818 = vmatpush1.bf16.msra.mxu0 0
        %1819 = vmatprep.subr.bf16.mxu0 0
        %1820 = vmatpush1.bf16.msra.mxu0 0
        %1821 = vmatprep.subr.bf16.mxu0 0
        %1822 = vmatpush1.bf16.msra.mxu0 0
        %1823 = vmatprep.subr.bf16.mxu0 0
        %1824 = vmatpush1.bf16.msra.mxu0 0
        %1825 = vmatprep.subr.bf16.mxu0 0
        %1826 = vmatpush1.bf16.msra.mxu0 0
        %1827 = vmatprep.subr.bf16.mxu0 0
        %1828 = vmatpush1.bf16.msra.mxu0 0
        %1829 = vmatprep.subr.bf16.mxu0 0
        %1830 = vmatpush1.bf16.msra.mxu0 0
        %1831 = vmatprep.subr.bf16.mxu0 0
        %1832 = vmatpush1.bf16.msra.mxu0 %v1815
        %1833 = vmatprep.subr.bf16.mxu0 0
        %1834 = vmatpush2.bf16.msra.mxu0 0
        %1835 = vmatprep.subr.bf16.mxu0 0
        %1836 = vmatpush2.bf16.msra.mxu0 0
        %1837 = vmatprep.subr.bf16.mxu0 0
        %1838 = vmatpush2.bf16.msra.mxu0 0
        %1839 = vmatprep.subr.bf16.mxu0 0
        %1840 = vmatpush2.bf16.msra.mxu0 0
        %1841 = vmatprep.subr.bf16.mxu0 0
        %1842 = vmatpush2.bf16.msra.mxu0 0
        %1843 = vmatprep.subr.bf16.mxu0 0
        %1844 = vmatpush2.bf16.msra.mxu0 0
        %1845 = vmatprep.subr.bf16.mxu0 0
        %1846 = vmatpush2.bf16.msra.mxu0 0
        %1847 = vmatprep.subr.bf16.mxu0 0
        %1848 = vmatpush2.bf16.msra.mxu0 0
        %1849 = vmatprep.mubr.bf16.mxu0 0
        %1850 = vmatmul.mubr.bf16.gmra.mxu0 %v1812
        %v1851 = vpop.f32.mrf.mxu0
        %v1852 = vadd.f32 0.0, %v1851
        %v1853 = vpop.f32.mrf.mxu0
        %v1854 = vpop.f32.mrf.mxu0
        %v1855 = vpop.f32.mrf.mxu0
        %1856 = vdwg.mxu0
        %v1858 = vsel %vm605, %v1763, 0
        %v1861 = vsel %vm928, %v1531, 0
        %1863 = vmatprep.subr.bf16.mxu0 0
        %1864 = vmatpush1.bf16.msra.mxu0 0
        %1865 = vmatprep.subr.bf16.mxu0 0
        %1866 = vmatpush1.bf16.msra.mxu0 0
        %1867 = vmatprep.subr.bf16.mxu0 0
        %1868 = vmatpush1.bf16.msra.mxu0 0
        %1869 = vmatprep.subr.bf16.mxu0 0
        %1870 = vmatpush1.bf16.msra.mxu0 0
        %1871 = vmatprep.subr.bf16.mxu0 0
        %1872 = vmatpush1.bf16.msra.mxu0 0
        %1873 = vmatprep.subr.bf16.mxu0 0
        %1874 = vmatpush1.bf16.msra.mxu0 0
        %1875 = vmatprep.subr.bf16.mxu0 0
        %1876 = vmatpush1.bf16.msra.mxu0 0
        %1877 = vmatprep.subr.bf16.mxu0 0
        %1878 = vmatpush1.bf16.msra.mxu0 %v1861
        %1879 = vmatprep.subr.bf16.mxu0 0
        %1880 = vmatpush2.bf16.msra.mxu0 0
        %1881 = vmatprep.subr.bf16.mxu0 0
        %1882 = vmatpush2.bf16.msra.mxu0 0
        %1883 = vmatprep.subr.bf16.mxu0 0
        %1884 = vmatpush2.bf16.msra.mxu0 0
        %1885 = vmatprep.subr.bf16.mxu0 0
        %1886 = vmatpush2.bf16.msra.mxu0 0
        %1887 = vmatprep.subr.bf16.mxu0 0
        %1888 = vmatpush2.bf16.msra.mxu0 0
        %1889 = vmatprep.subr.bf16.mxu0 0
        %1890 = vmatpush2.bf16.msra.mxu0 0
        %1891 = vmatprep.subr.bf16.mxu0 0
        %1892 = vmatpush2.bf16.msra.mxu0 0
        %1893 = vmatprep.subr.bf16.mxu0 0
        %1894 = vmatpush2.bf16.msra.mxu0 0
        %1895 = vmatprep.mubr.bf16.mxu0 0
        %1896 = vmatmul.mubr.bf16.gmra.mxu0 %v1858
        %v1897 = vpop.f32.mrf.mxu0
        %v1898 = vadd.f32 0.0, %v1897
        %v1899 = vpop.f32.mrf.mxu0
        %v1900 = vpop.f32.mrf.mxu0
        %v1901 = vpop.f32.mrf.mxu0
        %1902 = vdwg.mxu0
        %v1904 = vsel %vm605, %v1764, 0
        %v1907 = vsel %vm928, %v1532, 0
        %1909 = vmatprep.subr.bf16.mxu0 0
        %1910 = vmatpush1.bf16.msra.mxu0 0
        %1911 = vmatprep.subr.bf16.mxu0 0
        %1912 = vmatpush1.bf16.msra.mxu0 0
        %1913 = vmatprep.subr.bf16.mxu0 0
        %1914 = vmatpush1.bf16.msra.mxu0 0
        %1915 = vmatprep.subr.bf16.mxu0 0
        %1916 = vmatpush1.bf16.msra.mxu0 0
        %1917 = vmatprep.subr.bf16.mxu0 0
        %1918 = vmatpush1.bf16.msra.mxu0 0
        %1919 = vmatprep.subr.bf16.mxu0 0
        %1920 = vmatpush1.bf16.msra.mxu0 0
        %1921 = vmatprep.subr.bf16.mxu0 0
        %1922 = vmatpush1.bf16.msra.mxu0 0
        %1923 = vmatprep.subr.bf16.mxu0 0
        %1924 = vmatpush1.bf16.msra.mxu0 %v1907
        %1925 = vmatprep.subr.bf16.mxu0 0
        %1926 = vmatpush2.bf16.msra.mxu0 0
        %1927 = vmatprep.subr.bf16.mxu0 0
        %1928 = vmatpush2.bf16.msra.mxu0 0
        %1929 = vmatprep.subr.bf16.mxu0 0
        %1930 = vmatpush2.bf16.msra.mxu0 0
        %1931 = vmatprep.subr.bf16.mxu0 0
        %1932 = vmatpush2.bf16.msra.mxu0 0
        %1933 = vmatprep.subr.bf16.mxu0 0
        %1934 = vmatpush2.bf16.msra.mxu0 0
        %1935 = vmatprep.subr.bf16.mxu0 0
        %1936 = vmatpush2.bf16.msra.mxu0 0
        %1937 = vmatprep.subr.bf16.mxu0 0
        %1938 = vmatpush2.bf16.msra.mxu0 0
        %1939 = vmatprep.subr.bf16.mxu0 0
        %1940 = vmatpush2.bf16.msra.mxu0 0
        %1941 = vmatprep.mubr.bf16.mxu0 0
        %1942 = vmatmul.mubr.bf16.gmra.mxu0 %v1904
        %v1943 = vpop.f32.mrf.mxu0
        %v1944 = vadd.f32 0.0, %v1943
        %v1945 = vpop.f32.mrf.mxu0
        %v1946 = vpop.f32.mrf.mxu0
        %v1947 = vpop.f32.mrf.mxu0
        %1948 = vdwg.mxu0
        %1949 = vst.msk [vmem:[#allocation3] sm:$0xff] %vm605, %v1806
        %1951 = vrot.lane.b32.xlu0 %v1852, 8
        %v1952 = vpop.permute.xlu0 %1951
        %1954 = vst.msk [vmem:[#allocation3] sm:$0xff] %vm1115, %v1952
        %1956 = vrot.lane.b32.xlu0 %v1898, 16
        %v1957 = vpop.permute.xlu0 %1956
        %1959 = vst.msk [vmem:[#allocation3] sm:$0xff] %vm1121, %v1957
        %1961 = vrot.lane.b32.xlu0 %v1944, 24
        %v1962 = vpop.permute.xlu0 %1961
        %1964 = vst.msk [vmem:[#allocation3] sm:$0xff] %vm1127, %v1962
        %v1965 = vld [vmem:[#allocation3] sm:$0xff]
        %v1966 = vpack.c.bf16 %v1965, %v1965
        %s1967 = scalar_lea.vmem %s4, 16
        %v1968 = vld [vmem:[%s1967] sm:$0xf]
        %v1969 = vld [vmem:[%s1967 + $0x4] sm:$0xf]
        %v1970 = vld [vmem:[%s1967 + $0x8] sm:$0xf]
        %v1971 = vld [vmem:[%s1967 + $0xc] sm:$0xf]
        %v1972 = vlaneseq
        %v1973 = vshrl.u32 %v1972, 7
        %v1974 = vsub.s32 2, %v1973
        %v1975 = vrot.slane %v1397, %v1974
        %v1980 = vunpack.c.l.b16 %v1968
        %v1981 = vunpack.c.l.b16 %v1969
        %v1982 = vunpack.c.l.b16 %v1970
        %v1983 = vunpack.c.l.b16 %v1971
        %v1984 = vpack.c.b16 %v1981, %v1980
        %v1985 = vpack.c.b16 %v1983, %v1982
        %v1989 = vsel %vm515, %v1966, 0
        %1991 = vmatprep.subr.bf16.mxu0 0
        %1992 = vmatpush1.bf16.msra.mxu0 0
        %1993 = vmatprep.subr.bf16.mxu0 0
        %1994 = vmatpush1.bf16.msra.mxu0 0
        %1995 = vmatprep.subr.bf16.mxu0 0
        %1996 = vmatpush1.bf16.msra.mxu0 0
        %1997 = vmatprep.subr.bf16.mxu0 0
        %1998 = vmatpush1.bf16.msra.mxu0 0
        %1999 = vmatprep.subr.bf16.mxu0 0
        %2000 = vmatpush1.bf16.msra.mxu0 0
        %2001 = vmatprep.subr.bf16.mxu0 0
        %2002 = vmatpush1.bf16.msra.mxu0 0
        %2003 = vmatprep.subr.bf16.mxu0 0
        %2004 = vmatpush1.bf16.msra.mxu0 %v1985
        %2005 = vmatprep.subr.bf16.mxu0 0
        %2006 = vmatpush1.bf16.msra.mxu0 %v1984
        %2007 = vmatprep.subr.bf16.mxu0 0
        %2008 = vmatpush2.bf16.msra.mxu0 0
        %2009 = vmatprep.subr.bf16.mxu0 0
        %2010 = vmatpush2.bf16.msra.mxu0 0
        %2011 = vmatprep.subr.bf16.mxu0 0
        %2012 = vmatpush2.bf16.msra.mxu0 0
        %2013 = vmatprep.subr.bf16.mxu0 0
        %2014 = vmatpush2.bf16.msra.mxu0 0
        %2015 = vmatprep.subr.bf16.mxu0 0
        %2016 = vmatpush2.bf16.msra.mxu0 0
        %2017 = vmatprep.subr.bf16.mxu0 0
        %2018 = vmatpush2.bf16.msra.mxu0 0
        %2019 = vmatprep.subr.bf16.mxu0 0
        %2020 = vmatpush2.bf16.msra.mxu0 0
        %2021 = vmatprep.subr.bf16.mxu0 0
        %2022 = vmatpush2.bf16.msra.mxu0 0
        %2023 = vmatprep.mubr.bf16.mxu0 0
        %2024 = vmatmul.mubr.bf16.gmra.mxu0 %v1989
        %v2025 = vpop.f32.mrf.mxu0
        %v2026 = vadd.f32 %v1975, %v2025
        %v2027 = vpop.f32.mrf.mxu0
        %v2028 = vpop.f32.mrf.mxu0
        %v2029 = vpop.f32.mrf.mxu0
        %2030 = vdwg.mxu0
        %v2031 = vadd.f32 %v1395, %v2026
        %v2032 = vsel %vm515, %v2031, 0.0
        %2033 = vadd.xlane.f32.xlu0 %v2032
        %v2034 = vpop.xlane.xlu0 %2033
        %v2035 = vmul.f32 %v2034, %v519
        %v2036 = vsub.f32 %v2031, %v2035
        %v2037 = vmul.f32 %v2036, %v2036
        %v2038 = vsel %vm515, %v2037, 0.0
        %2039 = vadd.xlane.f32.xlu0 %v2038
        %v2040 = vpop.xlane.xlu0 %2039
        %v2041 = vmul.f32 %v2040, %v519
        %v2042 = vadd.f32 %v2041, 1e-12
        %v2043 = vrsqrt.pop %v2042
        %v2044 = vmul.f32 %v2036, %v2043
        %v2045 = vlaneseq
        %v2046 = vshrl.u32 %v2045, 7
        %v2047 = vsub.s32 3, %v2046
        %v2048 = vrot.slane %v1397, %v2047
        %v2049 = vmul.f32 %v2044, %v2048
        %v2050 = vlaneseq
        %v2051 = vshrl.u32 %v2050, 7
        %v2052 = vsub.s32 4, %v2051
        %v2053 = vrot.slane %v1397, %v2052
        %v2054 = vadd.f32 %v2049, %v2053
        %v2055 = vpack.c.bf16 %v2054, %v2054
        %s2056 = scalar_lea.vmem %s5, 16
        %v2057 = vld [vmem:[%s2056] sm:$0xf]
        %v2058 = vld [vmem:[%s2056 + $0x4] sm:$0xf]
        %v2059 = vld [vmem:[%s2056 + $0x8] sm:$0xf]
        %v2060 = vld [vmem:[%s2056 + $0xc] sm:$0xf]
        %v2061 = vlaneseq
        %v2062 = vshrl.u32 %v2061, 7
        %v2063 = vsub.s32 1, %v2062
        %v2064 = vrot.slane %v1397, %v2063
        %v2069 = vunpack.c.l.b16 %v2057
        %v2070 = vunpack.c.l.b16 %v2058
        %v2071 = vunpack.c.l.b16 %v2059
        %v2072 = vunpack.c.l.b16 %v2060
        %v2073 = vpack.c.b16 %v2070, %v2069
        %v2074 = vpack.c.b16 %v2072, %v2071
        %v2078 = vsel %vm515, %v2055, 0
        %2080 = vmatprep.subr.bf16.mxu0 0
        %2081 = vmatpush1.bf16.msra.mxu0 0
        %2082 = vmatprep.subr.bf16.mxu0 0
        %2083 = vmatpush1.bf16.msra.mxu0 0
        %2084 = vmatprep.subr.bf16.mxu0 0
        %2085 = vmatpush1.bf16.msra.mxu0 0
        %2086 = vmatprep.subr.bf16.mxu0 0
        %2087 = vmatpush1.bf16.msra.mxu0 0
        %2088 = vmatprep.subr.bf16.mxu0 0
        %2089 = vmatpush1.bf16.msra.mxu0 0
        %2090 = vmatprep.subr.bf16.mxu0 0
        %2091 = vmatpush1.bf16.msra.mxu0 0
        %2092 = vmatprep.subr.bf16.mxu0 0
        %2093 = vmatpush1.bf16.msra.mxu0 %v2074
        %2094 = vmatprep.subr.bf16.mxu0 0
        %2095 = vmatpush1.bf16.msra.mxu0 %v2073
        %2096 = vmatprep.subr.bf16.mxu0 0
        %2097 = vmatpush2.bf16.msra.mxu0 0
        %2098 = vmatprep.subr.bf16.mxu0 0
        %2099 = vmatpush2.bf16.msra.mxu0 0
        %2100 = vmatprep.subr.bf16.mxu0 0
        %2101 = vmatpush2.bf16.msra.mxu0 0
        %2102 = vmatprep.subr.bf16.mxu0 0
        %2103 = vmatpush2.bf16.msra.mxu0 0
        %2104 = vmatprep.subr.bf16.mxu0 0
        %2105 = vmatpush2.bf16.msra.mxu0 0
        %2106 = vmatprep.subr.bf16.mxu0 0
        %2107 = vmatpush2.bf16.msra.mxu0 0
        %2108 = vmatprep.subr.bf16.mxu0 0
        %2109 = vmatpush2.bf16.msra.mxu0 0
        %2110 = vmatprep.subr.bf16.mxu0 0
        %2111 = vmatpush2.bf16.msra.mxu0 0
        %2112 = vmatprep.mubr.bf16.mxu0 0
        %2113 = vmatmul.mubr.bf16.gmra.mxu0 %v2078
        %v2114 = vpop.f32.mrf.mxu0
        %v2115 = vadd.f32 %v2064, %v2114
        %v2116 = vpop.f32.mrf.mxu0
        %v2117 = vpop.f32.mrf.mxu0
        %v2118 = vpop.f32.mrf.mxu0
        %2119 = vdwg.mxu0
        %v2120 = vmul.f32 %v2115, 0.5
        %v2121 = vmul.f32 %v2115, 0.044715
        %v2122 = vmul.f32 %v2121, %v2115
        %v2123 = vmul.f32 %v2122, %v2115
        %v2124 = vadd.f32 %v2115, %v2123
        %v2125 = vmul.f32 %v2124, 0.7978846
        %v2126 = vtanh.pop %v2125
        %v2127 = vadd.f32 %v2126, 1.0
        %v2128 = vmul.f32 %v2120, %v2127
        %v2129 = vpack.c.bf16 %v2128, %v2128
        %s2130 = scalar_lea.vmem %s6, 32
        %v2131 = vld [vmem:[%s2130] sm:$0xf]
        %v2132 = vld [vmem:[%s2130 + $0x4] sm:$0xf]
        %v2133 = vld [vmem:[%s2130 + $0x8] sm:$0xf]
        %v2134 = vld [vmem:[%s2130 + $0xc] sm:$0xf]
        %v2135 = vld [vmem:[%s2130 + $0x10] sm:$0xf]
        %v2136 = vld [vmem:[%s2130 + $0x14] sm:$0xf]
        %v2137 = vld [vmem:[%s2130 + $0x18] sm:$0xf]
        %v2138 = vld [vmem:[%s2130 + $0x1c] sm:$0xf]
        %v2139 = vlaneseq
        %v2140 = vshrl.u32 %v2139, 7
        %v2141 = vsub.s32 5, %v2140
        %v2142 = vrot.slane %v1397, %v2141
        %v2151 = vunpack.c.l.b16 %v2131
        %v2152 = vunpack.c.l.b16 %v2132
        %v2153 = vunpack.c.l.b16 %v2133
        %v2154 = vunpack.c.l.b16 %v2134
        %v2155 = vunpack.c.l.b16 %v2135
        %v2156 = vunpack.c.l.b16 %v2136
        %v2157 = vunpack.c.l.b16 %v2137
        %v2158 = vunpack.c.l.b16 %v2138
        %v2159 = vpack.c.b16 %v2152, %v2151
        %v2160 = vpack.c.b16 %v2154, %v2153
        %v2161 = vpack.c.b16 %v2156, %v2155
        %v2162 = vpack.c.b16 %v2158, %v2157
        %v2168 = vsel %vm1328, %v2129, 0
        %2170 = vmatprep.subr.bf16.mxu0 0
        %2171 = vmatpush1.bf16.msra.mxu0 0
        %2172 = vmatprep.subr.bf16.mxu0 0
        %2173 = vmatpush1.bf16.msra.mxu0 0
        %2174 = vmatprep.subr.bf16.mxu0 0
        %2175 = vmatpush1.bf16.msra.mxu0 0
        %2176 = vmatprep.subr.bf16.mxu0 0
        %2177 = vmatpush1.bf16.msra.mxu0 0
        %2178 = vmatprep.subr.bf16.mxu0 0
        %2179 = vmatpush1.bf16.msra.mxu0 %v2162
        %2180 = vmatprep.subr.bf16.mxu0 0
        %2181 = vmatpush1.bf16.msra.mxu0 %v2161
        %2182 = vmatprep.subr.bf16.mxu0 0
        %2183 = vmatpush1.bf16.msra.mxu0 %v2160
        %2184 = vmatprep.subr.bf16.mxu0 0
        %2185 = vmatpush1.bf16.msra.mxu0 %v2159
        %2186 = vmatprep.subr.bf16.mxu0 0
        %2187 = vmatpush2.bf16.msra.mxu0 0
        %2188 = vmatprep.subr.bf16.mxu0 0
        %2189 = vmatpush2.bf16.msra.mxu0 0
        %2190 = vmatprep.subr.bf16.mxu0 0
        %2191 = vmatpush2.bf16.msra.mxu0 0
        %2192 = vmatprep.subr.bf16.mxu0 0
        %2193 = vmatpush2.bf16.msra.mxu0 0
        %2194 = vmatprep.subr.bf16.mxu0 0
        %2195 = vmatpush2.bf16.msra.mxu0 0
        %2196 = vmatprep.subr.bf16.mxu0 0
        %2197 = vmatpush2.bf16.msra.mxu0 0
        %2198 = vmatprep.subr.bf16.mxu0 0
        %2199 = vmatpush2.bf16.msra.mxu0 0
        %2200 = vmatprep.subr.bf16.mxu0 0
        %2201 = vmatpush2.bf16.msra.mxu0 0
        %2202 = vmatprep.mubr.bf16.mxu0 0
        %2203 = vmatmul.mubr.bf16.gmra.mxu0 %v2168
        %v2204 = vpop.f32.mrf.mxu0
        %v2205 = vadd.f32 %v2142, %v2204
        %v2206 = vpop.f32.mrf.mxu0
        %v2207 = vpop.f32.mrf.mxu0
        %v2208 = vpop.f32.mrf.mxu0
        %2209 = vdwg.mxu0
        %v2210 = vadd.f32 %v2054, %v2205
        %v2211 = vsel %vm515, %v2210, 0.0
        %2212 = vadd.xlane.f32.xlu0 %v2211
        %v2213 = vpop.xlane.xlu0 %2212
        %v2214 = vmul.f32 %v2213, %v519
        %v2215 = vsub.f32 %v2210, %v2214
        %v2216 = vmul.f32 %v2215, %v2215
        %v2217 = vsel %vm515, %v2216, 0.0
        %2218 = vadd.xlane.f32.xlu0 %v2217
        %v2219 = vpop.xlane.xlu0 %2218
        %v2220 = vmul.f32 %v2219, %v519
        %v2221 = vadd.f32 %v2220, 1e-12
        %v2222 = vrsqrt.pop %v2221
        %v2223 = vmul.f32 %v2215, %v2222
        %v2224 = vlaneseq
        %v2225 = vshrl.u32 %v2224, 7
        %v2226 = vsub.s32 6, %v2225
        %v2227 = vrot.slane %v1397, %v2226
        %v2228 = vmul.f32 %v2223, %v2227
        %v2229 = vlaneseq
        %v2230 = vshrl.u32 %v2229, 7
        %v2231 = vsub.s32 7, %v2230
        %v2232 = vrot.slane %v1397, %v2231
        %v2233 = vadd.f32 %v2228, %v2232
        %v2234 = vld [vmem:[#allocation12] sm:$0xff]
        %v2235 = vld [vmem:[#allocation12 + $0x8] sm:$0xff]
        %v2236 = vld [vmem:[#allocation12 + $0x10] sm:$0xff]
        %v2237 = vld [vmem:[#allocation12 + $0x18] sm:$0xff]
        %v2239 = vrot.slane %v512, 2
        %v2242 = vsel %vm515, %v2233, 0
        %2244 = vmatprep.subr.mxu0 0.0
        %2245 = vmatpush1.msra.mxu0 0.0
        %2246 = vmatprep.subr.mxu0 0.0
        %2247 = vmatpush1.msra.mxu0 0.0
        %2248 = vmatprep.subr.mxu0 0.0
        %2249 = vmatpush1.msra.mxu0 0.0
        %2250 = vmatprep.subr.mxu0 0.0
        %2251 = vmatpush1.msra.mxu0 0.0
        %2252 = vmatprep.subr.mxu0 0.0
        %2253 = vmatpush1.msra.mxu0 0.0
        %2254 = vmatprep.subr.mxu0 0.0
        %2255 = vmatpush1.msra.mxu0 0.0
        %2256 = vmatprep.subr.mxu0 0.0
        %2257 = vmatpush1.msra.mxu0 0.0
        %2258 = vmatprep.subr.mxu0 0.0
        %2259 = vmatpush1.msra.mxu0 0.0
        %2260 = vmatprep.subr.mxu0 0.0
        %2261 = vmatpush1.msra.mxu0 0.0
        %2262 = vmatprep.subr.mxu0 0.0
        %2263 = vmatpush1.msra.mxu0 0.0
        %2264 = vmatprep.subr.mxu0 0.0
        %2265 = vmatpush1.msra.mxu0 0.0
        %2266 = vmatprep.subr.mxu0 0.0
        %2267 = vmatpush1.msra.mxu0 0.0
        %2268 = vmatprep.subr.mxu0 0.0
        %2269 = vmatpush1.msra.mxu0 %v2237
        %2270 = vmatprep.subr.mxu0 0.0
        %2271 = vmatpush1.msra.mxu0 %v2236
        %2272 = vmatprep.subr.mxu0 0.0
        %2273 = vmatpush1.msra.mxu0 %v2235
        %2274 = vmatprep.subr.mxu0 0.0
        %2275 = vmatpush1.msra.mxu0 %v2234
        %2276 = vmatprep.subr.mxu0 0.0
        %2277 = vmatpush2.msra.mxu0 0.0
        %2278 = vmatprep.subr.mxu0 0.0
        %2279 = vmatpush2.msra.mxu0 0.0
        %2280 = vmatprep.subr.mxu0 0.0
        %2281 = vmatpush2.msra.mxu0 0.0
        %2282 = vmatprep.subr.mxu0 0.0
        %2283 = vmatpush2.msra.mxu0 0.0
        %2284 = vmatprep.subr.mxu0 0.0
        %2285 = vmatpush2.msra.mxu0 0.0
        %2286 = vmatprep.subr.mxu0 0.0
        %2287 = vmatpush2.msra.mxu0 0.0
        %2288 = vmatprep.subr.mxu0 0.0
        %2289 = vmatpush2.msra.mxu0 0.0
        %2290 = vmatprep.subr.mxu0 0.0
        %2291 = vmatpush2.msra.mxu0 0.0
        %2292 = vmatprep.subr.mxu0 0.0
        %2293 = vmatpush2.msra.mxu0 0.0
        %2294 = vmatprep.subr.mxu0 0.0
        %2295 = vmatpush2.msra.mxu0 0.0
        %2296 = vmatprep.subr.mxu0 0.0
        %2297 = vmatpush2.msra.mxu0 0.0
        %2298 = vmatprep.subr.mxu0 0.0
        %2299 = vmatpush2.msra.mxu0 0.0
        %2300 = vmatprep.subr.mxu0 0.0
        %2301 = vmatpush2.msra.mxu0 0.0
        %2302 = vmatprep.subr.mxu0 0.0
        %2303 = vmatpush2.msra.mxu0 0.0
        %2304 = vmatprep.subr.mxu0 0.0
        %2305 = vmatpush2.msra.mxu0 0.0
        %2306 = vmatprep.subr.mxu0 0.0
        %2307 = vmatpush2.msra.mxu0 0.0
        %2308 = vmatprep.mubr.f32.mxu0 0.0
        %2309 = vmatmul.mubr.f32.gmra.mxu0 %v2242
        %v2310 = vpop.f32.mrf.mxu0
        %v2311 = vadd.f32 %v2239, %v2310
        %v2312 = vpop.f32.mrf.mxu0
        %2313 = vdwg.mxu0
        %v2314 = vtanh.pop %v2311
        %v2315 = vld [vmem:[#allocation13] sm:$0xff]
        %v2316 = vld [vmem:[#allocation13 + $0x8] sm:$0xff]
        %v2317 = vld [vmem:[#allocation13 + $0x10] sm:$0xff]
        %v2318 = vld [vmem:[#allocation13 + $0x18] sm:$0xff]
        %v2319 = vrot.slane %v512, 3
        %v2322 = vsel %vm515, %v2314, 0
        %2324 = vmatprep.subr.mxu0 0.0
        %2325 = vmatpush1.msra.mxu0 0.0
        %2326 = vmatprep.subr.mxu0 0.0
        %2327 = vmatpush1.msra.mxu0 0.0
        %2328 = vmatprep.subr.mxu0 0.0
        %2329 = vmatpush1.msra.mxu0 0.0
        %2330 = vmatprep.subr.mxu0 0.0
        %2331 = vmatpush1.msra.mxu0 0.0
        %2332 = vmatprep.subr.mxu0 0.0
        %2333 = vmatpush1.msra.mxu0 0.0
        %2334 = vmatprep.subr.mxu0 0.0
        %2335 = vmatpush1.msra.mxu0 0.0
        %2336 = vmatprep.subr.mxu0 0.0
        %2337 = vmatpush1.msra.mxu0 0.0
        %2338 = vmatprep.subr.mxu0 0.0
        %2339 = vmatpush1.msra.mxu0 0.0
        %2340 = vmatprep.subr.mxu0 0.0
        %2341 = vmatpush1.msra.mxu0 0.0
        %2342 = vmatprep.subr.mxu0 0.0
        %2343 = vmatpush1.msra.mxu0 0.0
        %2344 = vmatprep.subr.mxu0 0.0
        %2345 = vmatpush1.msra.mxu0 0.0
        %2346 = vmatprep.subr.mxu0 0.0
        %2347 = vmatpush1.msra.mxu0 0.0
        %2348 = vmatprep.subr.mxu0 0.0
        %2349 = vmatpush1.msra.mxu0 %v2318
        %2350 = vmatprep.subr.mxu0 0.0
        %2351 = vmatpush1.msra.mxu0 %v2317
        %2352 = vmatprep.subr.mxu0 0.0
        %2353 = vmatpush1.msra.mxu0 %v2316
        %2354 = vmatprep.subr.mxu0 0.0
        %2355 = vmatpush1.msra.mxu0 %v2315
        %2356 = vmatprep.subr.mxu0 0.0
        %2357 = vmatpush2.msra.mxu0 0.0
        %2358 = vmatprep.subr.mxu0 0.0
        %2359 = vmatpush2.msra.mxu0 0.0
        %2360 = vmatprep.subr.mxu0 0.0
        %2361 = vmatpush2.msra.mxu0 0.0
        %2362 = vmatprep.subr.mxu0 0.0
        %2363 = vmatpush2.msra.mxu0 0.0
        %2364 = vmatprep.subr.mxu0 0.0
        %2365 = vmatpush2.msra.mxu0 0.0
        %2366 = vmatprep.subr.mxu0 0.0
        %2367 = vmatpush2.msra.mxu0 0.0
        %2368 = vmatprep.subr.mxu0 0.0
        %2369 = vmatpush2.msra.mxu0 0.0
        %2370 = vmatprep.subr.mxu0 0.0
        %2371 = vmatpush2.msra.mxu0 0.0
        %2372 = vmatprep.subr.mxu0 0.0
        %2373 = vmatpush2.msra.mxu0 0.0
        %2374 = vmatprep.subr.mxu0 0.0
        %2375 = vmatpush2.msra.mxu0 0.0
        %2376 = vmatprep.subr.mxu0 0.0
        %2377 = vmatpush2.msra.mxu0 0.0
        %2378 = vmatprep.subr.mxu0 0.0
        %2379 = vmatpush2.msra.mxu0 0.0
        %2380 = vmatprep.subr.mxu0 0.0
        %2381 = vmatpush2.msra.mxu0 0.0
        %2382 = vmatprep.subr.mxu0 0.0
        %2383 = vmatpush2.msra.mxu0 0.0
        %2384 = vmatprep.subr.mxu0 0.0
        %2385 = vmatpush2.msra.mxu0 0.0
        %2386 = vmatprep.subr.mxu0 0.0
        %2387 = vmatpush2.msra.mxu0 0.0
        %2388 = vmatprep.mubr.f32.mxu0 0.0
        %2389 = vmatmul.mubr.f32.gmra.mxu0 %v2322
        %v2390 = vpop.f32.mrf.mxu0
        %v2391 = vadd.f32 %v2319, %v2390
        %v2392 = vpop.f32.mrf.mxu0
        %2393 = vdwg.mxu0
        %vm2394 = vcmask 1040384
        %v2395 = vsel %vm2394, %v2391, -inf
        %2396 = vmax.xlane.f32.xlu0 %v2395
        %v2397 = vpop.xlane.xlu0 %2396
        %v2398 = vsub.f32 %v2391, %v2397
        %v2399 = vmul.f32 %v2398, 1.442695
        %v2400 = vpow.pop %v2399
        %v2401 = vsel %vm2394, %v2400, 0.0
        %2402 = vadd.xlane.f32.xlu0 %v2401
        %v2403 = vpop.xlane.xlu0 %2402
        %v2404 = vlog2.pop %v2403
        %v2405 = vmul.f32 %v2404, 0.6931472
        %v2406 = vadd.f32 %v2405, %v2397
        %v2407 = vld [vmem:[%s452] sm:$0x1]
        %v2408 = vmul.f32 %v2407, %v2391
        %v2409 = vsel %vm2394, %v2408, 0.0
        %2410 = vadd.xlane.f32.xlu0 %v2409
        %v2411 = vpop.xlane.xlu0 %2410
        %v2412 = vsub.f32 %v2406, %v2411
        %v2414 = vrot.slane %v2412, 7
        %v2416 = vsel %vm2394, %v2391, %v2414
        %vm2417 = vcmask 1041408
        %v2418 = vsel %vm2417, %v2416, 0.0
        %2419 = vst [vmem:[%s510] sm:$0xff] %v2418
        %s2420 = sand.u32 %s287, 1
        %s2421 = scalar_lea.sflag [#allocation6], %s2420
        %s2422 = sand.u32 %s287, 1
        %s2423 = smul.addr %s2422, 8
        %s2424 = scalar_lea.vmem [#allocation15], %s2423
        // Predicated region
        $region89: #{tpu_custom_call.1} parent=63 // pred_check
          %p2425 = pneg %p297
        $region90: #{tpu_custom_call.1} parent=63 // pred_check_branch
          %2427 = sbr.rel (%p2425) target = $region92
        $region91: #{tpu_custom_call.1} parent=63 // pred_region
          %s2429 = ssub.s32 128, 128
          %2430 = vsyncadd %s2421, %s2429
          %s2431 = smul.addr %s33, 128
          %s2432 = scalar_lea.hbm %s11, %s2431
          %s2434 = sshll.u32 %s2424, 4
          %s2435 = int_to_ptr.vmem [resolvable:$true] %s2434
          %2437 = dma.vmem_to_hbm [thread:$0]  %s2435, 128, %s2432, %s2421
        $region92: #{tpu_custom_call.1} parent=63 // pred_fallthru
          _
      $region64: #{tpu_custom_call.1} parent=5 // pred_fallthru
        _
      %p2438 = scmp.le.s32.totalorder 2, %s28
      // Predicated region
      $region93: #{tpu_custom_call.1} parent=5 // pred_check
        %p2439 = pneg %p2438
      $region94: #{tpu_custom_call.1} parent=5 // pred_check_branch
        %2441 = sbr.rel (%p2439) target = $region96
      $region95: #{tpu_custom_call.1} parent=5 // pred_region
        %s2442 = ssub.s32 %s28, 2
        // Predicated region
        $region97: #{tpu_custom_call.1} parent=95 // pred_check
          %p2443 = pneg %p303
        $region98: #{tpu_custom_call.1} parent=95 // pred_check_branch
          %2445 = sbr.rel (%p2443) target = $region100
        $region99: #{tpu_custom_call.1} parent=95 // pred_region
          %s2446 = sand.u32 %s288, 1
          %s2447 = scalar_lea.sflag [#allocation6], %s2446
          %s2448 = sand.u32 %s288, 1
          %s2449 = smul.addr %s2448, 8
          %s2450 = scalar_lea.vmem [#allocation15], %s2449
          %2451 = dma.done %s2447, 128
        $region100: #{tpu_custom_call.1} parent=95 // pred_fallthru
          _
      $region96: #{tpu_custom_call.1} parent=5 // pred_fallthru
        _
    $region6: #{tpu_custom_call.1} parent=1 // loop_footer
      %s32 = sadd.s32 1, %s28
    $region7: #{tpu_custom_call.1} parent=1 // loop_footer_branch
      %27 = sbr.rel target = $region3
    $region8: #{tpu_custom_call.1} parent=1 // loop_exit
      _
    %2452 = vsyncpa [#allocation5], 1
    %s2453 = scalar_lea.sflag [#allocation5], 1
    %2454 = vsyncpa %s2453, 1
    %2455 = vsyncpa [#allocation8], 1
    %s2456 = scalar_lea.sflag [#allocation8], 1
    %2457 = vsyncpa %s2456, 1
    %2458 = vsyncpa [#allocation11], 1
    %2459 = vsyncpa [#allocation14], 1
    %2460 = vsyncpa [#allocation6], 1
    %s2461 = scalar_lea.sflag [#allocation6], 1
    %2462 = vsyncpa %s2461, 1

</llo_original>
